<compile_context>
chip_gen: v7x
topology: tpu7x:2x2x1
jax: 0.10.0
libtpu: 0.0.40
codegen_flags: <defaults>
</compile_context>

<pallas_src>
import math
import jax
import jax.numpy as jnp
from jax.experimental import pallas as pl
from jax.experimental.pallas import tpu as pltpu


def _round_up(x, m):
    return (x + m - 1) // m * m


def _vmem_limit_bytes():
    """~75% of this generation's physical VMEM (48 MiB v7x, 96 MiB v5e/v6e)."""
    try:
        cap = pltpu.get_tpu_info().vmem_capacity_bytes
    except Exception:
        cap = 64 * 1024 * 1024
    return max(32 * 1024 * 1024, min(int(cap) * 3 // 4, 112 * 1024 * 1024))


def _downsample_conv_kernel(x_ref, w_ref, b_ref, o_ref):
    """One (batch, row-tile) step of the stride-2 3x3 conv.

    x_ref: (4, Hp2, Wp2, Cin_p)   bf16  parity planes of the whole padded image;
                                        plane p = (kh%2)*2 + (kw%2).  Its index_map is
                                        constant along the row-tile axis, so this block
                                        stays VMEM-resident across all row tiles.
    w_ref: (9, Cin_p, Cout_p)     bf16  per-tap weights (tap = kh*3 + kw), resident.
    b_ref: (1, Cout_p)            f32   bias row, resident.
    o_ref: (1, TH, Wo_p, Cout_p)  f32/bf16  one row-tile of the output (lane-dense).
    """
    th = o_ref.shape[1]
    wo_p = o_ref.shape[2]
    cin = x_ref.shape[3]
    cout = o_ref.shape[3]
    m = th * wo_p
    row0 = pl.multiple_of(pl.program_id(1) * th, th)   # first output row of this tile

    acc = jnp.zeros((m, cout), jnp.float32)            # bounded, vreg-scale accumulator
    for kh in range(3):
        for kw in range(3):
            p = (kh % 2) * 2 + (kw % 2)
            # tap (kh, kw) == contiguous window of parity plane p
            tap = x_ref[p, pl.ds(row0 + kh // 2, th), kw // 2:kw // 2 + wo_p, :]
            acc = acc + jnp.dot(tap.reshape(m, cin), w_ref[kh * 3 + kw],
                                preferred_element_type=jnp.float32)
    out = acc + b_ref[...]
    o_ref[0] = out.reshape(th, wo_p, cout).astype(o_ref.dtype)


def _run_pallas(xs, w, b_row, *, B, NH, TH, Hp2, Wp2, Wo_p, cin_p, cout_p,
                out_dtype, flops, bytes_accessed, single_buffer_weights):
    def const_spec(shape, imap):
        # weights/bias never change across the grid -> single buffer saves VMEM
        if single_buffer_weights:
            return pl.BlockSpec(shape, imap, pipeline_mode=pl.Buffered(1))
        return pl.BlockSpec(shape, imap)

    return pl.pallas_call(
        _downsample_conv_kernel,
        out_shape=jax.ShapeDtypeStruct((B, NH * TH, Wo_p, cout_p), out_dtype),
        grid_spec=pltpu.PrefetchScalarGridSpec(
            num_scalar_prefetch=0,
            grid=(B, NH),                         # (batch, row tile) — both parallel
            in_specs=[
                pl.BlockSpec((4, Hp2, Wp2, cin_p), lambda b, h: (b, 0, 0, 0)),
                const_spec((9, cin_p, cout_p), lambda b, h: (0, 0, 0)),
                const_spec((1, cout_p), lambda b, h: (0, 0)),
            ],
            out_specs=pl.BlockSpec((1, TH, Wo_p, cout_p), lambda b, h: (b, h, 0, 0)),
        ),
        compiler_params=pltpu.CompilerParams(
            dimension_semantics=("parallel", "parallel"),
            vmem_limit_bytes=_vmem_limit_bytes(),
        ),
        cost_estimate=pl.CostEstimate(
            flops=int(flops), transcendentals=0, bytes_accessed=int(bytes_accessed)),
    )(xs, w, b_row)


def downsample_pallas(x_nchw, weight_oihw, bias, *, out_dtype=jnp.float32):
    B, C, H, W = x_nchw.shape
    Cout, Cin, KH, KW = weight_oihw.shape
    assert Cin == C and KH == 3 and KW == 3

    Ho, Wo = (H + 1) // 2, (W + 1) // 2          # output extents of stride-2, pad-1 3x3
    cin_p = _round_up(C, 128)                    # lane-dense contraction dim (MXU K)
    cout_p = _round_up(Cout, 128)                # lane-dense output dim (unmasked vst)
    Wo_p = _round_up(Wo, 8)                      # sublane-aligned output width
    Wp2 = Wo_p + 8                               # parity-plane width (8-aligned, >= Wo+1)

    # Row-tile height: ~256 MXU rows per matmul and f32 accumulator <= ~128 KiB.
    th_m = max(1, 256 // Wo_p)
    th_acc = max(1, (128 * 1024) // (Wo_p * cout_p * 4))
    TH = max(1, min(Ho, th_m, th_acc))
    Ho_p = _round_up(Ho, TH)
    NH = Ho_p // TH
    Hp2 = Ho_p + 1                               # plane height (+1 halo row for kh=2)

    kernel_dtype = (jnp.bfloat16 if jnp.dtype(out_dtype) == jnp.dtype(jnp.bfloat16)
                    else jnp.float32)

    # --- glue: NCHW -> NHWC, conv pad(1) + alignment pad, channel pad, parity split ---
    # TODO(synk): if the surrounding model keeps NHWC activations end-to-end, this whole
    #             relayout (plus the final transpose back) moves upstream / fuses away.
    x = jnp.transpose(x_nchw, (0, 2, 3, 1))                      # (B, H, W, C)
    Hp, Wp = 2 * Hp2, 2 * Wp2
    xp = jnp.pad(x, ((0, 0), (1, Hp - 1 - H), (1, Wp - 1 - W), (0, cin_p - C)))
    # parity split: xs[b*4 + rh*2 + rw, i, j, c] = xp[b, 2i+rh, 2j+rw, c]
    xs = xp.reshape(B, Hp2, 2, Wp2, 2, cin_p)
    xs = jnp.transpose(xs, (0, 2, 4, 1, 3, 5)).reshape(B * 4, Hp2, Wp2, cin_p)
    xs = xs.astype(jnp.bfloat16)

    # weights (Cout, Cin, 3, 3) -> (9, Cin_p, Cout_p), zero-padded, bf16
    w = jnp.transpose(weight_oihw, (2, 3, 1, 0)).reshape(9, C, Cout)
    w = jnp.pad(w, ((0, 0), (0, cin_p - C), (0, cout_p - Cout))).astype(jnp.bfloat16)
    b_row = jnp.pad(bias.astype(jnp.float32), (0, cout_p - Cout)).reshape(1, cout_p)

    flops = 2 * B * Ho_p * Wo_p * 9 * cin_p * cout_p
    bytes_accessed = (xs.size * 2 + w.size * 2 + b_row.size * 4
                      + B * Ho_p * Wo_p * cout_p * jnp.dtype(kernel_dtype).itemsize)

    call_kwargs = dict(B=B, NH=NH, TH=TH, Hp2=Hp2, Wp2=Wp2, Wo_p=Wo_p,
                       cin_p=cin_p, cout_p=cout_p, out_dtype=kernel_dtype,
                       flops=flops, bytes_accessed=bytes_accessed)
    try:
        out = _run_pallas(xs, w, b_row, single_buffer_weights=True, **call_kwargs)
    except Exception:
        # pl.Buffered(1) not supported by this jax/Mosaic build -> default buffering.
        out = _run_pallas(xs, w, b_row, single_buffer_weights=False, **call_kwargs)

    out = out[:, :Ho, :Wo, :Cout]                                # drop alignment padding
    out = jnp.transpose(out, (0, 3, 1, 2))                       # back to NCHW
    if out.dtype != jnp.dtype(out_dtype):
        out = out.astype(out_dtype)
    return out


def downsample_forward(x_nchw, weight_oihw, bias, t=None, *, force_pallas=False,
                       out_dtype=jnp.float32):
    """Forward pass of DownSample. `t` is accepted for signature parity and ignored."""
    del t
    C = x_nchw.shape[1]
    if force_pallas or C >= 128:
        return downsample_pallas(x_nchw, weight_oihw, bias, out_dtype=out_dtype)
    # tiny-channel fallback: native conv beats a <1%-occupied MXU kernel
    y = jax.lax.conv_general_dilated(
        x_nchw, weight_oihw, window_strides=(2, 2), padding=((1, 1), (1, 1)),
        dimension_numbers=("NCHW", "OIHW", "NCHW"))
    return (y + bias.reshape(1, -1, 1, 1)).astype(out_dtype)


def init_downsample_params(key, in_dim):
    """Deterministic Xavier-uniform weight (gain=1), zero bias — mirrors module init."""
    fan_in = in_dim * 3 * 3
    fan_out = in_dim * 3 * 3
    bound = math.sqrt(6.0 / (fan_in + fan_out))
    weight = jax.random.uniform(key, (in_dim, in_dim, 3, 3),
                                minval=-bound, maxval=bound, dtype=jnp.float32)
    bias = jnp.zeros((in_dim,), dtype=jnp.float32)
    return weight, bias


if __name__ == "__main__":
    key = jax.random.PRNGKey(0)
    k_x, k_w = jax.random.split(key)

    B, C, H, W = 2, 4, 16, 16
    x = jax.random.normal(k_x, (B, C, H, W), dtype=jnp.float32)
    t = jnp.zeros((B,), dtype=jnp.float32)   # unused; forward-signature parity
    weight, bias = init_downsample_params(k_w, C)

    # force the Pallas path so the kernel is exercised at this small demo size
    y = downsample_forward(x, weight, bias, t=t, force_pallas=True)
    y = jax.block_until_ready(y)

    # reference: exact conv over the same bf16-rounded operands the kernel's MXU consumes
    x_r = x.astype(jnp.bfloat16).astype(jnp.float32)
    w_r = weight.astype(jnp.bfloat16).astype(jnp.float32)
    y_ref = jax.lax.conv_general_dilated(
        x_r, w_r, window_strides=(2, 2), padding=((1, 1), (1, 1)),
        dimension_numbers=("NCHW", "OIHW", "NCHW"),
        precision=jax.lax.Precision.HIGHEST) + bias.reshape(1, -1, 1, 1)

    assert y.shape == (B, C, H // 2, W // 2), y.shape
    err = float(jnp.max(jnp.abs(y.astype(jnp.float32) - y_ref)))
    assert jnp.allclose(y.astype(jnp.float32), y_ref, atol=2e-2, rtol=2e-2), err

    print("KERNEL_OK")
</pallas_src>

<mosaic_0001>
module attributes {stable_mosaic.version = 11 : i64} {
  func.func @_downsample_conv_kernel(%arg0: i32, %arg1: i32, %arg2: memref<4x9x16x128xbf16, #tpu.memory_space<vmem>>, %arg3: memref<9x128x128xbf16, #tpu.memory_space<vmem>>, %arg4: memref<1x128xf32, #tpu.memory_space<vmem>>, %arg5: memref<1x8x8x128xf32, #tpu.memory_space<vmem>>) attributes {dimension_semantics = [#tpu.dimension_semantics<parallel>, #tpu.dimension_semantics<parallel>], iteration_bounds = array<i64: 2, 1>, scalar_prefetch = 0 : i64, scratch_operands = 0 : i64, tpu.core_type = #tpu.core_type<tc>, window_params = [{transform_indices = @transform_0, window_bounds = array<i64: 4, 9, 16, 128>}, {pipeline_mode = #tpu.pipeline_mode<synchronous>, transform_indices = @transform_1, window_bounds = array<i64: 9, 128, 128>}, {pipeline_mode = #tpu.pipeline_mode<synchronous>, transform_indices = @transform_2, window_bounds = array<i64: 1, 128>}, {transform_indices = @transform_3, window_bounds = array<i64: 1, 8, 8, 128>}]} {
    %c8_i32 = arith.constant 8 : i32
    %0 = arith.muli %arg1, %c8_i32 : i32
    %1 = tpu.assume_multiple %0, 8 : i32
    %cst = arith.constant 0.000000e+00 : f32
    %2 = vector.broadcast %cst : f32 to vector<64x128xf32>
    %c0_i32 = arith.constant 0 : i32
    %3 = arith.addi %1, %c0_i32 : i32
    %c0 = arith.constant 0 : index
    %4 = arith.index_cast %3 : i32 to index
    %c0_0 = arith.constant 0 : index
    %c0_1 = arith.constant 0 : index
    %5 = vector.load %arg2[%c0, %4, %c0_0, %c0_1] : memref<4x9x16x128xbf16, #tpu.memory_space<vmem>>, vector<1x8x8x128xbf16>
    %6 = vector.shape_cast %5 : vector<1x8x8x128xbf16> to vector<8x8x128xbf16>
    %7 = vector.shape_cast %6 : vector<8x8x128xbf16> to vector<64x128xbf16>
    %c0_2 = arith.constant 0 : index
    %c0_3 = arith.constant 0 : index
    %c0_4 = arith.constant 0 : index
    %8 = vector.load %arg3[%c0_2, %c0_3, %c0_4] : memref<9x128x128xbf16, #tpu.memory_space<vmem>>, vector<1x128x128xbf16>
    %9 = vector.shape_cast %8 : vector<1x128x128xbf16> to vector<128x128xbf16>
    %cst_5 = arith.constant dense<0.000000e+00> : vector<64x128xf32>
    %10 = tpu.matmul %7, %9, %cst_5 {dimension_numbers = #tpu.dot_dimension_numbers<[1], [0], [0], [1], [0, 0, 1, 1], [], []>} : vector<64x128xbf16>, vector<128x128xbf16>, vector<64x128xf32> -> vector<64x128xf32>
    %11 = arith.addf %2, %10 : vector<64x128xf32>
    %c0_i32_6 = arith.constant 0 : i32
    %12 = arith.addi %1, %c0_i32_6 : i32
    %c1 = arith.constant 1 : index
    %13 = arith.index_cast %12 : i32 to index
    %c0_7 = arith.constant 0 : index
    %c0_8 = arith.constant 0 : index
    %14 = vector.load %arg2[%c1, %13, %c0_7, %c0_8] : memref<4x9x16x128xbf16, #tpu.memory_space<vmem>>, vector<1x8x8x128xbf16>
    %15 = vector.shape_cast %14 : vector<1x8x8x128xbf16> to vector<8x8x128xbf16>
    %16 = vector.shape_cast %15 : vector<8x8x128xbf16> to vector<64x128xbf16>
    %c1_9 = arith.constant 1 : index
    %c0_10 = arith.constant 0 : index
    %c0_11 = arith.constant 0 : index
    %17 = vector.load %arg3[%c1_9, %c0_10, %c0_11] : memref<9x128x128xbf16, #tpu.memory_space<vmem>>, vector<1x128x128xbf16>
    %18 = vector.shape_cast %17 : vector<1x128x128xbf16> to vector<128x128xbf16>
    %cst_12 = arith.constant dense<0.000000e+00> : vector<64x128xf32>
    %19 = tpu.matmul %16, %18, %cst_12 {dimension_numbers = #tpu.dot_dimension_numbers<[1], [0], [0], [1], [0, 0, 1, 1], [], []>} : vector<64x128xbf16>, vector<128x128xbf16>, vector<64x128xf32> -> vector<64x128xf32>
    %20 = arith.addf %11, %19 : vector<64x128xf32>
    %c0_i32_13 = arith.constant 0 : i32
    %21 = arith.addi %1, %c0_i32_13 : i32
    %c0_14 = arith.constant 0 : index
    %22 = arith.index_cast %21 : i32 to index
    %c1_15 = arith.constant 1 : index
    %c0_16 = arith.constant 0 : index
    %23 = vector.load %arg2[%c0_14, %22, %c1_15, %c0_16] : memref<4x9x16x128xbf16, #tpu.memory_space<vmem>>, vector<1x8x8x128xbf16>
    %24 = vector.shape_cast %23 : vector<1x8x8x128xbf16> to vector<8x8x128xbf16>
    %25 = vector.shape_cast %24 : vector<8x8x128xbf16> to vector<64x128xbf16>
    %c2 = arith.constant 2 : index
    %c0_17 = arith.constant 0 : index
    %c0_18 = arith.constant 0 : index
    %26 = vector.load %arg3[%c2, %c0_17, %c0_18] : memref<9x128x128xbf16, #tpu.memory_space<vmem>>, vector<1x128x128xbf16>
    %27 = vector.shape_cast %26 : vector<1x128x128xbf16> to vector<128x128xbf16>
    %cst_19 = arith.constant dense<0.000000e+00> : vector<64x128xf32>
    %28 = tpu.matmul %25, %27, %cst_19 {dimension_numbers = #tpu.dot_dimension_numbers<[1], [0], [0], [1], [0, 0, 1, 1], [], []>} : vector<64x128xbf16>, vector<128x128xbf16>, vector<64x128xf32> -> vector<64x128xf32>
    %29 = arith.addf %20, %28 : vector<64x128xf32>
    %c0_i32_20 = arith.constant 0 : i32
    %30 = arith.addi %1, %c0_i32_20 : i32
    %c2_21 = arith.constant 2 : index
    %31 = arith.index_cast %30 : i32 to index
    %c0_22 = arith.constant 0 : index
    %c0_23 = arith.constant 0 : index
    %32 = vector.load %arg2[%c2_21, %31, %c0_22, %c0_23] : memref<4x9x16x128xbf16, #tpu.memory_space<vmem>>, vector<1x8x8x128xbf16>
    %33 = vector.shape_cast %32 : vector<1x8x8x128xbf16> to vector<8x8x128xbf16>
    %34 = vector.shape_cast %33 : vector<8x8x128xbf16> to vector<64x128xbf16>
    %c3 = arith.constant 3 : index
    %c0_24 = arith.constant 0 : index
    %c0_25 = arith.constant 0 : index
    %35 = vector.load %arg3[%c3, %c0_24, %c0_25] : memref<9x128x128xbf16, #tpu.memory_space<vmem>>, vector<1x128x128xbf16>
    %36 = vector.shape_cast %35 : vector<1x128x128xbf16> to vector<128x128xbf16>
    %cst_26 = arith.constant dense<0.000000e+00> : vector<64x128xf32>
    %37 = tpu.matmul %34, %36, %cst_26 {dimension_numbers = #tpu.dot_dimension_numbers<[1], [0], [0], [1], [0, 0, 1, 1], [], []>} : vector<64x128xbf16>, vector<128x128xbf16>, vector<64x128xf32> -> vector<64x128xf32>
    %38 = arith.addf %29, %37 : vector<64x128xf32>
    %c0_i32_27 = arith.constant 0 : i32
    %39 = arith.addi %1, %c0_i32_27 : i32
    %c3_28 = arith.constant 3 : index
    %40 = arith.index_cast %39 : i32 to index
    %c0_29 = arith.constant 0 : index
    %c0_30 = arith.constant 0 : index
    %41 = vector.load %arg2[%c3_28, %40, %c0_29, %c0_30] : memref<4x9x16x128xbf16, #tpu.memory_space<vmem>>, vector<1x8x8x128xbf16>
    %42 = vector.shape_cast %41 : vector<1x8x8x128xbf16> to vector<8x8x128xbf16>
    %43 = vector.shape_cast %42 : vector<8x8x128xbf16> to vector<64x128xbf16>
    %c4 = arith.constant 4 : index
    %c0_31 = arith.constant 0 : index
    %c0_32 = arith.constant 0 : index
    %44 = vector.load %arg3[%c4, %c0_31, %c0_32] : memref<9x128x128xbf16, #tpu.memory_space<vmem>>, vector<1x128x128xbf16>
    %45 = vector.shape_cast %44 : vector<1x128x128xbf16> to vector<128x128xbf16>
    %cst_33 = arith.constant dense<0.000000e+00> : vector<64x128xf32>
    %46 = tpu.matmul %43, %45, %cst_33 {dimension_numbers = #tpu.dot_dimension_numbers<[1], [0], [0], [1], [0, 0, 1, 1], [], []>} : vector<64x128xbf16>, vector<128x128xbf16>, vector<64x128xf32> -> vector<64x128xf32>
    %47 = arith.addf %38, %46 : vector<64x128xf32>
    %c0_i32_34 = arith.constant 0 : i32
    %48 = arith.addi %1, %c0_i32_34 : i32
    %c2_35 = arith.constant 2 : index
    %49 = arith.index_cast %48 : i32 to index
    %c1_36 = arith.constant 1 : index
    %c0_37 = arith.constant 0 : index
    %50 = vector.load %arg2[%c2_35, %49, %c1_36, %c0_37] : memref<4x9x16x128xbf16, #tpu.memory_space<vmem>>, vector<1x8x8x128xbf16>
    %51 = vector.shape_cast %50 : vector<1x8x8x128xbf16> to vector<8x8x128xbf16>
    %52 = vector.shape_cast %51 : vector<8x8x128xbf16> to vector<64x128xbf16>
    %c5 = arith.constant 5 : index
    %c0_38 = arith.constant 0 : index
    %c0_39 = arith.constant 0 : index
    %53 = vector.load %arg3[%c5, %c0_38, %c0_39] : memref<9x128x128xbf16, #tpu.memory_space<vmem>>, vector<1x128x128xbf16>
    %54 = vector.shape_cast %53 : vector<1x128x128xbf16> to vector<128x128xbf16>
    %cst_40 = arith.constant dense<0.000000e+00> : vector<64x128xf32>
    %55 = tpu.matmul %52, %54, %cst_40 {dimension_numbers = #tpu.dot_dimension_numbers<[1], [0], [0], [1], [0, 0, 1, 1], [], []>} : vector<64x128xbf16>, vector<128x128xbf16>, vector<64x128xf32> -> vector<64x128xf32>
    %56 = arith.addf %47, %55 : vector<64x128xf32>
    %c1_i32 = arith.constant 1 : i32
    %57 = arith.addi %1, %c1_i32 : i32
    %c0_41 = arith.constant 0 : index
    %58 = arith.index_cast %57 : i32 to index
    %c0_42 = arith.constant 0 : index
    %c0_43 = arith.constant 0 : index
    %59 = vector.load %arg2[%c0_41, %58, %c0_42, %c0_43] : memref<4x9x16x128xbf16, #tpu.memory_space<vmem>>, vector<1x8x8x128xbf16>
    %60 = vector.shape_cast %59 : vector<1x8x8x128xbf16> to vector<8x8x128xbf16>
    %61 = vector.shape_cast %60 : vector<8x8x128xbf16> to vector<64x128xbf16>
    %c6 = arith.constant 6 : index
    %c0_44 = arith.constant 0 : index
    %c0_45 = arith.constant 0 : index
    %62 = vector.load %arg3[%c6, %c0_44, %c0_45] : memref<9x128x128xbf16, #tpu.memory_space<vmem>>, vector<1x128x128xbf16>
    %63 = vector.shape_cast %62 : vector<1x128x128xbf16> to vector<128x128xbf16>
    %cst_46 = arith.constant dense<0.000000e+00> : vector<64x128xf32>
    %64 = tpu.matmul %61, %63, %cst_46 {dimension_numbers = #tpu.dot_dimension_numbers<[1], [0], [0], [1], [0, 0, 1, 1], [], []>} : vector<64x128xbf16>, vector<128x128xbf16>, vector<64x128xf32> -> vector<64x128xf32>
    %65 = arith.addf %56, %64 : vector<64x128xf32>
    %c1_i32_47 = arith.constant 1 : i32
    %66 = arith.addi %1, %c1_i32_47 : i32
    %c1_48 = arith.constant 1 : index
    %67 = arith.index_cast %66 : i32 to index
    %c0_49 = arith.constant 0 : index
    %c0_50 = arith.constant 0 : index
    %68 = vector.load %arg2[%c1_48, %67, %c0_49, %c0_50] : memref<4x9x16x128xbf16, #tpu.memory_space<vmem>>, vector<1x8x8x128xbf16>
    %69 = vector.shape_cast %68 : vector<1x8x8x128xbf16> to vector<8x8x128xbf16>
    %70 = vector.shape_cast %69 : vector<8x8x128xbf16> to vector<64x128xbf16>
    %c7 = arith.constant 7 : index
    %c0_51 = arith.constant 0 : index
    %c0_52 = arith.constant 0 : index
    %71 = vector.load %arg3[%c7, %c0_51, %c0_52] : memref<9x128x128xbf16, #tpu.memory_space<vmem>>, vector<1x128x128xbf16>
    %72 = vector.shape_cast %71 : vector<1x128x128xbf16> to vector<128x128xbf16>
    %cst_53 = arith.constant dense<0.000000e+00> : vector<64x128xf32>
    %73 = tpu.matmul %70, %72, %cst_53 {dimension_numbers = #tpu.dot_dimension_numbers<[1], [0], [0], [1], [0, 0, 1, 1], [], []>} : vector<64x128xbf16>, vector<128x128xbf16>, vector<64x128xf32> -> vector<64x128xf32>
    %74 = arith.addf %65, %73 : vector<64x128xf32>
    %c1_i32_54 = arith.constant 1 : i32
    %75 = arith.addi %1, %c1_i32_54 : i32
    %c0_55 = arith.constant 0 : index
    %76 = arith.index_cast %75 : i32 to index
    %c1_56 = arith.constant 1 : index
    %c0_57 = arith.constant 0 : index
    %77 = vector.load %arg2[%c0_55, %76, %c1_56, %c0_57] : memref<4x9x16x128xbf16, #tpu.memory_space<vmem>>, vector<1x8x8x128xbf16>
    %78 = vector.shape_cast %77 : vector<1x8x8x128xbf16> to vector<8x8x128xbf16>
    %79 = vector.shape_cast %78 : vector<8x8x128xbf16> to vector<64x128xbf16>
    %c8 = arith.constant 8 : index
    %c0_58 = arith.constant 0 : index
    %c0_59 = arith.constant 0 : index
    %80 = vector.load %arg3[%c8, %c0_58, %c0_59] : memref<9x128x128xbf16, #tpu.memory_space<vmem>>, vector<1x128x128xbf16>
    %81 = vector.shape_cast %80 : vector<1x128x128xbf16> to vector<128x128xbf16>
    %cst_60 = arith.constant dense<0.000000e+00> : vector<64x128xf32>
    %82 = tpu.matmul %79, %81, %cst_60 {dimension_numbers = #tpu.dot_dimension_numbers<[1], [0], [0], [1], [0, 0, 1, 1], [], []>} : vector<64x128xbf16>, vector<128x128xbf16>, vector<64x128xf32> -> vector<64x128xf32>
    %83 = arith.addf %74, %82 : vector<64x128xf32>
    %c0_61 = arith.constant 0 : index
    %c0_62 = arith.constant 0 : index
    %84 = vector.load %arg4[%c0_61, %c0_62] : memref<1x128xf32, #tpu.memory_space<vmem>>, vector<1x128xf32>
    %85 = vector.broadcast %84 : vector<1x128xf32> to vector<64x128xf32>
    %86 = arith.addf %83, %85 : vector<64x128xf32>
    %87 = vector.shape_cast %86 : vector<64x128xf32> to vector<8x8x128xf32>
    %c0_63 = arith.constant 0 : index
    %c0_64 = arith.constant 0 : index
    %c0_65 = arith.constant 0 : index
    %c0_66 = arith.constant 0 : index
    %88 = vector.load %arg5[%c0_63, %c0_64, %c0_65, %c0_66] : memref<1x8x8x128xf32, #tpu.memory_space<vmem>>, vector<1x8x8x128xf32>
    %89 = vector.shape_cast %88 : vector<1x8x8x128xf32> to vector<8x8x128xf32>
    %90 = vector.shape_cast %87 : vector<8x8x128xf32> to vector<1x8x8x128xf32>
    tpu.vector_store %arg5[%c0_63, %c0_64, %c0_65, %c0_66], %90 {strides = array<i32>} : memref<1x8x8x128xf32, #tpu.memory_space<vmem>>, vector<1x8x8x128xf32>,
    return
  }
  func.func @transform_0(%arg0: i32, %arg1: i32) -> (i32, i32, i32, i32) {
    %c0_i32 = arith.constant 0 : i32
    %c0_i32_0 = arith.constant 0 : i32
    %c0_i32_1 = arith.constant 0 : i32
    %c0_i32_2 = arith.constant 0 : i32
    return %arg0, %c0_i32, %c0_i32_0, %c0_i32_1 : i32, i32, i32, i32
  }
  func.func @transform_1(%arg0: i32, %arg1: i32) -> (i32, i32, i32) {
    %c0_i32 = arith.constant 0 : i32
    %c0_i32_0 = arith.constant 0 : i32
    %c0_i32_1 = arith.constant 0 : i32
    %c0_i32_2 = arith.constant 0 : i32
    return %c0_i32, %c0_i32_0, %c0_i32_1 : i32, i32, i32
  }
  func.func @transform_2(%arg0: i32, %arg1: i32) -> (i32, i32) {
    %c0_i32 = arith.constant 0 : i32
    %c0_i32_0 = arith.constant 0 : i32
    %c0_i32_1 = arith.constant 0 : i32
    return %c0_i32, %c0_i32_0 : i32, i32
  }
  func.func @transform_3(%arg0: i32, %arg1: i32) -> (i32, i32, i32, i32) {
    %c0_i32 = arith.constant 0 : i32
    %c0_i32_0 = arith.constant 0 : i32
    %c0_i32_1 = arith.constant 0 : i32
    return %arg0, %arg1, %c0_i32, %c0_i32_0 : i32, i32, i32, i32
  }
}

module attributes {stable_mosaic.version = 11 : i64} {
  func.func @_downsample_conv_kernel(%arg0: i32, %arg1: i32, %arg2: memref<4x9x16x128xbf16, #tpu.memory_space<vmem>>, %arg3: memref<9x128x128xbf16, #tpu.memory_space<vmem>>, %arg4: memref<1x128xf32, #tpu.memory_space<vmem>>, %arg5: memref<1x8x8x128xf32, #tpu.memory_space<vmem>>) attributes {dimension_semantics = [#tpu.dimension_semantics<parallel>, #tpu.dimension_semantics<parallel>], iteration_bounds = array<i64: 2, 1>, scalar_prefetch = 0 : i64, scratch_operands = 0 : i64, tpu.core_type = #tpu.core_type<tc>, window_params = [{transform_indices = @transform_0, window_bounds = array<i64: 4, 9, 16, 128>}, {pipeline_mode = #tpu.pipeline_mode<synchronous>, transform_indices = @transform_1, window_bounds = array<i64: 9, 128, 128>}, {pipeline_mode = #tpu.pipeline_mode<synchronous>, transform_indices = @transform_2, window_bounds = array<i64: 1, 128>}, {transform_indices = @transform_3, window_bounds = array<i64: 1, 8, 8, 128>}]} {
    %c8_i32 = arith.constant 8 : i32
    %0 = arith.muli %arg1, %c8_i32 : i32
    %1 = tpu.assume_multiple %0, 8 : i32
    %cst = arith.constant 0.000000e+00 : f32
    %2 = vector.broadcast %cst : f32 to vector<64x128xf32>
    %c0_i32 = arith.constant 0 : i32
    %3 = arith.addi %1, %c0_i32 : i32
    %c0 = arith.constant 0 : index
    %4 = arith.index_cast %3 : i32 to index
    %c0_0 = arith.constant 0 : index
    %c0_1 = arith.constant 0 : index
    %5 = vector.load %arg2[%c0, %4, %c0_0, %c0_1] : memref<4x9x16x128xbf16, #tpu.memory_space<vmem>>, vector<1x8x8x128xbf16>
    %6 = vector.shape_cast %5 : vector<1x8x8x128xbf16> to vector<8x8x128xbf16>
    %7 = vector.shape_cast %6 : vector<8x8x128xbf16> to vector<64x128xbf16>
    %c0_2 = arith.constant 0 : index
    %c0_3 = arith.constant 0 : index
    %c0_4 = arith.constant 0 : index
    %8 = vector.load %arg3[%c0_2, %c0_3, %c0_4] : memref<9x128x128xbf16, #tpu.memory_space<vmem>>, vector<1x128x128xbf16>
    %9 = vector.shape_cast %8 : vector<1x128x128xbf16> to vector<128x128xbf16>
    %cst_5 = arith.constant dense<0.000000e+00> : vector<64x128xf32>
    %10 = tpu.matmul %7, %9, %cst_5 {dimension_numbers = #tpu.dot_dimension_numbers<[1], [0], [0], [1], [0, 0, 1, 1], [], []>} : vector<64x128xbf16>, vector<128x128xbf16>, vector<64x128xf32> -> vector<64x128xf32>
    %11 = arith.addf %2, %10 : vector<64x128xf32>
    %c0_i32_6 = arith.constant 0 : i32
    %12 = arith.addi %1, %c0_i32_6 : i32
    %c1 = arith.constant 1 : index
    %13 = arith.index_cast %12 : i32 to index
    %c0_7 = arith.constant 0 : index
    %c0_8 = arith.constant 0 : index
    %14 = vector.load %arg2[%c1, %13, %c0_7, %c0_8] : memref<4x9x16x128xbf16, #tpu.memory_space<vmem>>, vector<1x8x8x128xbf16>
    %15 = vector.shape_cast %14 : vector<1x8x8x128xbf16> to vector<8x8x128xbf16>
    %16 = vector.shape_cast %15 : vector<8x8x128xbf16> to vector<64x128xbf16>
    %c1_9 = arith.constant 1 : index
    %c0_10 = arith.constant 0 : index
    %c0_11 = arith.constant 0 : index
    %17 = vector.load %arg3[%c1_9, %c0_10, %c0_11] : memref<9x128x128xbf16, #tpu.memory_space<vmem>>, vector<1x128x128xbf16>
    %18 = vector.shape_cast %17 : vector<1x128x128xbf16> to vector<128x128xbf16>
    %cst_12 = arith.constant dense<0.000000e+00> : vector<64x128xf32>
    %19 = tpu.matmul %16, %18, %cst_12 {dimension_numbers = #tpu.dot_dimension_numbers<[1], [0], [0], [1], [0, 0, 1, 1], [], []>} : vector<64x128xbf16>, vector<128x128xbf16>, vector<64x128xf32> -> vector<64x128xf32>
    %20 = arith.addf %11, %19 : vector<64x128xf32>
    %c0_i32_13 = arith.constant 0 : i32
    %21 = arith.addi %1, %c0_i32_13 : i32
    %c0_14 = arith.constant 0 : index
    %22 = arith.index_cast %21 : i32 to index
    %c1_15 = arith.constant 1 : index
    %c0_16 = arith.constant 0 : index
    %23 = vector.load %arg2[%c0_14, %22, %c1_15, %c0_16] : memref<4x9x16x128xbf16, #tpu.memory_space<vmem>>, vector<1x8x8x128xbf16>
    %24 = vector.shape_cast %23 : vector<1x8x8x128xbf16> to vector<8x8x128xbf16>
    %25 = vector.shape_cast %24 : vector<8x8x128xbf16> to vector<64x128xbf16>
    %c2 = arith.constant 2 : index
    %c0_17 = arith.constant 0 : index
    %c0_18 = arith.constant 0 : index
    %26 = vector.load %arg3[%c2, %c0_17, %c0_18] : memref<9x128x128xbf16, #tpu.memory_space<vmem>>, vector<1x128x128xbf16>
    %27 = vector.shape_cast %26 : vector<1x128x128xbf16> to vector<128x128xbf16>
    %cst_19 = arith.constant dense<0.000000e+00> : vector<64x128xf32>
    %28 = tpu.matmul %25, %27, %cst_19 {dimension_numbers = #tpu.dot_dimension_numbers<[1], [0], [0], [1], [0, 0, 1, 1], [], []>} : vector<64x128xbf16>, vector<128x128xbf16>, vector<64x128xf32> -> vector<64x128xf32>
    %29 = arith.addf %20, %28 : vector<64x128xf32>
    %c0_i32_20 = arith.constant 0 : i32
    %30 = arith.addi %1, %c0_i32_20 : i32
    %c2_21 = arith.constant 2 : index
    %31 = arith.index_cast %30 : i32 to index
    %c0_22 = arith.constant 0 : index
    %c0_23 = arith.constant 0 : index
    %32 = vector.load %arg2[%c2_21, %31, %c0_22, %c0_23] : memref<4x9x16x128xbf16, #tpu.memory_space<vmem>>, vector<1x8x8x128xbf16>
    %33 = vector.shape_cast %32 : vector<1x8x8x128xbf16> to vector<8x8x128xbf16>
    %34 = vector.shape_cast %33 : vector<8x8x128xbf16> to vector<64x128xbf16>
    %c3 = arith.constant 3 : index
    %c0_24 = arith.constant 0 : index
    %c0_25 = arith.constant 0 : index
    %35 = vector.load %arg3[%c3, %c0_24, %c0_25] : memref<9x128x128xbf16, #tpu.memory_space<vmem>>, vector<1x128x128xbf16>
    %36 = vector.shape_cast %35 : vector<1x128x128xbf16> to vector<128x128xbf16>
    %cst_26 = arith.constant dense<0.000000e+00> : vector<64x128xf32>
    %37 = tpu.matmul %34, %36, %cst_26 {dimension_numbers = #tpu.dot_dimension_numbers<[1], [0], [0], [1], [0, 0, 1, 1], [], []>} : vector<64x128xbf16>, vector<128x128xbf16>, vector<64x128xf32> -> vector<64x128xf32>
    %38 = arith.addf %29, %37 : vector<64x128xf32>
    %c0_i32_27 = arith.constant 0 : i32
    %39 = arith.addi %1, %c0_i32_27 : i32
    %c3_28 = arith.constant 3 : index
    %40 = arith.index_cast %39 : i32 to index
    %c0_29 = arith.constant 0 : index
    %c0_30 = arith.constant 0 : index
    %41 = vector.load %arg2[%c3_28, %40, %c0_29, %c0_30] : memref<4x9x16x128xbf16, #tpu.memory_space<vmem>>, vector<1x8x8x128xbf16>
    %42 = vector.shape_cast %41 : vector<1x8x8x128xbf16> to vector<8x8x128xbf16>
    %43 = vector.shape_cast %42 : vector<8x8x128xbf16> to vector<64x128xbf16>
    %c4 = arith.constant 4 : index
    %c0_31 = arith.constant 0 : index
    %c0_32 = arith.constant 0 : index
    %44 = vector.load %arg3[%c4, %c0_31, %c0_32] : memref<9x128x128xbf16, #tpu.memory_space<vmem>>, vector<1x128x128xbf16>
    %45 = vector.shape_cast %44 : vector<1x128x128xbf16> to vector<128x128xbf16>
    %cst_33 = arith.constant dense<0.000000e+00> : vector<64x128xf32>
    %46 = tpu.matmul %43, %45, %cst_33 {dimension_numbers = #tpu.dot_dimension_numbers<[1], [0], [0], [1], [0, 0, 1, 1], [], []>} : vector<64x128xbf16>, vector<128x128xbf16>, vector<64x128xf32> -> vector<64x128xf32>
    %47 = arith.addf %38, %46 : vector<64x128xf32>
    %c0_i32_34 = arith.constant 0 : i32
    %48 = arith.addi %1, %c0_i32_34 : i32
    %c2_35 = arith.constant 2 : index
    %49 = arith.index_cast %48 : i32 to index
    %c1_36 = arith.constant 1 : index
    %c0_37 = arith.constant 0 : index
    %50 = vector.load %arg2[%c2_35, %49, %c1_36, %c0_37] : memref<4x9x16x128xbf16, #tpu.memory_space<vmem>>, vector<1x8x8x128xbf16>
    %51 = vector.shape_cast %50 : vector<1x8x8x128xbf16> to vector<8x8x128xbf16>
    %52 = vector.shape_cast %51 : vector<8x8x128xbf16> to vector<64x128xbf16>
    %c5 = arith.constant 5 : index
    %c0_38 = arith.constant 0 : index
    %c0_39 = arith.constant 0 : index
    %53 = vector.load %arg3[%c5, %c0_38, %c0_39] : memref<9x128x128xbf16, #tpu.memory_space<vmem>>, vector<1x128x128xbf16>
    %54 = vector.shape_cast %53 : vector<1x128x128xbf16> to vector<128x128xbf16>
    %cst_40 = arith.constant dense<0.000000e+00> : vector<64x128xf32>
    %55 = tpu.matmul %52, %54, %cst_40 {dimension_numbers = #tpu.dot_dimension_numbers<[1], [0], [0], [1], [0, 0, 1, 1], [], []>} : vector<64x128xbf16>, vector<128x128xbf16>, vector<64x128xf32> -> vector<64x128xf32>
    %56 = arith.addf %47, %55 : vector<64x128xf32>
    %c1_i32 = arith.constant 1 : i32
    %57 = arith.addi %1, %c1_i32 : i32
    %c0_41 = arith.constant 0 : index
    %58 = arith.index_cast %57 : i32 to index
    %c0_42 = arith.constant 0 : index
    %c0_43 = arith.constant 0 : index
    %59 = vector.load %arg2[%c0_41, %58, %c0_42, %c0_43] : memref<4x9x16x128xbf16, #tpu.memory_space<vmem>>, vector<1x8x8x128xbf16>
    %60 = vector.shape_cast %59 : vector<1x8x8x128xbf16> to vector<8x8x128xbf16>
    %61 = vector.shape_cast %60 : vector<8x8x128xbf16> to vector<64x128xbf16>
    %c6 = arith.constant 6 : index
    %c0_44 = arith.constant 0 : index
    %c0_45 = arith.constant 0 : index
    %62 = vector.load %arg3[%c6, %c0_44, %c0_45] : memref<9x128x128xbf16, #tpu.memory_space<vmem>>, vector<1x128x128xbf16>
    %63 = vector.shape_cast %62 : vector<1x128x128xbf16> to vector<128x128xbf16>
    %cst_46 = arith.constant dense<0.000000e+00> : vector<64x128xf32>
    %64 = tpu.matmul %61, %63, %cst_46 {dimension_numbers = #tpu.dot_dimension_numbers<[1], [0], [0], [1], [0, 0, 1, 1], [], []>} : vector<64x128xbf16>, vector<128x128xbf16>, vector<64x128xf32> -> vector<64x128xf32>
    %65 = arith.addf %56, %64 : vector<64x128xf32>
    %c1_i32_47 = arith.constant 1 : i32
    %66 = arith.addi %1, %c1_i32_47 : i32
    %c1_48 = arith.constant 1 : index
    %67 = arith.index_cast %66 : i32 to index
    %c0_49 = arith.constant 0 : index
    %c0_50 = arith.constant 0 : index
    %68 = vector.load %arg2[%c1_48, %67, %c0_49, %c0_50] : memref<4x9x16x128xbf16, #tpu.memory_space<vmem>>, vector<1x8x8x128xbf16>
    %69 = vector.shape_cast %68 : vector<1x8x8x128xbf16> to vector<8x8x128xbf16>
    %70 = vector.shape_cast %69 : vector<8x8x128xbf16> to vector<64x128xbf16>
    %c7 = arith.constant 7 : index
    %c0_51 = arith.constant 0 : index
    %c0_52 = arith.constant 0 : index
    %71 = vector.load %arg3[%c7, %c0_51, %c0_52] : memref<9x128x128xbf16, #tpu.memory_space<vmem>>, vector<1x128x128xbf16>
    %72 = vector.shape_cast %71 : vector<1x128x128xbf16> to vector<128x128xbf16>
    %cst_53 = arith.constant dense<0.000000e+00> : vector<64x128xf32>
    %73 = tpu.matmul %70, %72, %cst_53 {dimension_numbers = #tpu.dot_dimension_numbers<[1], [0], [0], [1], [0, 0, 1, 1], [], []>} : vector<64x128xbf16>, vector<128x128xbf16>, vector<64x128xf32> -> vector<64x128xf32>
    %74 = arith.addf %65, %73 : vector<64x128xf32>
    %c1_i32_54 = arith.constant 1 : i32
    %75 = arith.addi %1, %c1_i32_54 : i32
    %c0_55 = arith.constant 0 : index
    %76 = arith.index_cast %75 : i32 to index
    %c1_56 = arith.constant 1 : index
    %c0_57 = arith.constant 0 : index
    %77 = vector.load %arg2[%c0_55, %76, %c1_56, %c0_57] : memref<4x9x16x128xbf16, #tpu.memory_space<vmem>>, vector<1x8x8x128xbf16>
    %78 = vector.shape_cast %77 : vector<1x8x8x128xbf16> to vector<8x8x128xbf16>
    %79 = vector.shape_cast %78 : vector<8x8x128xbf16> to vector<64x128xbf16>
    %c8 = arith.constant 8 : index
    %c0_58 = arith.constant 0 : index
    %c0_59 = arith.constant 0 : index
    %80 = vector.load %arg3[%c8, %c0_58, %c0_59] : memref<9x128x128xbf16, #tpu.memory_space<vmem>>, vector<1x128x128xbf16>
    %81 = vector.shape_cast %80 : vector<1x128x128xbf16> to vector<128x128xbf16>
    %cst_60 = arith.constant dense<0.000000e+00> : vector<64x128xf32>
    %82 = tpu.matmul %79, %81, %cst_60 {dimension_numbers = #tpu.dot_dimension_numbers<[1], [0], [0], [1], [0, 0, 1, 1], [], []>} : vector<64x128xbf16>, vector<128x128xbf16>, vector<64x128xf32> -> vector<64x128xf32>
    %83 = arith.addf %74, %82 : vector<64x128xf32>
    %c0_61 = arith.constant 0 : index
    %c0_62 = arith.constant 0 : index
    %84 = vector.load %arg4[%c0_61, %c0_62] : memref<1x128xf32, #tpu.memory_space<vmem>>, vector<1x128xf32>
    %85 = vector.broadcast %84 : vector<1x128xf32> to vector<64x128xf32>
    %86 = arith.addf %83, %85 : vector<64x128xf32>
    %87 = vector.shape_cast %86 : vector<64x128xf32> to vector<8x8x128xf32>
    %c0_63 = arith.constant 0 : index
    %c0_64 = arith.constant 0 : index
    %c0_65 = arith.constant 0 : index
    %c0_66 = arith.constant 0 : index
    %88 = vector.load %arg5[%c0_63, %c0_64, %c0_65, %c0_66] : memref<1x8x8x128xf32, #tpu.memory_space<vmem>>, vector<1x8x8x128xf32>
    %89 = vector.shape_cast %88 : vector<1x8x8x128xf32> to vector<8x8x128xf32>
    %90 = vector.shape_cast %87 : vector<8x8x128xf32> to vector<1x8x8x128xf32>
    tpu.vector_store %arg5[%c0_63, %c0_64, %c0_65, %c0_66], %90 {strides = array<i32>} : memref<1x8x8x128xf32, #tpu.memory_space<vmem>>, vector<1x8x8x128xf32>,
    return
  }
  func.func @transform_0(%arg0: i32, %arg1: i32) -> (i32, i32, i32, i32) {
    %c0_i32 = arith.constant 0 : i32
    %c0_i32_0 = arith.constant 0 : i32
    %c0_i32_1 = arith.constant 0 : i32
    %c0_i32_2 = arith.constant 0 : i32
    return %arg0, %c0_i32, %c0_i32_0, %c0_i32_1 : i32, i32, i32, i32
  }
  func.func @transform_1(%arg0: i32, %arg1: i32) -> (i32, i32, i32) {
    %c0_i32 = arith.constant 0 : i32
    %c0_i32_0 = arith.constant 0 : i32
    %c0_i32_1 = arith.constant 0 : i32
    %c0_i32_2 = arith.constant 0 : i32
    return %c0_i32, %c0_i32_0, %c0_i32_1 : i32, i32, i32
  }
  func.func @transform_2(%arg0: i32, %arg1: i32) -> (i32, i32) {
    %c0_i32 = arith.constant 0 : i32
    %c0_i32_0 = arith.constant 0 : i32
    %c0_i32_1 = arith.constant 0 : i32
    return %c0_i32, %c0_i32_0 : i32, i32
  }
  func.func @transform_3(%arg0: i32, %arg1: i32) -> (i32, i32, i32, i32) {
    %c0_i32 = arith.constant 0 : i32
    %c0_i32_0 = arith.constant 0 : i32
    %c0_i32_1 = arith.constant 0 : i32
    return %arg0, %arg1, %c0_i32, %c0_i32_0 : i32, i32, i32, i32
  }
}

</mosaic_0001>

<llo_original>
// kernel: tpu_custom_call.1
$region0: #{tpu_custom_call.1}
  #allocation0 [shape = 'u32[]', space=smem, size = 0x4, offset = 0x4, fixed_abs, tag = 'smem constant byte address 0x4 - core index']
  #allocation1 [shape = 'u32[144,128]{1,0:T(1,128)}', space=vmem, size = 0x12000, scoped, tag = 'internal scratch']
  %s0 = inlined_call_operand.hbm [shape: bf16[8,9,16,128], index: 0, kind: input, shape index: {}]
  %s1 = inlined_call_operand.hbm [shape: bf16[9,128,128], index: 1, kind: input, shape index: {}]
  %s2 = inlined_call_operand.vmem [shape: f32[1,128], index: 2, kind: input, shape index: {}]
  %s3 = inlined_call_operand.hbm [shape: f32[2,8,8,128], index: 3, kind: output, shape index: {}]
  %s4 = sld [smem:[#allocation0]]
  $region53: #{tpu_custom_call.1} parent=0
    _
  %s6 = ssub.s32 1, %s4
  %s7 = scalar_select 0, %s6, %s4
  $region1: #{tpu_custom_call.1} parent=0
    #allocation2 [shape = 'u8[294912]{0}', space=vmem, size = 0x48000, scoped, tag = 'input window, operand 0']
    #allocation3 [shape = 's32[2]{0}', space=sflag, size = 0x8, scoped, tag = 'scoped memory for tpu_custom_call.1']
    #allocation4 [shape = 's32[2]{0}', space=sflag, size = 0x8, scoped, tag = 'scoped memory for tpu_custom_call.1']
    #allocation5 [shape = 'u8[294912]{0}', space=vmem, size = 0x48000, scoped, tag = 'input window, operand 1, single buffered']
    #allocation6 [shape = 's32[1]{0}', space=sflag, size = 0x4, scoped, tag = 'scoped memory for tpu_custom_call.1']
    #allocation7 [shape = 'u8[65536]{0}', space=vmem, size = 0x10000, scoped, tag = 'output window, operand 0']
    %8 = vsyncpa [#allocation3], 0
    %s9 = scalar_lea.sflag [#allocation3], 1
    %10 = vsyncpa %s9, 0
    %11 = vsyncpa [#allocation6], 0
    %12 = vsyncpa [#allocation4], 0
    %s13 = scalar_lea.sflag [#allocation4], 1
    %14 = vsyncpa %s13, 0
    loop: start=0, step=1, limit=4
    $region2: #{tpu_custom_call.1} parent=1 // loop_pre_header
      _
    $region3: #{tpu_custom_call.1} parent=1 // loop_header
      %s16 = sphi 0, %s20
      %p17 = scmp.ge.s32.totalorder %s16, 4
      %s23 = sphi 0, %s35
      %s24 = sphi 0, %s31
      %s25 = sphi 0, %s23
      %s26 = sphi 0, %s24
      %s27 = sphi 0, %s25
      %s28 = sphi 0, %s26
      %s38 = sphi 0, %s40
      %s41 = sphi 0, %s38
      %s42 = sphi 0, %s41
      %s58 = sphi 0, %s42
      %s62 = sphi 0, %s62
      %s64 = sphi 0, %s62
      %s65 = sphi 0, %s64
      %s79 = sphi 0, %s65
      %s83 = sphi 0, %s83
      %s85 = sphi 0, %s83
      %s86 = sphi 0, %s85
      %s100 = sphi 0, %s86
      %s108 = sphi 0, %s110
      %s111 = sphi 0, %s108
      %s112 = sphi 0, %s111
      %s128 = sphi 0, %s112
    $region4: #{tpu_custom_call.1} parent=1 // loop_header_branch
      %19 = sbr.rel (%p17) target = $region8
    $region5: #{tpu_custom_call.1} parent=1 // loop_body
      %s21 = ssub.s32 %s16, 1
      %s22 = ssub.s32 %s16, 2
      %s29 = sadd.s32 1, %s24
      %p30 = scmp.ge.s32.totalorder %s29, 1
      %s31 = scalar_select %p30, 0, %s29
      %s32 = sadd.s32 1, %s23
      %s33 = scalar_select %p30, %s32, %s23
      %p34 = scmp.ge.s32.totalorder %s33, 2
      %s35 = scalar_select %p34, 0, %s33
      %s36 = ssub.s32 %s23, %s35
      %p37 = scmp.eq.s32.totalorder %s36, 0
      %s39 = sadd.s32 %s38, 1
      %s40 = scalar_select %p37, %s38, %s39
      %p43 = pneg %p37
      %p44 = scmp.eq.s32.totalorder %s16, 1
      %p45 = por %p43, %p44
      %p46 = scmp.ne.s32.totalorder %s38, %s41
      %p47 = scmp.eq.s32.totalorder %s16, 0
      %p48 = por %p46, %p47
      %p49 = scmp.ne.s32.totalorder %s38, %s41
      %p50 = scmp.eq.s32.totalorder %s21, 1
      %p51 = por %p49, %p50
      %p52 = scmp.ne.s32.totalorder %s41, %s42
      %p53 = scmp.eq.s32.totalorder %s21, 0
      %p54 = por %p52, %p53
      %p55 = scmp.ne.s32.totalorder %s41, %s42
      %p56 = scmp.eq.s32.totalorder %s22, 1
      %p57 = por %p55, %p56
      %p59 = scmp.ne.s32.totalorder %s42, %s58
      %p60 = scmp.eq.s32.totalorder %s22, 0
      %p61 = por %p59, %p60
      %s63 = sadd.s32 %s62, 1
      %p66 = scmp.eq.s32.totalorder %s16, 1
      %p67 = scmp.ne.s32.totalorder %s62, %s64
      %p68 = scmp.eq.s32.totalorder %s16, 0
      %p69 = por %p67, %p68
      %p70 = scmp.ne.s32.totalorder %s62, %s64
      %p71 = scmp.eq.s32.totalorder %s21, 1
      %p72 = por %p70, %p71
      %p73 = scmp.ne.s32.totalorder %s64, %s65
      %p74 = scmp.eq.s32.totalorder %s21, 0
      %p75 = por %p73, %p74
      %p76 = scmp.ne.s32.totalorder %s64, %s65
      %p77 = scmp.eq.s32.totalorder %s22, 1
      %p78 = por %p76, %p77
      %p80 = scmp.ne.s32.totalorder %s65, %s79
      %p81 = scmp.eq.s32.totalorder %s22, 0
      %p82 = por %p80, %p81
      %s84 = sadd.s32 %s83, 1
      %p87 = scmp.eq.s32.totalorder %s16, 1
      %p88 = scmp.ne.s32.totalorder %s83, %s85
      %p89 = scmp.eq.s32.totalorder %s16, 0
      %p90 = por %p88, %p89
      %p91 = scmp.ne.s32.totalorder %s83, %s85
      %p92 = scmp.eq.s32.totalorder %s21, 1
      %p93 = por %p91, %p92
      %p94 = scmp.ne.s32.totalorder %s85, %s86
      %p95 = scmp.eq.s32.totalorder %s21, 0
      %p96 = por %p94, %p95
      %p97 = scmp.ne.s32.totalorder %s85, %s86
      %p98 = scmp.eq.s32.totalorder %s22, 1
      %p99 = por %p97, %p98
      %p101 = scmp.ne.s32.totalorder %s86, %s100
      %p102 = scmp.eq.s32.totalorder %s22, 0
      %p103 = por %p101, %p102
      %s104 = ssub.s32 %s23, %s35
      %s105 = ssub.s32 %s24, %s31
      %s106 = sor.u32 %s104, %s105
      %p107 = scmp.eq.s32.totalorder %s106, 0
      %s109 = sadd.s32 %s108, 1
      %s110 = scalar_select %p107, %s108, %s109
      %p113 = pneg %p107
      %p114 = scmp.eq.s32.totalorder %s16, 1
      %p115 = por %p113, %p114
      %p116 = scmp.ne.s32.totalorder %s108, %s111
      %p117 = scmp.eq.s32.totalorder %s16, 0
      %p118 = por %p116, %p117
      %p119 = scmp.ne.s32.totalorder %s108, %s111
      %p120 = scmp.eq.s32.totalorder %s21, 1
      %p121 = por %p119, %p120
      %p122 = scmp.ne.s32.totalorder %s111, %s112
      %p123 = scmp.eq.s32.totalorder %s21, 0
      %p124 = por %p122, %p123
      %p125 = scmp.ne.s32.totalorder %s111, %s112
      %p126 = scmp.eq.s32.totalorder %s22, 1
      %p127 = por %p125, %p126
      %p129 = scmp.ne.s32.totalorder %s112, %s128
      %p130 = scmp.eq.s32.totalorder %s22, 0
      %p131 = por %p129, %p130
      %p132 = scmp.le.s32.totalorder 1, %s16
      %p133 = scmp.lt.s32.totalorder %s16, 3
      %p134 = pnand %p132, %p133
      %p135 = pneg %p134
      // Predicated region
      $region9: #{tpu_custom_call.1} parent=5 // pred_check
        _
      $region10: #{tpu_custom_call.1} parent=5 // pred_check_branch
        %137 = sbr.rel (%p134) target = $region12
      $region11: #{tpu_custom_call.1} parent=5 // pred_region
        %s138 = ssub.s32 %s16, 1
        // Predicated region
        $region13: #{tpu_custom_call.1} parent=11 // pred_check
          %p139 = pneg %p75
        $region14: #{tpu_custom_call.1} parent=11 // pred_check_branch
          %141 = sbr.rel (%p139) target = $region16
        $region15: #{tpu_custom_call.1} parent=11 // pred_region
          %s143 = ssub.s32 9216, 9216
          %144 = vsyncadd [#allocation6], %s143
          %s145 = sshll.u32 [#allocation5], 4
          %s146 = int_to_ptr.vmem [resolvable:$true] %s145
          %151 = dma.hbm_to_vmem [thread:$0]  %s1, 9216, %s146, [#allocation6], 64, 64, 4
        $region16: #{tpu_custom_call.1} parent=11 // pred_fallthru
          _
        // Predicated region
        $region17: #{tpu_custom_call.1} parent=11 // pred_check
          %p152 = pneg %p96
        $region18: #{tpu_custom_call.1} parent=11 // pred_check_branch
          %154 = sbr.rel (%p152) target = $region20
        $region19: #{tpu_custom_call.1} parent=11 // pred_region
          _
        $region20: #{tpu_custom_call.1} parent=11 // pred_fallthru
          _
      $region12: #{tpu_custom_call.1} parent=5 // pred_fallthru
        _
      %p155 = scmp.lt.s32.totalorder %s16, 2
      // Predicated region
      $region21: #{tpu_custom_call.1} parent=5 // pred_check
        %p156 = pneg %p155
      $region22: #{tpu_custom_call.1} parent=5 // pred_check_branch
        %158 = sbr.rel (%p156) target = $region24
      $region23: #{tpu_custom_call.1} parent=5 // pred_region
        // Predicated region
        $region25: #{tpu_custom_call.1} parent=23 // pred_check
          %p159 = pneg %p48
        $region26: #{tpu_custom_call.1} parent=23 // pred_check_branch
          %161 = sbr.rel (%p159) target = $region28
        $region27: #{tpu_custom_call.1} parent=23 // pred_region
          %s162 = sand.u32 %s38, 1
          %s163 = scalar_lea.sflag [#allocation3], %s162
          %s164 = sand.u32 %s38, 1
          %s165 = smul.addr %s164, 288
          %s166 = scalar_lea.vmem [#allocation2], %s165
          %s167 = smul.u32 4, %s23
          %s169 = ssub.s32 4608, 4608
          %170 = vsyncadd %s163, %s169
          %s171 = smul.addr %s167, 18
          %s172 = smul.addr %s171, 64
          %s173 = scalar_lea.hbm %s0, %s172
          %s174 = sshll.u32 %s166, 4
          %s175 = int_to_ptr.vmem [resolvable:$true] %s174
          %180 = dma.hbm_to_vmem [thread:$0]  %s173, 4608, %s175, %s163, 64, 64, 4
        $region28: #{tpu_custom_call.1} parent=23 // pred_fallthru
          _
      $region24: #{tpu_custom_call.1} parent=5 // pred_fallthru
        _
      %p181 = scmp.le.s32.totalorder 1, %s16
      %p182 = scmp.lt.s32.totalorder %s16, 3
      %p183 = pnand %p181, %p182
      %p184 = pneg %p183
      // Predicated region
      $region29: #{tpu_custom_call.1} parent=5 // pred_check
        _
      $region30: #{tpu_custom_call.1} parent=5 // pred_check_branch
        %186 = sbr.rel (%p183) target = $region32
      $region31: #{tpu_custom_call.1} parent=5 // pred_region
        %s187 = ssub.s32 %s16, 1
        %s188 = sand.u32 %s41, 1
        %s189 = scalar_lea.sflag [#allocation3], %s188
        %s190 = sand.u32 %s41, 1
        %s191 = smul.addr %s190, 288
        %s192 = scalar_lea.vmem [#allocation2], %s191
        // Predicated region
        $region33: #{tpu_custom_call.1} parent=31 // pred_check
          %p193 = pneg %p54
        $region34: #{tpu_custom_call.1} parent=31 // pred_check_branch
          %195 = sbr.rel (%p193) target = $region36
        $region35: #{tpu_custom_call.1} parent=31 // pred_region
          %196 = dma.done %s189, 4608
        $region36: #{tpu_custom_call.1} parent=31 // pred_fallthru
          _
        // Predicated region
        $region37: #{tpu_custom_call.1} parent=31 // pred_check
          %p197 = pneg %p75
        $region38: #{tpu_custom_call.1} parent=31 // pred_check_branch
          %199 = sbr.rel (%p197) target = $region40
        $region39: #{tpu_custom_call.1} parent=31 // pred_region
          %200 = dma.done [#allocation6], 9216
        $region40: #{tpu_custom_call.1} parent=31 // pred_fallthru
          _
        %s201 = sand.u32 %s41, 1
        %s202 = scalar_lea.sflag [#allocation3], %s201
        %s203 = sand.u32 %s41, 1
        %s204 = smul.addr %s203, 288
        %s205 = scalar_lea.vmem [#allocation2], %s204
        %p206 = pneg %p54
        %p207 = pneg %p51
        %p208 = pneg %p75
        %p209 = pneg %p72
        %p210 = pneg %p96
        %p211 = pneg %p93
        %p212 = pneg %p124
        %p213 = pneg %p121
        %s214 = sand.u32 %s111, 1
        %s215 = scalar_lea.sflag [#allocation4], %s214
        %s216 = sand.u32 %s111, 1
        %s217 = smul.addr %s216, 64
        %s218 = scalar_lea.vmem [#allocation7], %s217
        %s219 = smul.u32 4, %s25
        %s220 = smul.u32 8, %s26
        %s222 = smul.u32 %s26, 8
        %s223 = smul.u32 %s222, 2
        %s224 = smul.addr %s223, 4
        %s225 = scalar_lea.vmem %s192, %s224 [#allocation2]
        %v226 = vld [vmem:[%s225] sm:$0xf]
        %v227 = vld [vmem:[%s225 + $0x8] sm:$0xf]
        %v228 = vld [vmem:[%s225 + $0x10] sm:$0xf]
        %v229 = vld [vmem:[%s225 + $0x18] sm:$0xf]
        %v230 = vld [vmem:[%s225 + $0x20] sm:$0xf]
        %v231 = vld [vmem:[%s225 + $0x28] sm:$0xf]
        %v232 = vld [vmem:[%s225 + $0x30] sm:$0xf]
        %v233 = vld [vmem:[%s225 + $0x38] sm:$0xf]
        %v234 = vld [vmem:[#allocation5] sm:$0xf]
        %v235 = vld [vmem:[#allocation5 + $0x4] sm:$0xf]
        %v236 = vld [vmem:[#allocation5 + $0x8] sm:$0xf]
        %v237 = vld [vmem:[#allocation5 + $0xc] sm:$0xf]
        %v238 = vld [vmem:[#allocation5 + $0x10] sm:$0xf]
        %v239 = vld [vmem:[#allocation5 + $0x14] sm:$0xf]
        %v240 = vld [vmem:[#allocation5 + $0x18] sm:$0xf]
        %v241 = vld [vmem:[#allocation5 + $0x1c] sm:$0xf]
        %v242 = vld [vmem:[#allocation5 + $0x20] sm:$0xf]
        %v243 = vld [vmem:[#allocation5 + $0x24] sm:$0xf]
        %v244 = vld [vmem:[#allocation5 + $0x28] sm:$0xf]
        %v245 = vld [vmem:[#allocation5 + $0x2c] sm:$0xf]
        %v246 = vld [vmem:[#allocation5 + $0x30] sm:$0xf]
        %v247 = vld [vmem:[#allocation5 + $0x34] sm:$0xf]
        %v248 = vld [vmem:[#allocation5 + $0x38] sm:$0xf]
        %v249 = vld [vmem:[#allocation5 + $0x3c] sm:$0xf]
        %s250 = sadd.s32 %s223, 18
        %s251 = smul.addr %s250, 4
        %s252 = scalar_lea.vmem %s192, %s251 [#allocation2]
        %v253 = vld [vmem:[%s252] sm:$0xf]
        %v254 = vld [vmem:[%s252 + $0x8] sm:$0xf]
        %v255 = vld [vmem:[%s252 + $0x10] sm:$0xf]
        %v256 = vld [vmem:[%s252 + $0x18] sm:$0xf]
        %v257 = vld [vmem:[%s252 + $0x20] sm:$0xf]
        %v258 = vld [vmem:[%s252 + $0x28] sm:$0xf]
        %v259 = vld [vmem:[%s252 + $0x30] sm:$0xf]
        %v260 = vld [vmem:[%s252 + $0x38] sm:$0xf]
        %s261 = scalar_lea.vmem [#allocation5], 64
        %v262 = vld [vmem:[%s261] sm:$0xf]
        %v263 = vld [vmem:[%s261 + $0x4] sm:$0xf]
        %v264 = vld [vmem:[%s261 + $0x8] sm:$0xf]
        %v265 = vld [vmem:[%s261 + $0xc] sm:$0xf]
        %v266 = vld [vmem:[%s261 + $0x10] sm:$0xf]
        %v267 = vld [vmem:[%s261 + $0x14] sm:$0xf]
        %v268 = vld [vmem:[%s261 + $0x18] sm:$0xf]
        %v269 = vld [vmem:[%s261 + $0x1c] sm:$0xf]
        %v270 = vld [vmem:[%s261 + $0x20] sm:$0xf]
        %v271 = vld [vmem:[%s261 + $0x24] sm:$0xf]
        %v272 = vld [vmem:[%s261 + $0x28] sm:$0xf]
        %v273 = vld [vmem:[%s261 + $0x2c] sm:$0xf]
        %v274 = vld [vmem:[%s261 + $0x30] sm:$0xf]
        %v275 = vld [vmem:[%s261 + $0x34] sm:$0xf]
        %v276 = vld [vmem:[%s261 + $0x38] sm:$0xf]
        %v277 = vld [vmem:[%s261 + $0x3c] sm:$0xf]
        %v286 = vunpack.c.l.b16 %v253
        %v287 = vunpack.c.l.b16 %v254
        %v288 = vunpack.c.l.b16 %v255
        %v289 = vunpack.c.l.b16 %v256
        %v290 = vunpack.c.l.b16 %v257
        %v291 = vunpack.c.l.b16 %v258
        %v292 = vunpack.c.l.b16 %v259
        %v293 = vunpack.c.l.b16 %v260
        %v294 = vpack.c.b16 %v287, %v286
        %v295 = vpack.c.b16 %v289, %v288
        %v296 = vpack.c.b16 %v291, %v290
        %v297 = vpack.c.b16 %v293, %v292
        %v318 = vunpack.c.l.b16 %v262
        %v319 = vunpack.c.l.b16 %v263
        %v320 = vunpack.c.l.b16 %v264
        %v321 = vunpack.c.l.b16 %v265
        %v322 = vunpack.c.l.b16 %v266
        %v323 = vunpack.c.l.b16 %v267
        %v324 = vunpack.c.l.b16 %v268
        %v325 = vunpack.c.l.b16 %v269
        %v326 = vunpack.c.l.b16 %v270
        %v327 = vunpack.c.l.b16 %v271
        %v328 = vunpack.c.l.b16 %v272
        %v329 = vunpack.c.l.b16 %v273
        %v330 = vunpack.c.l.b16 %v274
        %v331 = vunpack.c.l.b16 %v275
        %v332 = vunpack.c.l.b16 %v276
        %v333 = vunpack.c.l.b16 %v277
        %v334 = vpack.c.b16 %v319, %v318
        %v335 = vpack.c.b16 %v321, %v320
        %v336 = vpack.c.b16 %v323, %v322
        %v337 = vpack.c.b16 %v325, %v324
        %v338 = vpack.c.b16 %v327, %v326
        %v339 = vpack.c.b16 %v329, %v328
        %v340 = vpack.c.b16 %v331, %v330
        %v341 = vpack.c.b16 %v333, %v332
        %350 = vmatprep.subr.bf16.mxu0 0
        %351 = vmatpush1.bf16.msra.mxu0 %v334
        %352 = vmatprep.subr.bf16.mxu0 0
        %353 = vmatpush1.bf16.msra.mxu0 %v335
        %354 = vmatprep.subr.bf16.mxu0 0
        %355 = vmatpush1.bf16.msra.mxu0 %v336
        %356 = vmatprep.subr.bf16.mxu0 0
        %357 = vmatpush1.bf16.msra.mxu0 %v337
        %358 = vmatprep.subr.bf16.mxu0 0
        %359 = vmatpush1.bf16.msra.mxu0 %v338
        %360 = vmatprep.subr.bf16.mxu0 0
        %361 = vmatpush1.bf16.msra.mxu0 %v339
        %362 = vmatprep.subr.bf16.mxu0 0
        %363 = vmatpush1.bf16.msra.mxu0 %v340
        %364 = vmatprep.subr.bf16.mxu0 0
        %365 = vmatpush1.bf16.msra.mxu0 %v341
        %366 = vmatprep.subr.bf16.mxu0 0
        %367 = vmatpush1.bf16.msra.mxu0 0
        %368 = vmatprep.subr.bf16.mxu0 0
        %369 = vmatpush1.bf16.msra.mxu0 0
        %370 = vmatprep.subr.bf16.mxu0 0
        %371 = vmatpush1.bf16.msra.mxu0 0
        %372 = vmatprep.subr.bf16.mxu0 0
        %373 = vmatpush1.bf16.msra.mxu0 0
        %374 = vmatprep.subr.bf16.mxu0 0
        %375 = vmatpush1.bf16.msra.mxu0 0
        %376 = vmatprep.subr.bf16.mxu0 0
        %377 = vmatpush1.bf16.msra.mxu0 0
        %378 = vmatprep.subr.bf16.mxu0 0
        %379 = vmatpush1.bf16.msra.mxu0 0
        %380 = vmatprep.subr.bf16.mxu0 0
        %381 = vmatpush1.bf16.msra.mxu0 0
        %382 = vmatprep.mubr.bf16.mxu0 0
        %383 = vmatmul.mubr.bf16.gmra.mrb[0].mxu0 %v294
        %v384 = vpop.f32.mrb[0].mxu0
        %v385 = vadd.f32 0.0, %v384
        %v386 = vpop.f32.mrb[0].mxu0
        %v387 = vpop.f32.mrb[0].mxu0
        %v388 = vadd.f32 0.0, %v387
        %v389 = vpop.f32.mrb[0].mxu0
        %390 = vmatprep.mubr.bf16.mxu0 0
        %391 = vmatmul.mubr.bf16.gmra.mrb[0].mxu0 %v295
        %v392 = vpop.f32.mrb[0].mxu0
        %v393 = vadd.f32 0.0, %v392
        %v394 = vpop.f32.mrb[0].mxu0
        %v395 = vpop.f32.mrb[0].mxu0
        %v396 = vadd.f32 0.0, %v395
        %v397 = vpop.f32.mrb[0].mxu0
        %398 = vmatprep.mubr.bf16.mxu0 0
        %399 = vmatmul.mubr.bf16.gmra.mrb[0].mxu0 %v296
        %v400 = vpop.f32.mrb[0].mxu0
        %v401 = vadd.f32 0.0, %v400
        %v402 = vpop.f32.mrb[0].mxu0
        %v403 = vpop.f32.mrb[0].mxu0
        %v404 = vadd.f32 0.0, %v403
        %v405 = vpop.f32.mrb[0].mxu0
        %406 = vmatprep.mubr.bf16.mxu0 0
        %407 = vmatmul.mubr.bf16.gmra.mrb[0].mxu0 %v297
        %v408 = vpop.f32.mrb[0].mxu0
        %v409 = vadd.f32 0.0, %v408
        %v410 = vpop.f32.mrb[0].mxu0
        %v411 = vpop.f32.mrb[0].mxu0
        %v412 = vadd.f32 0.0, %v411
        %v413 = vpop.f32.mrb[0].mxu0
        %414 = vdwg.mxu0
        %v423 = vunpack.c.l.b16 %v226
        %v424 = vunpack.c.l.b16 %v227
        %v425 = vunpack.c.l.b16 %v228
        %v426 = vunpack.c.l.b16 %v229
        %v427 = vunpack.c.l.b16 %v230
        %v428 = vunpack.c.l.b16 %v231
        %v429 = vunpack.c.l.b16 %v232
        %v430 = vunpack.c.l.b16 %v233
        %v431 = vpack.c.b16 %v424, %v423
        %v432 = vpack.c.b16 %v426, %v425
        %v433 = vpack.c.b16 %v428, %v427
        %v434 = vpack.c.b16 %v430, %v429
        %v455 = vunpack.c.l.b16 %v234
        %v456 = vunpack.c.l.b16 %v235
        %v457 = vunpack.c.l.b16 %v236
        %v458 = vunpack.c.l.b16 %v237
        %v459 = vunpack.c.l.b16 %v238
        %v460 = vunpack.c.l.b16 %v239
        %v461 = vunpack.c.l.b16 %v240
        %v462 = vunpack.c.l.b16 %v241
        %v463 = vunpack.c.l.b16 %v242
        %v464 = vunpack.c.l.b16 %v243
        %v465 = vunpack.c.l.b16 %v244
        %v466 = vunpack.c.l.b16 %v245
        %v467 = vunpack.c.l.b16 %v246
        %v468 = vunpack.c.l.b16 %v247
        %v469 = vunpack.c.l.b16 %v248
        %v470 = vunpack.c.l.b16 %v249
        %v471 = vpack.c.b16 %v456, %v455
        %v472 = vpack.c.b16 %v458, %v457
        %v473 = vpack.c.b16 %v460, %v459
        %v474 = vpack.c.b16 %v462, %v461
        %v475 = vpack.c.b16 %v464, %v463
        %v476 = vpack.c.b16 %v466, %v465
        %v477 = vpack.c.b16 %v468, %v467
        %v478 = vpack.c.b16 %v470, %v469
        %487 = vmatprep.subr.bf16.mxu0 0
        %488 = vmatpush1.bf16.msra.mxu0 %v471
        %489 = vmatprep.subr.bf16.mxu0 0
        %490 = vmatpush1.bf16.msra.mxu0 %v472
        %491 = vmatprep.subr.bf16.mxu0 0
        %492 = vmatpush1.bf16.msra.mxu0 %v473
        %493 = vmatprep.subr.bf16.mxu0 0
        %494 = vmatpush1.bf16.msra.mxu0 %v474
        %495 = vmatprep.subr.bf16.mxu0 0
        %496 = vmatpush1.bf16.msra.mxu0 %v475
        %497 = vmatprep.subr.bf16.mxu0 0
        %498 = vmatpush1.bf16.msra.mxu0 %v476
        %499 = vmatprep.subr.bf16.mxu0 0
        %500 = vmatpush1.bf16.msra.mxu0 %v477
        %501 = vmatprep.subr.bf16.mxu0 0
        %502 = vmatpush1.bf16.msra.mxu0 %v478
        %503 = vmatprep.subr.bf16.mxu0 0
        %504 = vmatpush1.bf16.msra.mxu0 0
        %505 = vmatprep.subr.bf16.mxu0 0
        %506 = vmatpush1.bf16.msra.mxu0 0
        %507 = vmatprep.subr.bf16.mxu0 0
        %508 = vmatpush1.bf16.msra.mxu0 0
        %509 = vmatprep.subr.bf16.mxu0 0
        %510 = vmatpush1.bf16.msra.mxu0 0
        %511 = vmatprep.subr.bf16.mxu0 0
        %512 = vmatpush1.bf16.msra.mxu0 0
        %513 = vmatprep.subr.bf16.mxu0 0
        %514 = vmatpush1.bf16.msra.mxu0 0
        %515 = vmatprep.subr.bf16.mxu0 0
        %516 = vmatpush1.bf16.msra.mxu0 0
        %517 = vmatprep.subr.bf16.mxu0 0
        %518 = vmatpush1.bf16.msra.mxu0 0
        %519 = vmatprep.mubr.bf16.mxu0 0
        %520 = vmatmul.mubr.bf16.gmra.mrb[0].mxu0 %v431
        %v521 = vpop.f32.mrb[0].mxu0
        %v522 = vadd.f32 %v385, %v521
        %v523 = vpop.f32.mrb[0].mxu0
        %v524 = vpop.f32.mrb[0].mxu0
        %v525 = vadd.f32 %v388, %v524
        %v526 = vpop.f32.mrb[0].mxu0
        %527 = vmatprep.mubr.bf16.mxu0 0
        %528 = vmatmul.mubr.bf16.gmra.mrb[0].mxu0 %v432
        %v529 = vpop.f32.mrb[0].mxu0
        %v530 = vadd.f32 %v393, %v529
        %v531 = vpop.f32.mrb[0].mxu0
        %v532 = vpop.f32.mrb[0].mxu0
        %v533 = vadd.f32 %v396, %v532
        %v534 = vpop.f32.mrb[0].mxu0
        %535 = vmatprep.mubr.bf16.mxu0 0
        %536 = vmatmul.mubr.bf16.gmra.mrb[0].mxu0 %v433
        %v537 = vpop.f32.mrb[0].mxu0
        %v538 = vadd.f32 %v401, %v537
        %v539 = vpop.f32.mrb[0].mxu0
        %v540 = vpop.f32.mrb[0].mxu0
        %v541 = vadd.f32 %v404, %v540
        %v542 = vpop.f32.mrb[0].mxu0
        %543 = vmatprep.mubr.bf16.mxu0 0
        %544 = vmatmul.mubr.bf16.gmra.mrb[0].mxu0 %v434
        %v545 = vpop.f32.mrb[0].mxu0
        %v546 = vadd.f32 %v409, %v545
        %v547 = vpop.f32.mrb[0].mxu0
        %v548 = vpop.f32.mrb[0].mxu0
        %v549 = vadd.f32 %v412, %v548
        %v550 = vpop.f32.mrb[0].mxu0
        %551 = vdwg.mxu0
        %v552 = vld [vmem:[%s225] sm:$0xf]
        %v553 = vld [vmem:[%s225 + $0x4] sm:$0x1]
        %v554 = vld [vmem:[%s225 + $0x8] sm:$0xf]
        %v555 = vld [vmem:[%s225 + $0xc] sm:$0x1]
        %v556 = vld [vmem:[%s225 + $0x10] sm:$0xf]
        %v557 = vld [vmem:[%s225 + $0x14] sm:$0x1]
        %v558 = vld [vmem:[%s225 + $0x18] sm:$0xf]
        %v559 = vld [vmem:[%s225 + $0x1c] sm:$0x1]
        %v560 = vld [vmem:[%s225 + $0x20] sm:$0xf]
        %v561 = vld [vmem:[%s225 + $0x24] sm:$0x1]
        %v562 = vld [vmem:[%s225 + $0x28] sm:$0xf]
        %v563 = vld [vmem:[%s225 + $0x2c] sm:$0x1]
        %v564 = vld [vmem:[%s225 + $0x30] sm:$0xf]
        %v565 = vld [vmem:[%s225 + $0x34] sm:$0x1]
        %v566 = vld [vmem:[%s225 + $0x38] sm:$0xf]
        %v567 = vld [vmem:[%s225 + $0x3c] sm:$0x1]
        %vm568 = vsmask.f32 3328
        %vm569 = vsmask.f32 7440
        %vm570 = vmor %vm568, %vm569
        %v572 = vshrl.u32 %v552, 16
        %v574 = vrot.slane %v572, 4
        %v575 = vshll.u32 %v552, 16
        %v577 = vrot.slane %v575, 5
        %v578 = vor.u32 %v574, %v577
        %v579 = vrot.slane %v578, 4
        %v581 = vshll.u32 %v553, 16
        %v583 = vrot.slane %v581, 5
        %v584 = vsel %vm570, %v579, %v583
        %v586 = vshrl.u32 %v554, 16
        %v588 = vrot.slane %v586, 4
        %v589 = vshll.u32 %v554, 16
        %v591 = vrot.slane %v589, 5
        %v592 = vor.u32 %v588, %v591
        %v593 = vrot.slane %v592, 4
        %v595 = vshll.u32 %v555, 16
        %v597 = vrot.slane %v595, 5
        %v598 = vsel %vm570, %v593, %v597
        %v600 = vshrl.u32 %v556, 16
        %v602 = vrot.slane %v600, 4
        %v603 = vshll.u32 %v556, 16
        %v605 = vrot.slane %v603, 5
        %v606 = vor.u32 %v602, %v605
        %v607 = vrot.slane %v606, 4
        %v609 = vshll.u32 %v557, 16
        %v611 = vrot.slane %v609, 5
        %v612 = vsel %vm570, %v607, %v611
        %v614 = vshrl.u32 %v558, 16
        %v616 = vrot.slane %v614, 4
        %v617 = vshll.u32 %v558, 16
        %v619 = vrot.slane %v617, 5
        %v620 = vor.u32 %v616, %v619
        %v621 = vrot.slane %v620, 4
        %v623 = vshll.u32 %v559, 16
        %v625 = vrot.slane %v623, 5
        %v626 = vsel %vm570, %v621, %v625
        %v628 = vshrl.u32 %v560, 16
        %v630 = vrot.slane %v628, 4
        %v631 = vshll.u32 %v560, 16
        %v633 = vrot.slane %v631, 5
        %v634 = vor.u32 %v630, %v633
        %v635 = vrot.slane %v634, 4
        %v637 = vshll.u32 %v561, 16
        %v639 = vrot.slane %v637, 5
        %v640 = vsel %vm570, %v635, %v639
        %v642 = vshrl.u32 %v562, 16
        %v644 = vrot.slane %v642, 4
        %v645 = vshll.u32 %v562, 16
        %v647 = vrot.slane %v645, 5
        %v648 = vor.u32 %v644, %v647
        %v649 = vrot.slane %v648, 4
        %v651 = vshll.u32 %v563, 16
        %v653 = vrot.slane %v651, 5
        %v654 = vsel %vm570, %v649, %v653
        %v656 = vshrl.u32 %v564, 16
        %v658 = vrot.slane %v656, 4
        %v659 = vshll.u32 %v564, 16
        %v661 = vrot.slane %v659, 5
        %v662 = vor.u32 %v658, %v661
        %v663 = vrot.slane %v662, 4
        %v665 = vshll.u32 %v565, 16
        %v667 = vrot.slane %v665, 5
        %v668 = vsel %vm570, %v663, %v667
        %v670 = vshrl.u32 %v566, 16
        %v672 = vrot.slane %v670, 4
        %v673 = vshll.u32 %v566, 16
        %v675 = vrot.slane %v673, 5
        %v676 = vor.u32 %v672, %v675
        %v677 = vrot.slane %v676, 4
        %v679 = vshll.u32 %v567, 16
        %v681 = vrot.slane %v679, 5
        %v682 = vsel %vm570, %v677, %v681
        %s683 = scalar_lea.vmem [#allocation5], 128
        %v684 = vld [vmem:[%s683] sm:$0xf]
        %v685 = vld [vmem:[%s683 + $0x4] sm:$0xf]
        %v686 = vld [vmem:[%s683 + $0x8] sm:$0xf]
        %v687 = vld [vmem:[%s683 + $0xc] sm:$0xf]
        %v688 = vld [vmem:[%s683 + $0x10] sm:$0xf]
        %v689 = vld [vmem:[%s683 + $0x14] sm:$0xf]
        %v690 = vld [vmem:[%s683 + $0x18] sm:$0xf]
        %v691 = vld [vmem:[%s683 + $0x1c] sm:$0xf]
        %v692 = vld [vmem:[%s683 + $0x20] sm:$0xf]
        %v693 = vld [vmem:[%s683 + $0x24] sm:$0xf]
        %v694 = vld [vmem:[%s683 + $0x28] sm:$0xf]
        %v695 = vld [vmem:[%s683 + $0x2c] sm:$0xf]
        %v696 = vld [vmem:[%s683 + $0x30] sm:$0xf]
        %v697 = vld [vmem:[%s683 + $0x34] sm:$0xf]
        %v698 = vld [vmem:[%s683 + $0x38] sm:$0xf]
        %v699 = vld [vmem:[%s683 + $0x3c] sm:$0xf]
        %v700 = vunpack.c.l.b16 %v584
        %v701 = vunpack.c.l.b16 %v598
        %v702 = vunpack.c.l.b16 %v612
        %v703 = vunpack.c.l.b16 %v626
        %v704 = vunpack.c.l.b16 %v640
        %v705 = vunpack.c.l.b16 %v654
        %v706 = vunpack.c.l.b16 %v668
        %v707 = vunpack.c.l.b16 %v682
        %v708 = vpack.c.b16 %v701, %v700
        %v709 = vpack.c.b16 %v703, %v702
        %v710 = vpack.c.b16 %v705, %v704
        %v711 = vpack.c.b16 %v707, %v706
        %v732 = vunpack.c.l.b16 %v684
        %v733 = vunpack.c.l.b16 %v685
        %v734 = vunpack.c.l.b16 %v686
        %v735 = vunpack.c.l.b16 %v687
        %v736 = vunpack.c.l.b16 %v688
        %v737 = vunpack.c.l.b16 %v689
        %v738 = vunpack.c.l.b16 %v690
        %v739 = vunpack.c.l.b16 %v691
        %v740 = vunpack.c.l.b16 %v692
        %v741 = vunpack.c.l.b16 %v693
        %v742 = vunpack.c.l.b16 %v694
        %v743 = vunpack.c.l.b16 %v695
        %v744 = vunpack.c.l.b16 %v696
        %v745 = vunpack.c.l.b16 %v697
        %v746 = vunpack.c.l.b16 %v698
        %v747 = vunpack.c.l.b16 %v699
        %v748 = vpack.c.b16 %v733, %v732
        %v749 = vpack.c.b16 %v735, %v734
        %v750 = vpack.c.b16 %v737, %v736
        %v751 = vpack.c.b16 %v739, %v738
        %v752 = vpack.c.b16 %v741, %v740
        %v753 = vpack.c.b16 %v743, %v742
        %v754 = vpack.c.b16 %v745, %v744
        %v755 = vpack.c.b16 %v747, %v746
        %764 = vmatprep.subr.bf16.mxu0 0
        %765 = vmatpush1.bf16.msra.mxu0 %v748
        %766 = vmatprep.subr.bf16.mxu0 0
        %767 = vmatpush1.bf16.msra.mxu0 %v749
        %768 = vmatprep.subr.bf16.mxu0 0
        %769 = vmatpush1.bf16.msra.mxu0 %v750
        %770 = vmatprep.subr.bf16.mxu0 0
        %771 = vmatpush1.bf16.msra.mxu0 %v751
        %772 = vmatprep.subr.bf16.mxu0 0
        %773 = vmatpush1.bf16.msra.mxu0 %v752
        %774 = vmatprep.subr.bf16.mxu0 0
        %775 = vmatpush1.bf16.msra.mxu0 %v753
        %776 = vmatprep.subr.bf16.mxu0 0
        %777 = vmatpush1.bf16.msra.mxu0 %v754
        %778 = vmatprep.subr.bf16.mxu0 0
        %779 = vmatpush1.bf16.msra.mxu0 %v755
        %780 = vmatprep.subr.bf16.mxu0 0
        %781 = vmatpush1.bf16.msra.mxu0 0
        %782 = vmatprep.subr.bf16.mxu0 0
        %783 = vmatpush1.bf16.msra.mxu0 0
        %784 = vmatprep.subr.bf16.mxu0 0
        %785 = vmatpush1.bf16.msra.mxu0 0
        %786 = vmatprep.subr.bf16.mxu0 0
        %787 = vmatpush1.bf16.msra.mxu0 0
        %788 = vmatprep.subr.bf16.mxu0 0
        %789 = vmatpush1.bf16.msra.mxu0 0
        %790 = vmatprep.subr.bf16.mxu0 0
        %791 = vmatpush1.bf16.msra.mxu0 0
        %792 = vmatprep.subr.bf16.mxu0 0
        %793 = vmatpush1.bf16.msra.mxu0 0
        %794 = vmatprep.subr.bf16.mxu0 0
        %795 = vmatpush1.bf16.msra.mxu0 0
        %796 = vmatprep.mubr.bf16.mxu0 0
        %797 = vmatmul.mubr.bf16.gmra.mrb[0].mxu0 %v708
        %v798 = vpop.f32.mrb[0].mxu0
        %v799 = vadd.f32 0.0, %v798
        %v800 = vpop.f32.mrb[0].mxu0
        %v801 = vpop.f32.mrb[0].mxu0
        %v802 = vadd.f32 0.0, %v801
        %v803 = vpop.f32.mrb[0].mxu0
        %804 = vmatprep.mubr.bf16.mxu0 0
        %805 = vmatmul.mubr.bf16.gmra.mrb[0].mxu0 %v709
        %v806 = vpop.f32.mrb[0].mxu0
        %v807 = vadd.f32 0.0, %v806
        %v808 = vpop.f32.mrb[0].mxu0
        %v809 = vpop.f32.mrb[0].mxu0
        %v810 = vadd.f32 0.0, %v809
        %v811 = vpop.f32.mrb[0].mxu0
        %812 = vmatprep.mubr.bf16.mxu0 0
        %813 = vmatmul.mubr.bf16.gmra.mrb[0].mxu0 %v710
        %v814 = vpop.f32.mrb[0].mxu0
        %v815 = vadd.f32 0.0, %v814
        %v816 = vpop.f32.mrb[0].mxu0
        %v817 = vpop.f32.mrb[0].mxu0
        %v818 = vadd.f32 0.0, %v817
        %v819 = vpop.f32.mrb[0].mxu0
        %820 = vmatprep.mubr.bf16.mxu0 0
        %821 = vmatmul.mubr.bf16.gmra.mrb[0].mxu0 %v711
        %v822 = vpop.f32.mrb[0].mxu0
        %v823 = vadd.f32 0.0, %v822
        %v824 = vpop.f32.mrb[0].mxu0
        %v825 = vpop.f32.mrb[0].mxu0
        %v826 = vadd.f32 0.0, %v825
        %v827 = vpop.f32.mrb[0].mxu0
        %828 = vdwg.mxu0
        %v829 = vadd.f32 %v522, %v799
        %v830 = vadd.f32 %v525, %v802
        %v831 = vadd.f32 %v530, %v807
        %v832 = vadd.f32 %v533, %v810
        %v833 = vadd.f32 %v538, %v815
        %v834 = vadd.f32 %v541, %v818
        %v835 = vadd.f32 %v546, %v823
        %v836 = vadd.f32 %v549, %v826
        %s837 = sadd.s32 %s223, 36
        %s838 = smul.addr %s837, 4
        %s839 = scalar_lea.vmem %s192, %s838 [#allocation2]
        %v840 = vld [vmem:[%s839] sm:$0xf]
        %v841 = vld [vmem:[%s839 + $0x8] sm:$0xf]
        %v842 = vld [vmem:[%s839 + $0x10] sm:$0xf]
        %v843 = vld [vmem:[%s839 + $0x18] sm:$0xf]
        %v844 = vld [vmem:[%s839 + $0x20] sm:$0xf]
        %v845 = vld [vmem:[%s839 + $0x28] sm:$0xf]
        %v846 = vld [vmem:[%s839 + $0x30] sm:$0xf]
        %v847 = vld [vmem:[%s839 + $0x38] sm:$0xf]
        %s848 = scalar_lea.vmem [#allocation5], 192
        %v849 = vld [vmem:[%s848] sm:$0xf]
        %v850 = vld [vmem:[%s848 + $0x4] sm:$0xf]
        %v851 = vld [vmem:[%s848 + $0x8] sm:$0xf]
        %v852 = vld [vmem:[%s848 + $0xc] sm:$0xf]
        %v853 = vld [vmem:[%s848 + $0x10] sm:$0xf]
        %v854 = vld [vmem:[%s848 + $0x14] sm:$0xf]
        %v855 = vld [vmem:[%s848 + $0x18] sm:$0xf]
        %v856 = vld [vmem:[%s848 + $0x1c] sm:$0xf]
        %v857 = vld [vmem:[%s848 + $0x20] sm:$0xf]
        %v858 = vld [vmem:[%s848 + $0x24] sm:$0xf]
        %v859 = vld [vmem:[%s848 + $0x28] sm:$0xf]
        %v860 = vld [vmem:[%s848 + $0x2c] sm:$0xf]
        %v861 = vld [vmem:[%s848 + $0x30] sm:$0xf]
        %v862 = vld [vmem:[%s848 + $0x34] sm:$0xf]
        %v863 = vld [vmem:[%s848 + $0x38] sm:$0xf]
        %v864 = vld [vmem:[%s848 + $0x3c] sm:$0xf]
        %v873 = vunpack.c.l.b16 %v840
        %v874 = vunpack.c.l.b16 %v841
        %v875 = vunpack.c.l.b16 %v842
        %v876 = vunpack.c.l.b16 %v843
        %v877 = vunpack.c.l.b16 %v844
        %v878 = vunpack.c.l.b16 %v845
        %v879 = vunpack.c.l.b16 %v846
        %v880 = vunpack.c.l.b16 %v847
        %v881 = vpack.c.b16 %v874, %v873
        %v882 = vpack.c.b16 %v876, %v875
        %v883 = vpack.c.b16 %v878, %v877
        %v884 = vpack.c.b16 %v880, %v879
        %v905 = vunpack.c.l.b16 %v849
        %v906 = vunpack.c.l.b16 %v850
        %v907 = vunpack.c.l.b16 %v851
        %v908 = vunpack.c.l.b16 %v852
        %v909 = vunpack.c.l.b16 %v853
        %v910 = vunpack.c.l.b16 %v854
        %v911 = vunpack.c.l.b16 %v855
        %v912 = vunpack.c.l.b16 %v856
        %v913 = vunpack.c.l.b16 %v857
        %v914 = vunpack.c.l.b16 %v858
        %v915 = vunpack.c.l.b16 %v859
        %v916 = vunpack.c.l.b16 %v860
        %v917 = vunpack.c.l.b16 %v861
        %v918 = vunpack.c.l.b16 %v862
        %v919 = vunpack.c.l.b16 %v863
        %v920 = vunpack.c.l.b16 %v864
        %v921 = vpack.c.b16 %v906, %v905
        %v922 = vpack.c.b16 %v908, %v907
        %v923 = vpack.c.b16 %v910, %v909
        %v924 = vpack.c.b16 %v912, %v911
        %v925 = vpack.c.b16 %v914, %v913
        %v926 = vpack.c.b16 %v916, %v915
        %v927 = vpack.c.b16 %v918, %v917
        %v928 = vpack.c.b16 %v920, %v919
        %937 = vmatprep.subr.bf16.mxu0 0
        %938 = vmatpush1.bf16.msra.mxu0 %v921
        %939 = vmatprep.subr.bf16.mxu0 0
        %940 = vmatpush1.bf16.msra.mxu0 %v922
        %941 = vmatprep.subr.bf16.mxu0 0
        %942 = vmatpush1.bf16.msra.mxu0 %v923
        %943 = vmatprep.subr.bf16.mxu0 0
        %944 = vmatpush1.bf16.msra.mxu0 %v924
        %945 = vmatprep.subr.bf16.mxu0 0
        %946 = vmatpush1.bf16.msra.mxu0 %v925
        %947 = vmatprep.subr.bf16.mxu0 0
        %948 = vmatpush1.bf16.msra.mxu0 %v926
        %949 = vmatprep.subr.bf16.mxu0 0
        %950 = vmatpush1.bf16.msra.mxu0 %v927
        %951 = vmatprep.subr.bf16.mxu0 0
        %952 = vmatpush1.bf16.msra.mxu0 %v928
        %953 = vmatprep.subr.bf16.mxu0 0
        %954 = vmatpush1.bf16.msra.mxu0 0
        %955 = vmatprep.subr.bf16.mxu0 0
        %956 = vmatpush1.bf16.msra.mxu0 0
        %957 = vmatprep.subr.bf16.mxu0 0
        %958 = vmatpush1.bf16.msra.mxu0 0
        %959 = vmatprep.subr.bf16.mxu0 0
        %960 = vmatpush1.bf16.msra.mxu0 0
        %961 = vmatprep.subr.bf16.mxu0 0
        %962 = vmatpush1.bf16.msra.mxu0 0
        %963 = vmatprep.subr.bf16.mxu0 0
        %964 = vmatpush1.bf16.msra.mxu0 0
        %965 = vmatprep.subr.bf16.mxu0 0
        %966 = vmatpush1.bf16.msra.mxu0 0
        %967 = vmatprep.subr.bf16.mxu0 0
        %968 = vmatpush1.bf16.msra.mxu0 0
        %969 = vmatprep.mubr.bf16.mxu0 0
        %970 = vmatmul.mubr.bf16.gmra.mrb[0].mxu0 %v881
        %v971 = vpop.f32.mrb[0].mxu0
        %v972 = vadd.f32 0.0, %v971
        %v973 = vpop.f32.mrb[0].mxu0
        %v974 = vpop.f32.mrb[0].mxu0
        %v975 = vadd.f32 0.0, %v974
        %v976 = vpop.f32.mrb[0].mxu0
        %977 = vmatprep.mubr.bf16.mxu0 0
        %978 = vmatmul.mubr.bf16.gmra.mrb[0].mxu0 %v882
        %v979 = vpop.f32.mrb[0].mxu0
        %v980 = vadd.f32 0.0, %v979
        %v981 = vpop.f32.mrb[0].mxu0
        %v982 = vpop.f32.mrb[0].mxu0
        %v983 = vadd.f32 0.0, %v982
        %v984 = vpop.f32.mrb[0].mxu0
        %985 = vmatprep.mubr.bf16.mxu0 0
        %986 = vmatmul.mubr.bf16.gmra.mrb[0].mxu0 %v883
        %v987 = vpop.f32.mrb[0].mxu0
        %v988 = vadd.f32 0.0, %v987
        %v989 = vpop.f32.mrb[0].mxu0
        %v990 = vpop.f32.mrb[0].mxu0
        %v991 = vadd.f32 0.0, %v990
        %v992 = vpop.f32.mrb[0].mxu0
        %993 = vmatprep.mubr.bf16.mxu0 0
        %994 = vmatmul.mubr.bf16.gmra.mrb[0].mxu0 %v884
        %v995 = vpop.f32.mrb[0].mxu0
        %v996 = vadd.f32 0.0, %v995
        %v997 = vpop.f32.mrb[0].mxu0
        %v998 = vpop.f32.mrb[0].mxu0
        %v999 = vadd.f32 0.0, %v998
        %v1000 = vpop.f32.mrb[0].mxu0
        %1001 = vdwg.mxu0
        %v1002 = vadd.f32 %v829, %v972
        %v1003 = vadd.f32 %v830, %v975
        %v1004 = vadd.f32 %v831, %v980
        %v1005 = vadd.f32 %v832, %v983
        %v1006 = vadd.f32 %v833, %v988
        %v1007 = vadd.f32 %v834, %v991
        %v1008 = vadd.f32 %v835, %v996
        %v1009 = vadd.f32 %v836, %v999
        %s1010 = sadd.s32 %s223, 54
        %s1011 = smul.addr %s1010, 4
        %s1012 = scalar_lea.vmem %s192, %s1011 [#allocation2]
        %v1013 = vld [vmem:[%s1012] sm:$0xf]
        %v1014 = vld [vmem:[%s1012 + $0x8] sm:$0xf]
        %v1015 = vld [vmem:[%s1012 + $0x10] sm:$0xf]
        %v1016 = vld [vmem:[%s1012 + $0x18] sm:$0xf]
        %v1017 = vld [vmem:[%s1012 + $0x20] sm:$0xf]
        %v1018 = vld [vmem:[%s1012 + $0x28] sm:$0xf]
        %v1019 = vld [vmem:[%s1012 + $0x30] sm:$0xf]
        %v1020 = vld [vmem:[%s1012 + $0x38] sm:$0xf]
        %s1021 = scalar_lea.vmem [#allocation5], 256
        %v1022 = vld [vmem:[%s1021] sm:$0xf]
        %v1023 = vld [vmem:[%s1021 + $0x4] sm:$0xf]
        %v1024 = vld [vmem:[%s1021 + $0x8] sm:$0xf]
        %v1025 = vld [vmem:[%s1021 + $0xc] sm:$0xf]
        %v1026 = vld [vmem:[%s1021 + $0x10] sm:$0xf]
        %v1027 = vld [vmem:[%s1021 + $0x14] sm:$0xf]
        %v1028 = vld [vmem:[%s1021 + $0x18] sm:$0xf]
        %v1029 = vld [vmem:[%s1021 + $0x1c] sm:$0xf]
        %v1030 = vld [vmem:[%s1021 + $0x20] sm:$0xf]
        %v1031 = vld [vmem:[%s1021 + $0x24] sm:$0xf]
        %v1032 = vld [vmem:[%s1021 + $0x28] sm:$0xf]
        %v1033 = vld [vmem:[%s1021 + $0x2c] sm:$0xf]
        %v1034 = vld [vmem:[%s1021 + $0x30] sm:$0xf]
        %v1035 = vld [vmem:[%s1021 + $0x34] sm:$0xf]
        %v1036 = vld [vmem:[%s1021 + $0x38] sm:$0xf]
        %v1037 = vld [vmem:[%s1021 + $0x3c] sm:$0xf]
        %v1046 = vunpack.c.l.b16 %v1013
        %v1047 = vunpack.c.l.b16 %v1014
        %v1048 = vunpack.c.l.b16 %v1015
        %v1049 = vunpack.c.l.b16 %v1016
        %v1050 = vunpack.c.l.b16 %v1017
        %v1051 = vunpack.c.l.b16 %v1018
        %v1052 = vunpack.c.l.b16 %v1019
        %v1053 = vunpack.c.l.b16 %v1020
        %v1054 = vpack.c.b16 %v1047, %v1046
        %v1055 = vpack.c.b16 %v1049, %v1048
        %v1056 = vpack.c.b16 %v1051, %v1050
        %v1057 = vpack.c.b16 %v1053, %v1052
        %v1078 = vunpack.c.l.b16 %v1022
        %v1079 = vunpack.c.l.b16 %v1023
        %v1080 = vunpack.c.l.b16 %v1024
        %v1081 = vunpack.c.l.b16 %v1025
        %v1082 = vunpack.c.l.b16 %v1026
        %v1083 = vunpack.c.l.b16 %v1027
        %v1084 = vunpack.c.l.b16 %v1028
        %v1085 = vunpack.c.l.b16 %v1029
        %v1086 = vunpack.c.l.b16 %v1030
        %v1087 = vunpack.c.l.b16 %v1031
        %v1088 = vunpack.c.l.b16 %v1032
        %v1089 = vunpack.c.l.b16 %v1033
        %v1090 = vunpack.c.l.b16 %v1034
        %v1091 = vunpack.c.l.b16 %v1035
        %v1092 = vunpack.c.l.b16 %v1036
        %v1093 = vunpack.c.l.b16 %v1037
        %v1094 = vpack.c.b16 %v1079, %v1078
        %v1095 = vpack.c.b16 %v1081, %v1080
        %v1096 = vpack.c.b16 %v1083, %v1082
        %v1097 = vpack.c.b16 %v1085, %v1084
        %v1098 = vpack.c.b16 %v1087, %v1086
        %v1099 = vpack.c.b16 %v1089, %v1088
        %v1100 = vpack.c.b16 %v1091, %v1090
        %v1101 = vpack.c.b16 %v1093, %v1092
        %1110 = vmatprep.subr.bf16.mxu0 0
        %1111 = vmatpush1.bf16.msra.mxu0 %v1094
        %1112 = vmatprep.subr.bf16.mxu0 0
        %1113 = vmatpush1.bf16.msra.mxu0 %v1095
        %1114 = vmatprep.subr.bf16.mxu0 0
        %1115 = vmatpush1.bf16.msra.mxu0 %v1096
        %1116 = vmatprep.subr.bf16.mxu0 0
        %1117 = vmatpush1.bf16.msra.mxu0 %v1097
        %1118 = vmatprep.subr.bf16.mxu0 0
        %1119 = vmatpush1.bf16.msra.mxu0 %v1098
        %1120 = vmatprep.subr.bf16.mxu0 0
        %1121 = vmatpush1.bf16.msra.mxu0 %v1099
        %1122 = vmatprep.subr.bf16.mxu0 0
        %1123 = vmatpush1.bf16.msra.mxu0 %v1100
        %1124 = vmatprep.subr.bf16.mxu0 0
        %1125 = vmatpush1.bf16.msra.mxu0 %v1101
        %1126 = vmatprep.subr.bf16.mxu0 0
        %1127 = vmatpush1.bf16.msra.mxu0 0
        %1128 = vmatprep.subr.bf16.mxu0 0
        %1129 = vmatpush1.bf16.msra.mxu0 0
        %1130 = vmatprep.subr.bf16.mxu0 0
        %1131 = vmatpush1.bf16.msra.mxu0 0
        %1132 = vmatprep.subr.bf16.mxu0 0
        %1133 = vmatpush1.bf16.msra.mxu0 0
        %1134 = vmatprep.subr.bf16.mxu0 0
        %1135 = vmatpush1.bf16.msra.mxu0 0
        %1136 = vmatprep.subr.bf16.mxu0 0
        %1137 = vmatpush1.bf16.msra.mxu0 0
        %1138 = vmatprep.subr.bf16.mxu0 0
        %1139 = vmatpush1.bf16.msra.mxu0 0
        %1140 = vmatprep.subr.bf16.mxu0 0
        %1141 = vmatpush1.bf16.msra.mxu0 0
        %1142 = vmatprep.mubr.bf16.mxu0 0
        %1143 = vmatmul.mubr.bf16.gmra.mrb[0].mxu0 %v1054
        %v1144 = vpop.f32.mrb[0].mxu0
        %v1145 = vadd.f32 0.0, %v1144
        %v1146 = vpop.f32.mrb[0].mxu0
        %v1147 = vpop.f32.mrb[0].mxu0
        %v1148 = vadd.f32 0.0, %v1147
        %v1149 = vpop.f32.mrb[0].mxu0
        %1150 = vmatprep.mubr.bf16.mxu0 0
        %1151 = vmatmul.mubr.bf16.gmra.mrb[0].mxu0 %v1055
        %v1152 = vpop.f32.mrb[0].mxu0
        %v1153 = vadd.f32 0.0, %v1152
        %v1154 = vpop.f32.mrb[0].mxu0
        %v1155 = vpop.f32.mrb[0].mxu0
        %v1156 = vadd.f32 0.0, %v1155
        %v1157 = vpop.f32.mrb[0].mxu0
        %1158 = vmatprep.mubr.bf16.mxu0 0
        %1159 = vmatmul.mubr.bf16.gmra.mrb[0].mxu0 %v1056
        %v1160 = vpop.f32.mrb[0].mxu0
        %v1161 = vadd.f32 0.0, %v1160
        %v1162 = vpop.f32.mrb[0].mxu0
        %v1163 = vpop.f32.mrb[0].mxu0
        %v1164 = vadd.f32 0.0, %v1163
        %v1165 = vpop.f32.mrb[0].mxu0
        %1166 = vmatprep.mubr.bf16.mxu0 0
        %1167 = vmatmul.mubr.bf16.gmra.mrb[0].mxu0 %v1057
        %v1168 = vpop.f32.mrb[0].mxu0
        %v1169 = vadd.f32 0.0, %v1168
        %v1170 = vpop.f32.mrb[0].mxu0
        %v1171 = vpop.f32.mrb[0].mxu0
        %v1172 = vadd.f32 0.0, %v1171
        %v1173 = vpop.f32.mrb[0].mxu0
        %1174 = vdwg.mxu0
        %v1175 = vadd.f32 %v1002, %v1145
        %v1176 = vadd.f32 %v1003, %v1148
        %v1177 = vadd.f32 %v1004, %v1153
        %v1178 = vadd.f32 %v1005, %v1156
        %v1179 = vadd.f32 %v1006, %v1161
        %v1180 = vadd.f32 %v1007, %v1164
        %v1181 = vadd.f32 %v1008, %v1169
        %v1182 = vadd.f32 %v1009, %v1172
        %v1183 = vld [vmem:[%s839] sm:$0xf]
        %v1184 = vld [vmem:[%s839 + $0x4] sm:$0x1]
        %v1185 = vld [vmem:[%s839 + $0x8] sm:$0xf]
        %v1186 = vld [vmem:[%s839 + $0xc] sm:$0x1]
        %v1187 = vld [vmem:[%s839 + $0x10] sm:$0xf]
        %v1188 = vld [vmem:[%s839 + $0x14] sm:$0x1]
        %v1189 = vld [vmem:[%s839 + $0x18] sm:$0xf]
        %v1190 = vld [vmem:[%s839 + $0x1c] sm:$0x1]
        %v1191 = vld [vmem:[%s839 + $0x20] sm:$0xf]
        %v1192 = vld [vmem:[%s839 + $0x24] sm:$0x1]
        %v1193 = vld [vmem:[%s839 + $0x28] sm:$0xf]
        %v1194 = vld [vmem:[%s839 + $0x2c] sm:$0x1]
        %v1195 = vld [vmem:[%s839 + $0x30] sm:$0xf]
        %v1196 = vld [vmem:[%s839 + $0x34] sm:$0x1]
        %v1197 = vld [vmem:[%s839 + $0x38] sm:$0xf]
        %v1198 = vld [vmem:[%s839 + $0x3c] sm:$0x1]
        %v1200 = vshrl.u32 %v1183, 16
        %v1202 = vrot.slane %v1200, 4
        %v1203 = vshll.u32 %v1183, 16
        %v1205 = vrot.slane %v1203, 5
        %v1206 = vor.u32 %v1202, %v1205
        %v1207 = vrot.slane %v1206, 4
        %v1209 = vshll.u32 %v1184, 16
        %v1211 = vrot.slane %v1209, 5
        %v1212 = vsel %vm570, %v1207, %v1211
        %v1214 = vshrl.u32 %v1185, 16
        %v1216 = vrot.slane %v1214, 4
        %v1217 = vshll.u32 %v1185, 16
        %v1219 = vrot.slane %v1217, 5
        %v1220 = vor.u32 %v1216, %v1219
        %v1221 = vrot.slane %v1220, 4
        %v1223 = vshll.u32 %v1186, 16
        %v1225 = vrot.slane %v1223, 5
        %v1226 = vsel %vm570, %v1221, %v1225
        %v1228 = vshrl.u32 %v1187, 16
        %v1230 = vrot.slane %v1228, 4
        %v1231 = vshll.u32 %v1187, 16
        %v1233 = vrot.slane %v1231, 5
        %v1234 = vor.u32 %v1230, %v1233
        %v1235 = vrot.slane %v1234, 4
        %v1237 = vshll.u32 %v1188, 16
        %v1239 = vrot.slane %v1237, 5
        %v1240 = vsel %vm570, %v1235, %v1239
        %v1242 = vshrl.u32 %v1189, 16
        %v1244 = vrot.slane %v1242, 4
        %v1245 = vshll.u32 %v1189, 16
        %v1247 = vrot.slane %v1245, 5
        %v1248 = vor.u32 %v1244, %v1247
        %v1249 = vrot.slane %v1248, 4
        %v1251 = vshll.u32 %v1190, 16
        %v1253 = vrot.slane %v1251, 5
        %v1254 = vsel %vm570, %v1249, %v1253
        %v1256 = vshrl.u32 %v1191, 16
        %v1258 = vrot.slane %v1256, 4
        %v1259 = vshll.u32 %v1191, 16
        %v1261 = vrot.slane %v1259, 5
        %v1262 = vor.u32 %v1258, %v1261
        %v1263 = vrot.slane %v1262, 4
        %v1265 = vshll.u32 %v1192, 16
        %v1267 = vrot.slane %v1265, 5
        %v1268 = vsel %vm570, %v1263, %v1267
        %v1270 = vshrl.u32 %v1193, 16
        %v1272 = vrot.slane %v1270, 4
        %v1273 = vshll.u32 %v1193, 16
        %v1275 = vrot.slane %v1273, 5
        %v1276 = vor.u32 %v1272, %v1275
        %v1277 = vrot.slane %v1276, 4
        %v1279 = vshll.u32 %v1194, 16
        %v1281 = vrot.slane %v1279, 5
        %v1282 = vsel %vm570, %v1277, %v1281
        %v1284 = vshrl.u32 %v1195, 16
        %v1286 = vrot.slane %v1284, 4
        %v1287 = vshll.u32 %v1195, 16
        %v1289 = vrot.slane %v1287, 5
        %v1290 = vor.u32 %v1286, %v1289
        %v1291 = vrot.slane %v1290, 4
        %v1293 = vshll.u32 %v1196, 16
        %v1295 = vrot.slane %v1293, 5
        %v1296 = vsel %vm570, %v1291, %v1295
        %v1298 = vshrl.u32 %v1197, 16
        %v1300 = vrot.slane %v1298, 4
        %v1301 = vshll.u32 %v1197, 16
        %v1303 = vrot.slane %v1301, 5
        %v1304 = vor.u32 %v1300, %v1303
        %v1305 = vrot.slane %v1304, 4
        %v1307 = vshll.u32 %v1198, 16
        %v1309 = vrot.slane %v1307, 5
        %v1310 = vsel %vm570, %v1305, %v1309
        %s1311 = scalar_lea.vmem [#allocation5], 320
        %v1312 = vld [vmem:[%s1311] sm:$0xf]
        %v1313 = vld [vmem:[%s1311 + $0x4] sm:$0xf]
        %v1314 = vld [vmem:[%s1311 + $0x8] sm:$0xf]
        %v1315 = vld [vmem:[%s1311 + $0xc] sm:$0xf]
        %v1316 = vld [vmem:[%s1311 + $0x10] sm:$0xf]
        %v1317 = vld [vmem:[%s1311 + $0x14] sm:$0xf]
        %v1318 = vld [vmem:[%s1311 + $0x18] sm:$0xf]
        %v1319 = vld [vmem:[%s1311 + $0x1c] sm:$0xf]
        %v1320 = vld [vmem:[%s1311 + $0x20] sm:$0xf]
        %v1321 = vld [vmem:[%s1311 + $0x24] sm:$0xf]
        %v1322 = vld [vmem:[%s1311 + $0x28] sm:$0xf]
        %v1323 = vld [vmem:[%s1311 + $0x2c] sm:$0xf]
        %v1324 = vld [vmem:[%s1311 + $0x30] sm:$0xf]
        %v1325 = vld [vmem:[%s1311 + $0x34] sm:$0xf]
        %v1326 = vld [vmem:[%s1311 + $0x38] sm:$0xf]
        %v1327 = vld [vmem:[%s1311 + $0x3c] sm:$0xf]
        %v1328 = vunpack.c.l.b16 %v1212
        %v1329 = vunpack.c.l.b16 %v1226
        %v1330 = vunpack.c.l.b16 %v1240
        %v1331 = vunpack.c.l.b16 %v1254
        %v1332 = vunpack.c.l.b16 %v1268
        %v1333 = vunpack.c.l.b16 %v1282
        %v1334 = vunpack.c.l.b16 %v1296
        %v1335 = vunpack.c.l.b16 %v1310
        %v1336 = vpack.c.b16 %v1329, %v1328
        %v1337 = vpack.c.b16 %v1331, %v1330
        %v1338 = vpack.c.b16 %v1333, %v1332
        %v1339 = vpack.c.b16 %v1335, %v1334
        %v1360 = vunpack.c.l.b16 %v1312
        %v1361 = vunpack.c.l.b16 %v1313
        %v1362 = vunpack.c.l.b16 %v1314
        %v1363 = vunpack.c.l.b16 %v1315
        %v1364 = vunpack.c.l.b16 %v1316
        %v1365 = vunpack.c.l.b16 %v1317
        %v1366 = vunpack.c.l.b16 %v1318
        %v1367 = vunpack.c.l.b16 %v1319
        %v1368 = vunpack.c.l.b16 %v1320
        %v1369 = vunpack.c.l.b16 %v1321
        %v1370 = vunpack.c.l.b16 %v1322
        %v1371 = vunpack.c.l.b16 %v1323
        %v1372 = vunpack.c.l.b16 %v1324
        %v1373 = vunpack.c.l.b16 %v1325
        %v1374 = vunpack.c.l.b16 %v1326
        %v1375 = vunpack.c.l.b16 %v1327
        %v1376 = vpack.c.b16 %v1361, %v1360
        %v1377 = vpack.c.b16 %v1363, %v1362
        %v1378 = vpack.c.b16 %v1365, %v1364
        %v1379 = vpack.c.b16 %v1367, %v1366
        %v1380 = vpack.c.b16 %v1369, %v1368
        %v1381 = vpack.c.b16 %v1371, %v1370
        %v1382 = vpack.c.b16 %v1373, %v1372
        %v1383 = vpack.c.b16 %v1375, %v1374
        %1392 = vmatprep.subr.bf16.mxu0 0
        %1393 = vmatpush1.bf16.msra.mxu0 %v1376
        %1394 = vmatprep.subr.bf16.mxu0 0
        %1395 = vmatpush1.bf16.msra.mxu0 %v1377
        %1396 = vmatprep.subr.bf16.mxu0 0
        %1397 = vmatpush1.bf16.msra.mxu0 %v1378
        %1398 = vmatprep.subr.bf16.mxu0 0
        %1399 = vmatpush1.bf16.msra.mxu0 %v1379
        %1400 = vmatprep.subr.bf16.mxu0 0
        %1401 = vmatpush1.bf16.msra.mxu0 %v1380
        %1402 = vmatprep.subr.bf16.mxu0 0
        %1403 = vmatpush1.bf16.msra.mxu0 %v1381
        %1404 = vmatprep.subr.bf16.mxu0 0
        %1405 = vmatpush1.bf16.msra.mxu0 %v1382
        %1406 = vmatprep.subr.bf16.mxu0 0
        %1407 = vmatpush1.bf16.msra.mxu0 %v1383
        %1408 = vmatprep.subr.bf16.mxu0 0
        %1409 = vmatpush1.bf16.msra.mxu0 0
        %1410 = vmatprep.subr.bf16.mxu0 0
        %1411 = vmatpush1.bf16.msra.mxu0 0
        %1412 = vmatprep.subr.bf16.mxu0 0
        %1413 = vmatpush1.bf16.msra.mxu0 0
        %1414 = vmatprep.subr.bf16.mxu0 0
        %1415 = vmatpush1.bf16.msra.mxu0 0
        %1416 = vmatprep.subr.bf16.mxu0 0
        %1417 = vmatpush1.bf16.msra.mxu0 0
        %1418 = vmatprep.subr.bf16.mxu0 0
        %1419 = vmatpush1.bf16.msra.mxu0 0
        %1420 = vmatprep.subr.bf16.mxu0 0
        %1421 = vmatpush1.bf16.msra.mxu0 0
        %1422 = vmatprep.subr.bf16.mxu0 0
        %1423 = vmatpush1.bf16.msra.mxu0 0
        %1424 = vmatprep.mubr.bf16.mxu0 0
        %1425 = vmatmul.mubr.bf16.gmra.mrb[0].mxu0 %v1336
        %v1426 = vpop.f32.mrb[0].mxu0
        %v1427 = vadd.f32 0.0, %v1426
        %v1428 = vpop.f32.mrb[0].mxu0
        %v1429 = vpop.f32.mrb[0].mxu0
        %v1430 = vadd.f32 0.0, %v1429
        %v1431 = vpop.f32.mrb[0].mxu0
        %1432 = vmatprep.mubr.bf16.mxu0 0
        %1433 = vmatmul.mubr.bf16.gmra.mrb[0].mxu0 %v1337
        %v1434 = vpop.f32.mrb[0].mxu0
        %v1435 = vadd.f32 0.0, %v1434
        %v1436 = vpop.f32.mrb[0].mxu0
        %v1437 = vpop.f32.mrb[0].mxu0
        %v1438 = vadd.f32 0.0, %v1437
        %v1439 = vpop.f32.mrb[0].mxu0
        %1440 = vmatprep.mubr.bf16.mxu0 0
        %1441 = vmatmul.mubr.bf16.gmra.mrb[0].mxu0 %v1338
        %v1442 = vpop.f32.mrb[0].mxu0
        %v1443 = vadd.f32 0.0, %v1442
        %v1444 = vpop.f32.mrb[0].mxu0
        %v1445 = vpop.f32.mrb[0].mxu0
        %v1446 = vadd.f32 0.0, %v1445
        %v1447 = vpop.f32.mrb[0].mxu0
        %1448 = vmatprep.mubr.bf16.mxu0 0
        %1449 = vmatmul.mubr.bf16.gmra.mrb[0].mxu0 %v1339
        %v1450 = vpop.f32.mrb[0].mxu0
        %v1451 = vadd.f32 0.0, %v1450
        %v1452 = vpop.f32.mrb[0].mxu0
        %v1453 = vpop.f32.mrb[0].mxu0
        %v1454 = vadd.f32 0.0, %v1453
        %v1455 = vpop.f32.mrb[0].mxu0
        %1456 = vdwg.mxu0
        %v1457 = vadd.f32 %v1175, %v1427
        %v1458 = vadd.f32 %v1176, %v1430
        %v1459 = vadd.f32 %v1177, %v1435
        %v1460 = vadd.f32 %v1178, %v1438
        %v1461 = vadd.f32 %v1179, %v1443
        %v1462 = vadd.f32 %v1180, %v1446
        %v1463 = vadd.f32 %v1181, %v1451
        %v1464 = vadd.f32 %v1182, %v1454
        %s1465 = sadd.s32 %s222, 1
        %s1466 = smul.u32 %s1465, 2
        %s1467 = smul.addr %s1466, 4
        %s1468 = scalar_lea.vmem %s192, %s1467 [#allocation2]
        %v1469 = vld [vmem:[%s1468] sm:$0xf]
        %v1470 = vld [vmem:[%s1468 + $0x8] sm:$0xf]
        %v1471 = vld [vmem:[%s1468 + $0x10] sm:$0xf]
        %v1472 = vld [vmem:[%s1468 + $0x18] sm:$0xf]
        %v1473 = vld [vmem:[%s1468 + $0x20] sm:$0xf]
        %v1474 = vld [vmem:[%s1468 + $0x28] sm:$0xf]
        %v1475 = vld [vmem:[%s1468 + $0x30] sm:$0xf]
        %v1476 = vld [vmem:[%s1468 + $0x38] sm:$0xf]
        %s1477 = scalar_lea.vmem [#allocation5], 384
        %v1478 = vld [vmem:[%s1477] sm:$0xf]
        %v1479 = vld [vmem:[%s1477 + $0x4] sm:$0xf]
        %v1480 = vld [vmem:[%s1477 + $0x8] sm:$0xf]
        %v1481 = vld [vmem:[%s1477 + $0xc] sm:$0xf]
        %v1482 = vld [vmem:[%s1477 + $0x10] sm:$0xf]
        %v1483 = vld [vmem:[%s1477 + $0x14] sm:$0xf]
        %v1484 = vld [vmem:[%s1477 + $0x18] sm:$0xf]
        %v1485 = vld [vmem:[%s1477 + $0x1c] sm:$0xf]
        %v1486 = vld [vmem:[%s1477 + $0x20] sm:$0xf]
        %v1487 = vld [vmem:[%s1477 + $0x24] sm:$0xf]
        %v1488 = vld [vmem:[%s1477 + $0x28] sm:$0xf]
        %v1489 = vld [vmem:[%s1477 + $0x2c] sm:$0xf]
        %v1490 = vld [vmem:[%s1477 + $0x30] sm:$0xf]
        %v1491 = vld [vmem:[%s1477 + $0x34] sm:$0xf]
        %v1492 = vld [vmem:[%s1477 + $0x38] sm:$0xf]
        %v1493 = vld [vmem:[%s1477 + $0x3c] sm:$0xf]
        %v1502 = vunpack.c.l.b16 %v1469
        %v1503 = vunpack.c.l.b16 %v1470
        %v1504 = vunpack.c.l.b16 %v1471
        %v1505 = vunpack.c.l.b16 %v1472
        %v1506 = vunpack.c.l.b16 %v1473
        %v1507 = vunpack.c.l.b16 %v1474
        %v1508 = vunpack.c.l.b16 %v1475
        %v1509 = vunpack.c.l.b16 %v1476
        %v1510 = vpack.c.b16 %v1503, %v1502
        %v1511 = vpack.c.b16 %v1505, %v1504
        %v1512 = vpack.c.b16 %v1507, %v1506
        %v1513 = vpack.c.b16 %v1509, %v1508
        %v1534 = vunpack.c.l.b16 %v1478
        %v1535 = vunpack.c.l.b16 %v1479
        %v1536 = vunpack.c.l.b16 %v1480
        %v1537 = vunpack.c.l.b16 %v1481
        %v1538 = vunpack.c.l.b16 %v1482
        %v1539 = vunpack.c.l.b16 %v1483
        %v1540 = vunpack.c.l.b16 %v1484
        %v1541 = vunpack.c.l.b16 %v1485
        %v1542 = vunpack.c.l.b16 %v1486
        %v1543 = vunpack.c.l.b16 %v1487
        %v1544 = vunpack.c.l.b16 %v1488
        %v1545 = vunpack.c.l.b16 %v1489
        %v1546 = vunpack.c.l.b16 %v1490
        %v1547 = vunpack.c.l.b16 %v1491
        %v1548 = vunpack.c.l.b16 %v1492
        %v1549 = vunpack.c.l.b16 %v1493
        %v1550 = vpack.c.b16 %v1535, %v1534
        %v1551 = vpack.c.b16 %v1537, %v1536
        %v1552 = vpack.c.b16 %v1539, %v1538
        %v1553 = vpack.c.b16 %v1541, %v1540
        %v1554 = vpack.c.b16 %v1543, %v1542
        %v1555 = vpack.c.b16 %v1545, %v1544
        %v1556 = vpack.c.b16 %v1547, %v1546
        %v1557 = vpack.c.b16 %v1549, %v1548
        %1566 = vmatprep.subr.bf16.mxu0 0
        %1567 = vmatpush1.bf16.msra.mxu0 %v1550
        %1568 = vmatprep.subr.bf16.mxu0 0
        %1569 = vmatpush1.bf16.msra.mxu0 %v1551
        %1570 = vmatprep.subr.bf16.mxu0 0
        %1571 = vmatpush1.bf16.msra.mxu0 %v1552
        %1572 = vmatprep.subr.bf16.mxu0 0
        %1573 = vmatpush1.bf16.msra.mxu0 %v1553
        %1574 = vmatprep.subr.bf16.mxu0 0
        %1575 = vmatpush1.bf16.msra.mxu0 %v1554
        %1576 = vmatprep.subr.bf16.mxu0 0
        %1577 = vmatpush1.bf16.msra.mxu0 %v1555
        %1578 = vmatprep.subr.bf16.mxu0 0
        %1579 = vmatpush1.bf16.msra.mxu0 %v1556
        %1580 = vmatprep.subr.bf16.mxu0 0
        %1581 = vmatpush1.bf16.msra.mxu0 %v1557
        %1582 = vmatprep.subr.bf16.mxu0 0
        %1583 = vmatpush1.bf16.msra.mxu0 0
        %1584 = vmatprep.subr.bf16.mxu0 0
        %1585 = vmatpush1.bf16.msra.mxu0 0
        %1586 = vmatprep.subr.bf16.mxu0 0
        %1587 = vmatpush1.bf16.msra.mxu0 0
        %1588 = vmatprep.subr.bf16.mxu0 0
        %1589 = vmatpush1.bf16.msra.mxu0 0
        %1590 = vmatprep.subr.bf16.mxu0 0
        %1591 = vmatpush1.bf16.msra.mxu0 0
        %1592 = vmatprep.subr.bf16.mxu0 0
        %1593 = vmatpush1.bf16.msra.mxu0 0
        %1594 = vmatprep.subr.bf16.mxu0 0
        %1595 = vmatpush1.bf16.msra.mxu0 0
        %1596 = vmatprep.subr.bf16.mxu0 0
        %1597 = vmatpush1.bf16.msra.mxu0 0
        %1598 = vmatprep.mubr.bf16.mxu0 0
        %1599 = vmatmul.mubr.bf16.gmra.mrb[0].mxu0 %v1510
        %v1600 = vpop.f32.mrb[0].mxu0
        %v1601 = vadd.f32 0.0, %v1600
        %v1602 = vpop.f32.mrb[0].mxu0
        %v1603 = vpop.f32.mrb[0].mxu0
        %v1604 = vadd.f32 0.0, %v1603
        %v1605 = vpop.f32.mrb[0].mxu0
        %1606 = vmatprep.mubr.bf16.mxu0 0
        %1607 = vmatmul.mubr.bf16.gmra.mrb[0].mxu0 %v1511
        %v1608 = vpop.f32.mrb[0].mxu0
        %v1609 = vadd.f32 0.0, %v1608
        %v1610 = vpop.f32.mrb[0].mxu0
        %v1611 = vpop.f32.mrb[0].mxu0
        %v1612 = vadd.f32 0.0, %v1611
        %v1613 = vpop.f32.mrb[0].mxu0
        %1614 = vmatprep.mubr.bf16.mxu0 0
        %1615 = vmatmul.mubr.bf16.gmra.mrb[0].mxu0 %v1512
        %v1616 = vpop.f32.mrb[0].mxu0
        %v1617 = vadd.f32 0.0, %v1616
        %v1618 = vpop.f32.mrb[0].mxu0
        %v1619 = vpop.f32.mrb[0].mxu0
        %v1620 = vadd.f32 0.0, %v1619
        %v1621 = vpop.f32.mrb[0].mxu0
        %1622 = vmatprep.mubr.bf16.mxu0 0
        %1623 = vmatmul.mubr.bf16.gmra.mrb[0].mxu0 %v1513
        %v1624 = vpop.f32.mrb[0].mxu0
        %v1625 = vadd.f32 0.0, %v1624
        %v1626 = vpop.f32.mrb[0].mxu0
        %v1627 = vpop.f32.mrb[0].mxu0
        %v1628 = vadd.f32 0.0, %v1627
        %v1629 = vpop.f32.mrb[0].mxu0
        %1630 = vdwg.mxu0
        %v1631 = vadd.f32 %v1457, %v1601
        %v1632 = vadd.f32 %v1458, %v1604
        %v1633 = vadd.f32 %v1459, %v1609
        %v1634 = vadd.f32 %v1460, %v1612
        %v1635 = vadd.f32 %v1461, %v1617
        %v1636 = vadd.f32 %v1462, %v1620
        %v1637 = vadd.f32 %v1463, %v1625
        %v1638 = vadd.f32 %v1464, %v1628
        %s1639 = sadd.s32 %s1466, 18
        %s1640 = smul.addr %s1639, 4
        %s1641 = scalar_lea.vmem %s192, %s1640 [#allocation2]
        %v1642 = vld [vmem:[%s1641] sm:$0xf]
        %v1643 = vld [vmem:[%s1641 + $0x8] sm:$0xf]
        %v1644 = vld [vmem:[%s1641 + $0x10] sm:$0xf]
        %v1645 = vld [vmem:[%s1641 + $0x18] sm:$0xf]
        %v1646 = vld [vmem:[%s1641 + $0x20] sm:$0xf]
        %v1647 = vld [vmem:[%s1641 + $0x28] sm:$0xf]
        %v1648 = vld [vmem:[%s1641 + $0x30] sm:$0xf]
        %v1649 = vld [vmem:[%s1641 + $0x38] sm:$0xf]
        %s1650 = scalar_lea.vmem [#allocation5], 448
        %v1651 = vld [vmem:[%s1650] sm:$0xf]
        %v1652 = vld [vmem:[%s1650 + $0x4] sm:$0xf]
        %v1653 = vld [vmem:[%s1650 + $0x8] sm:$0xf]
        %v1654 = vld [vmem:[%s1650 + $0xc] sm:$0xf]
        %v1655 = vld [vmem:[%s1650 + $0x10] sm:$0xf]
        %v1656 = vld [vmem:[%s1650 + $0x14] sm:$0xf]
        %v1657 = vld [vmem:[%s1650 + $0x18] sm:$0xf]
        %v1658 = vld [vmem:[%s1650 + $0x1c] sm:$0xf]
        %v1659 = vld [vmem:[%s1650 + $0x20] sm:$0xf]
        %v1660 = vld [vmem:[%s1650 + $0x24] sm:$0xf]
        %v1661 = vld [vmem:[%s1650 + $0x28] sm:$0xf]
        %v1662 = vld [vmem:[%s1650 + $0x2c] sm:$0xf]
        %v1663 = vld [vmem:[%s1650 + $0x30] sm:$0xf]
        %v1664 = vld [vmem:[%s1650 + $0x34] sm:$0xf]
        %v1665 = vld [vmem:[%s1650 + $0x38] sm:$0xf]
        %v1666 = vld [vmem:[%s1650 + $0x3c] sm:$0xf]
        %v1675 = vunpack.c.l.b16 %v1642
        %v1676 = vunpack.c.l.b16 %v1643
        %v1677 = vunpack.c.l.b16 %v1644
        %v1678 = vunpack.c.l.b16 %v1645
        %v1679 = vunpack.c.l.b16 %v1646
        %v1680 = vunpack.c.l.b16 %v1647
        %v1681 = vunpack.c.l.b16 %v1648
        %v1682 = vunpack.c.l.b16 %v1649
        %v1683 = vpack.c.b16 %v1676, %v1675
        %v1684 = vpack.c.b16 %v1678, %v1677
        %v1685 = vpack.c.b16 %v1680, %v1679
        %v1686 = vpack.c.b16 %v1682, %v1681
        %v1707 = vunpack.c.l.b16 %v1651
        %v1708 = vunpack.c.l.b16 %v1652
        %v1709 = vunpack.c.l.b16 %v1653
        %v1710 = vunpack.c.l.b16 %v1654
        %v1711 = vunpack.c.l.b16 %v1655
        %v1712 = vunpack.c.l.b16 %v1656
        %v1713 = vunpack.c.l.b16 %v1657
        %v1714 = vunpack.c.l.b16 %v1658
        %v1715 = vunpack.c.l.b16 %v1659
        %v1716 = vunpack.c.l.b16 %v1660
        %v1717 = vunpack.c.l.b16 %v1661
        %v1718 = vunpack.c.l.b16 %v1662
        %v1719 = vunpack.c.l.b16 %v1663
        %v1720 = vunpack.c.l.b16 %v1664
        %v1721 = vunpack.c.l.b16 %v1665
        %v1722 = vunpack.c.l.b16 %v1666
        %v1723 = vpack.c.b16 %v1708, %v1707
        %v1724 = vpack.c.b16 %v1710, %v1709
        %v1725 = vpack.c.b16 %v1712, %v1711
        %v1726 = vpack.c.b16 %v1714, %v1713
        %v1727 = vpack.c.b16 %v1716, %v1715
        %v1728 = vpack.c.b16 %v1718, %v1717
        %v1729 = vpack.c.b16 %v1720, %v1719
        %v1730 = vpack.c.b16 %v1722, %v1721
        %1739 = vmatprep.subr.bf16.mxu0 0
        %1740 = vmatpush1.bf16.msra.mxu0 %v1723
        %1741 = vmatprep.subr.bf16.mxu0 0
        %1742 = vmatpush1.bf16.msra.mxu0 %v1724
        %1743 = vmatprep.subr.bf16.mxu0 0
        %1744 = vmatpush1.bf16.msra.mxu0 %v1725
        %1745 = vmatprep.subr.bf16.mxu0 0
        %1746 = vmatpush1.bf16.msra.mxu0 %v1726
        %1747 = vmatprep.subr.bf16.mxu0 0
        %1748 = vmatpush1.bf16.msra.mxu0 %v1727
        %1749 = vmatprep.subr.bf16.mxu0 0
        %1750 = vmatpush1.bf16.msra.mxu0 %v1728
        %1751 = vmatprep.subr.bf16.mxu0 0
        %1752 = vmatpush1.bf16.msra.mxu0 %v1729
        %1753 = vmatprep.subr.bf16.mxu0 0
        %1754 = vmatpush1.bf16.msra.mxu0 %v1730
        %1755 = vmatprep.subr.bf16.mxu0 0
        %1756 = vmatpush1.bf16.msra.mxu0 0
        %1757 = vmatprep.subr.bf16.mxu0 0
        %1758 = vmatpush1.bf16.msra.mxu0 0
        %1759 = vmatprep.subr.bf16.mxu0 0
        %1760 = vmatpush1.bf16.msra.mxu0 0
        %1761 = vmatprep.subr.bf16.mxu0 0
        %1762 = vmatpush1.bf16.msra.mxu0 0
        %1763 = vmatprep.subr.bf16.mxu0 0
        %1764 = vmatpush1.bf16.msra.mxu0 0
        %1765 = vmatprep.subr.bf16.mxu0 0
        %1766 = vmatpush1.bf16.msra.mxu0 0
        %1767 = vmatprep.subr.bf16.mxu0 0
        %1768 = vmatpush1.bf16.msra.mxu0 0
        %1769 = vmatprep.subr.bf16.mxu0 0
        %1770 = vmatpush1.bf16.msra.mxu0 0
        %1771 = vmatprep.mubr.bf16.mxu0 0
        %1772 = vmatmul.mubr.bf16.gmra.mrb[0].mxu0 %v1683
        %v1773 = vpop.f32.mrb[0].mxu0
        %v1774 = vadd.f32 0.0, %v1773
        %v1775 = vpop.f32.mrb[0].mxu0
        %v1776 = vpop.f32.mrb[0].mxu0
        %v1777 = vadd.f32 0.0, %v1776
        %v1778 = vpop.f32.mrb[0].mxu0
        %1779 = vmatprep.mubr.bf16.mxu0 0
        %1780 = vmatmul.mubr.bf16.gmra.mrb[0].mxu0 %v1684
        %v1781 = vpop.f32.mrb[0].mxu0
        %v1782 = vadd.f32 0.0, %v1781
        %v1783 = vpop.f32.mrb[0].mxu0
        %v1784 = vpop.f32.mrb[0].mxu0
        %v1785 = vadd.f32 0.0, %v1784
        %v1786 = vpop.f32.mrb[0].mxu0
        %1787 = vmatprep.mubr.bf16.mxu0 0
        %1788 = vmatmul.mubr.bf16.gmra.mrb[0].mxu0 %v1685
        %v1789 = vpop.f32.mrb[0].mxu0
        %v1790 = vadd.f32 0.0, %v1789
        %v1791 = vpop.f32.mrb[0].mxu0
        %v1792 = vpop.f32.mrb[0].mxu0
        %v1793 = vadd.f32 0.0, %v1792
        %v1794 = vpop.f32.mrb[0].mxu0
        %1795 = vmatprep.mubr.bf16.mxu0 0
        %1796 = vmatmul.mubr.bf16.gmra.mrb[0].mxu0 %v1686
        %v1797 = vpop.f32.mrb[0].mxu0
        %v1798 = vadd.f32 0.0, %v1797
        %v1799 = vpop.f32.mrb[0].mxu0
        %v1800 = vpop.f32.mrb[0].mxu0
        %v1801 = vadd.f32 0.0, %v1800
        %v1802 = vpop.f32.mrb[0].mxu0
        %1803 = vdwg.mxu0
        %v1804 = vadd.f32 %v1631, %v1774
        %v1805 = vadd.f32 %v1632, %v1777
        %v1806 = vadd.f32 %v1633, %v1782
        %v1807 = vadd.f32 %v1634, %v1785
        %v1808 = vadd.f32 %v1635, %v1790
        %v1809 = vadd.f32 %v1636, %v1793
        %v1810 = vadd.f32 %v1637, %v1798
        %v1811 = vadd.f32 %v1638, %v1801
        %v1812 = vld [vmem:[%s1468] sm:$0xf]
        %v1813 = vld [vmem:[%s1468 + $0x4] sm:$0x1]
        %v1814 = vld [vmem:[%s1468 + $0x8] sm:$0xf]
        %v1815 = vld [vmem:[%s1468 + $0xc] sm:$0x1]
        %v1816 = vld [vmem:[%s1468 + $0x10] sm:$0xf]
        %v1817 = vld [vmem:[%s1468 + $0x14] sm:$0x1]
        %v1818 = vld [vmem:[%s1468 + $0x18] sm:$0xf]
        %v1819 = vld [vmem:[%s1468 + $0x1c] sm:$0x1]
        %v1820 = vld [vmem:[%s1468 + $0x20] sm:$0xf]
        %v1821 = vld [vmem:[%s1468 + $0x24] sm:$0x1]
        %v1822 = vld [vmem:[%s1468 + $0x28] sm:$0xf]
        %v1823 = vld [vmem:[%s1468 + $0x2c] sm:$0x1]
        %v1824 = vld [vmem:[%s1468 + $0x30] sm:$0xf]
        %v1825 = vld [vmem:[%s1468 + $0x34] sm:$0x1]
        %v1826 = vld [vmem:[%s1468 + $0x38] sm:$0xf]
        %v1827 = vld [vmem:[%s1468 + $0x3c] sm:$0x1]
        %v1829 = vshrl.u32 %v1812, 16
        %v1831 = vrot.slane %v1829, 4
        %v1832 = vshll.u32 %v1812, 16
        %v1834 = vrot.slane %v1832, 5
        %v1835 = vor.u32 %v1831, %v1834
        %v1836 = vrot.slane %v1835, 4
        %v1838 = vshll.u32 %v1813, 16
        %v1840 = vrot.slane %v1838, 5
        %v1841 = vsel %vm570, %v1836, %v1840
        %v1843 = vshrl.u32 %v1814, 16
        %v1845 = vrot.slane %v1843, 4
        %v1846 = vshll.u32 %v1814, 16
        %v1848 = vrot.slane %v1846, 5
        %v1849 = vor.u32 %v1845, %v1848
        %v1850 = vrot.slane %v1849, 4
        %v1852 = vshll.u32 %v1815, 16
        %v1854 = vrot.slane %v1852, 5
        %v1855 = vsel %vm570, %v1850, %v1854
        %v1857 = vshrl.u32 %v1816, 16
        %v1859 = vrot.slane %v1857, 4
        %v1860 = vshll.u32 %v1816, 16
        %v1862 = vrot.slane %v1860, 5
        %v1863 = vor.u32 %v1859, %v1862
        %v1864 = vrot.slane %v1863, 4
        %v1866 = vshll.u32 %v1817, 16
        %v1868 = vrot.slane %v1866, 5
        %v1869 = vsel %vm570, %v1864, %v1868
        %v1871 = vshrl.u32 %v1818, 16
        %v1873 = vrot.slane %v1871, 4
        %v1874 = vshll.u32 %v1818, 16
        %v1876 = vrot.slane %v1874, 5
        %v1877 = vor.u32 %v1873, %v1876
        %v1878 = vrot.slane %v1877, 4
        %v1880 = vshll.u32 %v1819, 16
        %v1882 = vrot.slane %v1880, 5
        %v1883 = vsel %vm570, %v1878, %v1882
        %v1885 = vshrl.u32 %v1820, 16
        %v1887 = vrot.slane %v1885, 4
        %v1888 = vshll.u32 %v1820, 16
        %v1890 = vrot.slane %v1888, 5
        %v1891 = vor.u32 %v1887, %v1890
        %v1892 = vrot.slane %v1891, 4
        %v1894 = vshll.u32 %v1821, 16
        %v1896 = vrot.slane %v1894, 5
        %v1897 = vsel %vm570, %v1892, %v1896
        %v1899 = vshrl.u32 %v1822, 16
        %v1901 = vrot.slane %v1899, 4
        %v1902 = vshll.u32 %v1822, 16
        %v1904 = vrot.slane %v1902, 5
        %v1905 = vor.u32 %v1901, %v1904
        %v1906 = vrot.slane %v1905, 4
        %v1908 = vshll.u32 %v1823, 16
        %v1910 = vrot.slane %v1908, 5
        %v1911 = vsel %vm570, %v1906, %v1910
        %v1913 = vshrl.u32 %v1824, 16
        %v1915 = vrot.slane %v1913, 4
        %v1916 = vshll.u32 %v1824, 16
        %v1918 = vrot.slane %v1916, 5
        %v1919 = vor.u32 %v1915, %v1918
        %v1920 = vrot.slane %v1919, 4
        %v1922 = vshll.u32 %v1825, 16
        %v1924 = vrot.slane %v1922, 5
        %v1925 = vsel %vm570, %v1920, %v1924
        %v1927 = vshrl.u32 %v1826, 16
        %v1929 = vrot.slane %v1927, 4
        %v1930 = vshll.u32 %v1826, 16
        %v1932 = vrot.slane %v1930, 5
        %v1933 = vor.u32 %v1929, %v1932
        %v1934 = vrot.slane %v1933, 4
        %v1936 = vshll.u32 %v1827, 16
        %v1938 = vrot.slane %v1936, 5
        %v1939 = vsel %vm570, %v1934, %v1938
        %s1940 = scalar_lea.vmem [#allocation5], 512
        %v1941 = vld [vmem:[%s1940] sm:$0xf]
        %v1942 = vld [vmem:[%s1940 + $0x4] sm:$0xf]
        %v1943 = vld [vmem:[%s1940 + $0x8] sm:$0xf]
        %v1944 = vld [vmem:[%s1940 + $0xc] sm:$0xf]
        %v1945 = vld [vmem:[%s1940 + $0x10] sm:$0xf]
        %v1946 = vld [vmem:[%s1940 + $0x14] sm:$0xf]
        %v1947 = vld [vmem:[%s1940 + $0x18] sm:$0xf]
        %v1948 = vld [vmem:[%s1940 + $0x1c] sm:$0xf]
        %v1949 = vld [vmem:[%s1940 + $0x20] sm:$0xf]
        %v1950 = vld [vmem:[%s1940 + $0x24] sm:$0xf]
        %v1951 = vld [vmem:[%s1940 + $0x28] sm:$0xf]
        %v1952 = vld [vmem:[%s1940 + $0x2c] sm:$0xf]
        %v1953 = vld [vmem:[%s1940 + $0x30] sm:$0xf]
        %v1954 = vld [vmem:[%s1940 + $0x34] sm:$0xf]
        %v1955 = vld [vmem:[%s1940 + $0x38] sm:$0xf]
        %v1956 = vld [vmem:[%s1940 + $0x3c] sm:$0xf]
        %v1957 = vunpack.c.l.b16 %v1841
        %v1958 = vunpack.c.l.b16 %v1855
        %v1959 = vunpack.c.l.b16 %v1869
        %v1960 = vunpack.c.l.b16 %v1883
        %v1961 = vunpack.c.l.b16 %v1897
        %v1962 = vunpack.c.l.b16 %v1911
        %v1963 = vunpack.c.l.b16 %v1925
        %v1964 = vunpack.c.l.b16 %v1939
        %v1965 = vpack.c.b16 %v1958, %v1957
        %v1966 = vpack.c.b16 %v1960, %v1959
        %v1967 = vpack.c.b16 %v1962, %v1961
        %v1968 = vpack.c.b16 %v1964, %v1963
        %v1989 = vunpack.c.l.b16 %v1941
        %v1990 = vunpack.c.l.b16 %v1942
        %v1991 = vunpack.c.l.b16 %v1943
        %v1992 = vunpack.c.l.b16 %v1944
        %v1993 = vunpack.c.l.b16 %v1945
        %v1994 = vunpack.c.l.b16 %v1946
        %v1995 = vunpack.c.l.b16 %v1947
        %v1996 = vunpack.c.l.b16 %v1948
        %v1997 = vunpack.c.l.b16 %v1949
        %v1998 = vunpack.c.l.b16 %v1950
        %v1999 = vunpack.c.l.b16 %v1951
        %v2000 = vunpack.c.l.b16 %v1952
        %v2001 = vunpack.c.l.b16 %v1953
        %v2002 = vunpack.c.l.b16 %v1954
        %v2003 = vunpack.c.l.b16 %v1955
        %v2004 = vunpack.c.l.b16 %v1956
        %v2005 = vpack.c.b16 %v1990, %v1989
        %v2006 = vpack.c.b16 %v1992, %v1991
        %v2007 = vpack.c.b16 %v1994, %v1993
        %v2008 = vpack.c.b16 %v1996, %v1995
        %v2009 = vpack.c.b16 %v1998, %v1997
        %v2010 = vpack.c.b16 %v2000, %v1999
        %v2011 = vpack.c.b16 %v2002, %v2001
        %v2012 = vpack.c.b16 %v2004, %v2003
        %2021 = vmatprep.subr.bf16.mxu0 0
        %2022 = vmatpush1.bf16.msra.mxu0 %v2005
        %2023 = vmatprep.subr.bf16.mxu0 0
        %2024 = vmatpush1.bf16.msra.mxu0 %v2006
        %2025 = vmatprep.subr.bf16.mxu0 0
        %2026 = vmatpush1.bf16.msra.mxu0 %v2007
        %2027 = vmatprep.subr.bf16.mxu0 0
        %2028 = vmatpush1.bf16.msra.mxu0 %v2008
        %2029 = vmatprep.subr.bf16.mxu0 0
        %2030 = vmatpush1.bf16.msra.mxu0 %v2009
        %2031 = vmatprep.subr.bf16.mxu0 0
        %2032 = vmatpush1.bf16.msra.mxu0 %v2010
        %2033 = vmatprep.subr.bf16.mxu0 0
        %2034 = vmatpush1.bf16.msra.mxu0 %v2011
        %2035 = vmatprep.subr.bf16.mxu0 0
        %2036 = vmatpush1.bf16.msra.mxu0 %v2012
        %2037 = vmatprep.subr.bf16.mxu0 0
        %2038 = vmatpush1.bf16.msra.mxu0 0
        %2039 = vmatprep.subr.bf16.mxu0 0
        %2040 = vmatpush1.bf16.msra.mxu0 0
        %2041 = vmatprep.subr.bf16.mxu0 0
        %2042 = vmatpush1.bf16.msra.mxu0 0
        %2043 = vmatprep.subr.bf16.mxu0 0
        %2044 = vmatpush1.bf16.msra.mxu0 0
        %2045 = vmatprep.subr.bf16.mxu0 0
        %2046 = vmatpush1.bf16.msra.mxu0 0
        %2047 = vmatprep.subr.bf16.mxu0 0
        %2048 = vmatpush1.bf16.msra.mxu0 0
        %2049 = vmatprep.subr.bf16.mxu0 0
        %2050 = vmatpush1.bf16.msra.mxu0 0
        %2051 = vmatprep.subr.bf16.mxu0 0
        %2052 = vmatpush1.bf16.msra.mxu0 0
        %2053 = vmatprep.mubr.bf16.mxu0 0
        %2054 = vmatmul.mubr.bf16.gmra.mrb[0].mxu0 %v1965
        %v2055 = vpop.f32.mrb[0].mxu0
        %v2056 = vadd.f32 0.0, %v2055
        %v2057 = vpop.f32.mrb[0].mxu0
        %v2058 = vpop.f32.mrb[0].mxu0
        %v2059 = vadd.f32 0.0, %v2058
        %v2060 = vpop.f32.mrb[0].mxu0
        %2061 = vmatprep.mubr.bf16.mxu0 0
        %2062 = vmatmul.mubr.bf16.gmra.mrb[0].mxu0 %v1966
        %v2063 = vpop.f32.mrb[0].mxu0
        %v2064 = vadd.f32 0.0, %v2063
        %v2065 = vpop.f32.mrb[0].mxu0
        %v2066 = vpop.f32.mrb[0].mxu0
        %v2067 = vadd.f32 0.0, %v2066
        %v2068 = vpop.f32.mrb[0].mxu0
        %2069 = vmatprep.mubr.bf16.mxu0 0
        %2070 = vmatmul.mubr.bf16.gmra.mrb[0].mxu0 %v1967
        %v2071 = vpop.f32.mrb[0].mxu0
        %v2072 = vadd.f32 0.0, %v2071
        %v2073 = vpop.f32.mrb[0].mxu0
        %v2074 = vpop.f32.mrb[0].mxu0
        %v2075 = vadd.f32 0.0, %v2074
        %v2076 = vpop.f32.mrb[0].mxu0
        %2077 = vmatprep.mubr.bf16.mxu0 0
        %2078 = vmatmul.mubr.bf16.gmra.mrb[0].mxu0 %v1968
        %v2079 = vpop.f32.mrb[0].mxu0
        %v2080 = vadd.f32 0.0, %v2079
        %v2081 = vpop.f32.mrb[0].mxu0
        %v2082 = vpop.f32.mrb[0].mxu0
        %v2083 = vadd.f32 0.0, %v2082
        %v2084 = vpop.f32.mrb[0].mxu0
        %2085 = vdwg.mxu0
        %v2086 = vadd.f32 %v1804, %v2056
        %v2087 = vadd.f32 %v1805, %v2059
        %v2088 = vadd.f32 %v1806, %v2064
        %v2089 = vadd.f32 %v1807, %v2067
        %v2090 = vadd.f32 %v1808, %v2072
        %v2091 = vadd.f32 %v1809, %v2075
        %v2092 = vadd.f32 %v1810, %v2080
        %v2093 = vadd.f32 %v1811, %v2083
        %v2094 = vld [vmem:[%s2] sm:$0x1]
        %v2096 = vlaneseq
        %v2097 = vshrl.u32 %v2096, 7
        %v2098 = vsub.s32 0, %v2097
        %v2099 = vrot.slane %v2094, %v2098
        %v2101 = vadd.f32 %v2086, %v2099
        %v2102 = vadd.f32 %v2087, %v2099
        %v2103 = vadd.f32 %v2088, %v2099
        %v2104 = vadd.f32 %v2089, %v2099
        %v2105 = vadd.f32 %v2090, %v2099
        %v2106 = vadd.f32 %v2091, %v2099
        %v2107 = vadd.f32 %v2092, %v2099
        %v2108 = vadd.f32 %v2093, %v2099
        %2109 = vst [vmem:[%s218] sm:$0xff] %v2101
        %2110 = vst [vmem:[%s218 + $0x8] sm:$0xff] %v2102
        %2111 = vst [vmem:[%s218 + $0x10] sm:$0xff] %v2103
        %2112 = vst [vmem:[%s218 + $0x18] sm:$0xff] %v2104
        %2113 = vst [vmem:[%s218 + $0x20] sm:$0xff] %v2105
        %2114 = vst [vmem:[%s218 + $0x28] sm:$0xff] %v2106
        %2115 = vst [vmem:[%s218 + $0x30] sm:$0xff] %v2107
        %2116 = vst [vmem:[%s218 + $0x38] sm:$0xff] %v2108
        %s2117 = sand.u32 %s111, 1
        %s2118 = scalar_lea.sflag [#allocation4], %s2117
        %s2119 = sand.u32 %s111, 1
        %s2120 = smul.addr %s2119, 64
        %s2121 = scalar_lea.vmem [#allocation7], %s2120
        // Predicated region
        $region41: #{tpu_custom_call.1} parent=31 // pred_check
          %p2122 = pneg %p121
        $region42: #{tpu_custom_call.1} parent=31 // pred_check_branch
          %2124 = sbr.rel (%p2122) target = $region44
        $region43: #{tpu_custom_call.1} parent=31 // pred_region
          %s2125 = smul.u32 8, %s26
          %s2127 = ssub.s32 1024, 1024
          %2128 = vsyncadd %s2118, %s2127
          %s2129 = smul.addr %s25, 8
          %s2130 = sadd.s32 %s2125, %s2129
          %s2131 = smul.addr %s2130, 128
          %s2132 = scalar_lea.hbm %s3, %s2131
          %s2133 = sshll.u32 %s2121, 4
          %s2134 = int_to_ptr.vmem [resolvable:$true] %s2133
          %2139 = dma.vmem_to_hbm [thread:$0]  %s2134, 1024, %s2132, %s2118, 128, 128, 8
        $region44: #{tpu_custom_call.1} parent=31 // pred_fallthru
          _
      $region32: #{tpu_custom_call.1} parent=5 // pred_fallthru
        _
      %p2140 = scmp.le.s32.totalorder 2, %s16
      // Predicated region
      $region45: #{tpu_custom_call.1} parent=5 // pred_check
        %p2141 = pneg %p2140
      $region46: #{tpu_custom_call.1} parent=5 // pred_check_branch
        %2143 = sbr.rel (%p2141) target = $region48
      $region47: #{tpu_custom_call.1} parent=5 // pred_region
        %s2144 = ssub.s32 %s16, 2
        // Predicated region
        $region49: #{tpu_custom_call.1} parent=47 // pred_check
          %p2145 = pneg %p127
        $region50: #{tpu_custom_call.1} parent=47 // pred_check_branch
          %2147 = sbr.rel (%p2145) target = $region52
        $region51: #{tpu_custom_call.1} parent=47 // pred_region
          %s2148 = sand.u32 %s112, 1
          %s2149 = scalar_lea.sflag [#allocation4], %s2148
          %s2150 = sand.u32 %s112, 1
          %s2151 = smul.addr %s2150, 64
          %s2152 = scalar_lea.vmem [#allocation7], %s2151
          %2153 = dma.done %s2149, 1024
        $region52: #{tpu_custom_call.1} parent=47 // pred_fallthru
          _
      $region48: #{tpu_custom_call.1} parent=5 // pred_fallthru
        _
    $region6: #{tpu_custom_call.1} parent=1 // loop_footer
      %s20 = sadd.s32 1, %s16
    $region7: #{tpu_custom_call.1} parent=1 // loop_footer_branch
      %15 = sbr.rel target = $region3
    $region8: #{tpu_custom_call.1} parent=1 // loop_exit
      _
    %2154 = vsyncpa [#allocation3], 1
    %s2155 = scalar_lea.sflag [#allocation3], 1
    %2156 = vsyncpa %s2155, 1
    %2157 = vsyncpa [#allocation6], 1
    %2158 = vsyncpa [#allocation4], 1
    %s2159 = scalar_lea.sflag [#allocation4], 1
    %2160 = vsyncpa %s2159, 1

// kernel: tpu_custom_call.1
$region0: #{tpu_custom_call.1}
  #allocation0 [shape = 'u32[]', space=smem, size = 0x4, offset = 0x4, fixed_abs, tag = 'smem constant byte address 0x4 - core index']
  #allocation1 [shape = 'u32[144,128]{1,0:T(1,128)}', space=vmem, size = 0x12000, scoped, tag = 'internal scratch']
  %s0 = inlined_call_operand.hbm [shape: bf16[8,9,16,128], index: 0, kind: input, shape index: {}]
  %s1 = inlined_call_operand.hbm [shape: bf16[9,128,128], index: 1, kind: input, shape index: {}]
  %s2 = inlined_call_operand.vmem [shape: f32[1,128], index: 2, kind: input, shape index: {}]
  %s3 = inlined_call_operand.hbm [shape: f32[2,8,8,128], index: 3, kind: output, shape index: {}]
  %s4 = sld [smem:[#allocation0]]
  $region53: #{tpu_custom_call.1} parent=0
    _
  %s6 = ssub.s32 1, %s4
  %s7 = scalar_select 0, %s6, %s4
  $region1: #{tpu_custom_call.1} parent=0
    #allocation2 [shape = 'u8[294912]{0}', space=vmem, size = 0x48000, scoped, tag = 'input window, operand 0']
    #allocation3 [shape = 's32[2]{0}', space=sflag, size = 0x8, scoped, tag = 'scoped memory for tpu_custom_call.1']
    #allocation4 [shape = 's32[2]{0}', space=sflag, size = 0x8, scoped, tag = 'scoped memory for tpu_custom_call.1']
    #allocation5 [shape = 'u8[294912]{0}', space=vmem, size = 0x48000, scoped, tag = 'input window, operand 1, single buffered']
    #allocation6 [shape = 's32[1]{0}', space=sflag, size = 0x4, scoped, tag = 'scoped memory for tpu_custom_call.1']
    #allocation7 [shape = 'u8[65536]{0}', space=vmem, size = 0x10000, scoped, tag = 'output window, operand 0']
    %8 = vsyncpa [#allocation3], 0
    %s9 = scalar_lea.sflag [#allocation3], 1
    %10 = vsyncpa %s9, 0
    %11 = vsyncpa [#allocation6], 0
    %12 = vsyncpa [#allocation4], 0
    %s13 = scalar_lea.sflag [#allocation4], 1
    %14 = vsyncpa %s13, 0
    loop: start=0, step=1, limit=4
    $region2: #{tpu_custom_call.1} parent=1 // loop_pre_header
      _
    $region3: #{tpu_custom_call.1} parent=1 // loop_header
      %s16 = sphi 0, %s20
      %p17 = scmp.ge.s32.totalorder %s16, 4
      %s23 = sphi 0, %s35
      %s24 = sphi 0, %s31
      %s25 = sphi 0, %s23
      %s26 = sphi 0, %s24
      %s27 = sphi 0, %s25
      %s28 = sphi 0, %s26
      %s38 = sphi 0, %s40
      %s41 = sphi 0, %s38
      %s42 = sphi 0, %s41
      %s58 = sphi 0, %s42
      %s62 = sphi 0, %s62
      %s64 = sphi 0, %s62
      %s65 = sphi 0, %s64
      %s79 = sphi 0, %s65
      %s83 = sphi 0, %s83
      %s85 = sphi 0, %s83
      %s86 = sphi 0, %s85
      %s100 = sphi 0, %s86
      %s108 = sphi 0, %s110
      %s111 = sphi 0, %s108
      %s112 = sphi 0, %s111
      %s128 = sphi 0, %s112
    $region4: #{tpu_custom_call.1} parent=1 // loop_header_branch
      %19 = sbr.rel (%p17) target = $region8
    $region5: #{tpu_custom_call.1} parent=1 // loop_body
      %s21 = ssub.s32 %s16, 1
      %s22 = ssub.s32 %s16, 2
      %s29 = sadd.s32 1, %s24
      %p30 = scmp.ge.s32.totalorder %s29, 1
      %s31 = scalar_select %p30, 0, %s29
      %s32 = sadd.s32 1, %s23
      %s33 = scalar_select %p30, %s32, %s23
      %p34 = scmp.ge.s32.totalorder %s33, 2
      %s35 = scalar_select %p34, 0, %s33
      %s36 = ssub.s32 %s23, %s35
      %p37 = scmp.eq.s32.totalorder %s36, 0
      %s39 = sadd.s32 %s38, 1
      %s40 = scalar_select %p37, %s38, %s39
      %p43 = pneg %p37
      %p44 = scmp.eq.s32.totalorder %s16, 1
      %p45 = por %p43, %p44
      %p46 = scmp.ne.s32.totalorder %s38, %s41
      %p47 = scmp.eq.s32.totalorder %s16, 0
      %p48 = por %p46, %p47
      %p49 = scmp.ne.s32.totalorder %s38, %s41
      %p50 = scmp.eq.s32.totalorder %s21, 1
      %p51 = por %p49, %p50
      %p52 = scmp.ne.s32.totalorder %s41, %s42
      %p53 = scmp.eq.s32.totalorder %s21, 0
      %p54 = por %p52, %p53
      %p55 = scmp.ne.s32.totalorder %s41, %s42
      %p56 = scmp.eq.s32.totalorder %s22, 1
      %p57 = por %p55, %p56
      %p59 = scmp.ne.s32.totalorder %s42, %s58
      %p60 = scmp.eq.s32.totalorder %s22, 0
      %p61 = por %p59, %p60
      %s63 = sadd.s32 %s62, 1
      %p66 = scmp.eq.s32.totalorder %s16, 1
      %p67 = scmp.ne.s32.totalorder %s62, %s64
      %p68 = scmp.eq.s32.totalorder %s16, 0
      %p69 = por %p67, %p68
      %p70 = scmp.ne.s32.totalorder %s62, %s64
      %p71 = scmp.eq.s32.totalorder %s21, 1
      %p72 = por %p70, %p71
      %p73 = scmp.ne.s32.totalorder %s64, %s65
      %p74 = scmp.eq.s32.totalorder %s21, 0
      %p75 = por %p73, %p74
      %p76 = scmp.ne.s32.totalorder %s64, %s65
      %p77 = scmp.eq.s32.totalorder %s22, 1
      %p78 = por %p76, %p77
      %p80 = scmp.ne.s32.totalorder %s65, %s79
      %p81 = scmp.eq.s32.totalorder %s22, 0
      %p82 = por %p80, %p81
      %s84 = sadd.s32 %s83, 1
      %p87 = scmp.eq.s32.totalorder %s16, 1
      %p88 = scmp.ne.s32.totalorder %s83, %s85
      %p89 = scmp.eq.s32.totalorder %s16, 0
      %p90 = por %p88, %p89
      %p91 = scmp.ne.s32.totalorder %s83, %s85
      %p92 = scmp.eq.s32.totalorder %s21, 1
      %p93 = por %p91, %p92
      %p94 = scmp.ne.s32.totalorder %s85, %s86
      %p95 = scmp.eq.s32.totalorder %s21, 0
      %p96 = por %p94, %p95
      %p97 = scmp.ne.s32.totalorder %s85, %s86
      %p98 = scmp.eq.s32.totalorder %s22, 1
      %p99 = por %p97, %p98
      %p101 = scmp.ne.s32.totalorder %s86, %s100
      %p102 = scmp.eq.s32.totalorder %s22, 0
      %p103 = por %p101, %p102
      %s104 = ssub.s32 %s23, %s35
      %s105 = ssub.s32 %s24, %s31
      %s106 = sor.u32 %s104, %s105
      %p107 = scmp.eq.s32.totalorder %s106, 0
      %s109 = sadd.s32 %s108, 1
      %s110 = scalar_select %p107, %s108, %s109
      %p113 = pneg %p107
      %p114 = scmp.eq.s32.totalorder %s16, 1
      %p115 = por %p113, %p114
      %p116 = scmp.ne.s32.totalorder %s108, %s111
      %p117 = scmp.eq.s32.totalorder %s16, 0
      %p118 = por %p116, %p117
      %p119 = scmp.ne.s32.totalorder %s108, %s111
      %p120 = scmp.eq.s32.totalorder %s21, 1
      %p121 = por %p119, %p120
      %p122 = scmp.ne.s32.totalorder %s111, %s112
      %p123 = scmp.eq.s32.totalorder %s21, 0
      %p124 = por %p122, %p123
      %p125 = scmp.ne.s32.totalorder %s111, %s112
      %p126 = scmp.eq.s32.totalorder %s22, 1
      %p127 = por %p125, %p126
      %p129 = scmp.ne.s32.totalorder %s112, %s128
      %p130 = scmp.eq.s32.totalorder %s22, 0
      %p131 = por %p129, %p130
      %p132 = scmp.le.s32.totalorder 1, %s16
      %p133 = scmp.lt.s32.totalorder %s16, 3
      %p134 = pnand %p132, %p133
      %p135 = pneg %p134
      // Predicated region
      $region9: #{tpu_custom_call.1} parent=5 // pred_check
        _
      $region10: #{tpu_custom_call.1} parent=5 // pred_check_branch
        %137 = sbr.rel (%p134) target = $region12
      $region11: #{tpu_custom_call.1} parent=5 // pred_region
        %s138 = ssub.s32 %s16, 1
        // Predicated region
        $region13: #{tpu_custom_call.1} parent=11 // pred_check
          %p139 = pneg %p75
        $region14: #{tpu_custom_call.1} parent=11 // pred_check_branch
          %141 = sbr.rel (%p139) target = $region16
        $region15: #{tpu_custom_call.1} parent=11 // pred_region
          %s143 = ssub.s32 9216, 9216
          %144 = vsyncadd [#allocation6], %s143
          %s145 = sshll.u32 [#allocation5], 4
          %s146 = int_to_ptr.vmem [resolvable:$true] %s145
          %151 = dma.hbm_to_vmem [thread:$0]  %s1, 9216, %s146, [#allocation6], 64, 64, 4
        $region16: #{tpu_custom_call.1} parent=11 // pred_fallthru
          _
        // Predicated region
        $region17: #{tpu_custom_call.1} parent=11 // pred_check
          %p152 = pneg %p96
        $region18: #{tpu_custom_call.1} parent=11 // pred_check_branch
          %154 = sbr.rel (%p152) target = $region20
        $region19: #{tpu_custom_call.1} parent=11 // pred_region
          _
        $region20: #{tpu_custom_call.1} parent=11 // pred_fallthru
          _
      $region12: #{tpu_custom_call.1} parent=5 // pred_fallthru
        _
      %p155 = scmp.lt.s32.totalorder %s16, 2
      // Predicated region
      $region21: #{tpu_custom_call.1} parent=5 // pred_check
        %p156 = pneg %p155
      $region22: #{tpu_custom_call.1} parent=5 // pred_check_branch
        %158 = sbr.rel (%p156) target = $region24
      $region23: #{tpu_custom_call.1} parent=5 // pred_region
        // Predicated region
        $region25: #{tpu_custom_call.1} parent=23 // pred_check
          %p159 = pneg %p48
        $region26: #{tpu_custom_call.1} parent=23 // pred_check_branch
          %161 = sbr.rel (%p159) target = $region28
        $region27: #{tpu_custom_call.1} parent=23 // pred_region
          %s162 = sand.u32 %s38, 1
          %s163 = scalar_lea.sflag [#allocation3], %s162
          %s164 = sand.u32 %s38, 1
          %s165 = smul.addr %s164, 288
          %s166 = scalar_lea.vmem [#allocation2], %s165
          %s167 = smul.u32 4, %s23
          %s169 = ssub.s32 4608, 4608
          %170 = vsyncadd %s163, %s169
          %s171 = smul.addr %s167, 18
          %s172 = smul.addr %s171, 64
          %s173 = scalar_lea.hbm %s0, %s172
          %s174 = sshll.u32 %s166, 4
          %s175 = int_to_ptr.vmem [resolvable:$true] %s174
          %180 = dma.hbm_to_vmem [thread:$0]  %s173, 4608, %s175, %s163, 64, 64, 4
        $region28: #{tpu_custom_call.1} parent=23 // pred_fallthru
          _
      $region24: #{tpu_custom_call.1} parent=5 // pred_fallthru
        _
      %p181 = scmp.le.s32.totalorder 1, %s16
      %p182 = scmp.lt.s32.totalorder %s16, 3
      %p183 = pnand %p181, %p182
      %p184 = pneg %p183
      // Predicated region
      $region29: #{tpu_custom_call.1} parent=5 // pred_check
        _
      $region30: #{tpu_custom_call.1} parent=5 // pred_check_branch
        %186 = sbr.rel (%p183) target = $region32
      $region31: #{tpu_custom_call.1} parent=5 // pred_region
        %s187 = ssub.s32 %s16, 1
        %s188 = sand.u32 %s41, 1
        %s189 = scalar_lea.sflag [#allocation3], %s188
        %s190 = sand.u32 %s41, 1
        %s191 = smul.addr %s190, 288
        %s192 = scalar_lea.vmem [#allocation2], %s191
        // Predicated region
        $region33: #{tpu_custom_call.1} parent=31 // pred_check
          %p193 = pneg %p54
        $region34: #{tpu_custom_call.1} parent=31 // pred_check_branch
          %195 = sbr.rel (%p193) target = $region36
        $region35: #{tpu_custom_call.1} parent=31 // pred_region
          %196 = dma.done %s189, 4608
        $region36: #{tpu_custom_call.1} parent=31 // pred_fallthru
          _
        // Predicated region
        $region37: #{tpu_custom_call.1} parent=31 // pred_check
          %p197 = pneg %p75
        $region38: #{tpu_custom_call.1} parent=31 // pred_check_branch
          %199 = sbr.rel (%p197) target = $region40
        $region39: #{tpu_custom_call.1} parent=31 // pred_region
          %200 = dma.done [#allocation6], 9216
        $region40: #{tpu_custom_call.1} parent=31 // pred_fallthru
          _
        %s201 = sand.u32 %s41, 1
        %s202 = scalar_lea.sflag [#allocation3], %s201
        %s203 = sand.u32 %s41, 1
        %s204 = smul.addr %s203, 288
        %s205 = scalar_lea.vmem [#allocation2], %s204
        %p206 = pneg %p54
        %p207 = pneg %p51
        %p208 = pneg %p75
        %p209 = pneg %p72
        %p210 = pneg %p96
        %p211 = pneg %p93
        %p212 = pneg %p124
        %p213 = pneg %p121
        %s214 = sand.u32 %s111, 1
        %s215 = scalar_lea.sflag [#allocation4], %s214
        %s216 = sand.u32 %s111, 1
        %s217 = smul.addr %s216, 64
        %s218 = scalar_lea.vmem [#allocation7], %s217
        %s219 = smul.u32 4, %s25
        %s220 = smul.u32 8, %s26
        %s222 = smul.u32 %s26, 8
        %s223 = smul.u32 %s222, 2
        %s224 = smul.addr %s223, 4
        %s225 = scalar_lea.vmem %s192, %s224 [#allocation2]
        %v226 = vld [vmem:[%s225] sm:$0xf]
        %v227 = vld [vmem:[%s225 + $0x8] sm:$0xf]
        %v228 = vld [vmem:[%s225 + $0x10] sm:$0xf]
        %v229 = vld [vmem:[%s225 + $0x18] sm:$0xf]
        %v230 = vld [vmem:[%s225 + $0x20] sm:$0xf]
        %v231 = vld [vmem:[%s225 + $0x28] sm:$0xf]
        %v232 = vld [vmem:[%s225 + $0x30] sm:$0xf]
        %v233 = vld [vmem:[%s225 + $0x38] sm:$0xf]
        %v234 = vld [vmem:[#allocation5] sm:$0xf]
        %v235 = vld [vmem:[#allocation5 + $0x4] sm:$0xf]
        %v236 = vld [vmem:[#allocation5 + $0x8] sm:$0xf]
        %v237 = vld [vmem:[#allocation5 + $0xc] sm:$0xf]
        %v238 = vld [vmem:[#allocation5 + $0x10] sm:$0xf]
        %v239 = vld [vmem:[#allocation5 + $0x14] sm:$0xf]
        %v240 = vld [vmem:[#allocation5 + $0x18] sm:$0xf]
        %v241 = vld [vmem:[#allocation5 + $0x1c] sm:$0xf]
        %v242 = vld [vmem:[#allocation5 + $0x20] sm:$0xf]
        %v243 = vld [vmem:[#allocation5 + $0x24] sm:$0xf]
        %v244 = vld [vmem:[#allocation5 + $0x28] sm:$0xf]
        %v245 = vld [vmem:[#allocation5 + $0x2c] sm:$0xf]
        %v246 = vld [vmem:[#allocation5 + $0x30] sm:$0xf]
        %v247 = vld [vmem:[#allocation5 + $0x34] sm:$0xf]
        %v248 = vld [vmem:[#allocation5 + $0x38] sm:$0xf]
        %v249 = vld [vmem:[#allocation5 + $0x3c] sm:$0xf]
        %s250 = sadd.s32 %s223, 18
        %s251 = smul.addr %s250, 4
        %s252 = scalar_lea.vmem %s192, %s251 [#allocation2]
        %v253 = vld [vmem:[%s252] sm:$0xf]
        %v254 = vld [vmem:[%s252 + $0x8] sm:$0xf]
        %v255 = vld [vmem:[%s252 + $0x10] sm:$0xf]
        %v256 = vld [vmem:[%s252 + $0x18] sm:$0xf]
        %v257 = vld [vmem:[%s252 + $0x20] sm:$0xf]
        %v258 = vld [vmem:[%s252 + $0x28] sm:$0xf]
        %v259 = vld [vmem:[%s252 + $0x30] sm:$0xf]
        %v260 = vld [vmem:[%s252 + $0x38] sm:$0xf]
        %s261 = scalar_lea.vmem [#allocation5], 64
        %v262 = vld [vmem:[%s261] sm:$0xf]
        %v263 = vld [vmem:[%s261 + $0x4] sm:$0xf]
        %v264 = vld [vmem:[%s261 + $0x8] sm:$0xf]
        %v265 = vld [vmem:[%s261 + $0xc] sm:$0xf]
        %v266 = vld [vmem:[%s261 + $0x10] sm:$0xf]
        %v267 = vld [vmem:[%s261 + $0x14] sm:$0xf]
        %v268 = vld [vmem:[%s261 + $0x18] sm:$0xf]
        %v269 = vld [vmem:[%s261 + $0x1c] sm:$0xf]
        %v270 = vld [vmem:[%s261 + $0x20] sm:$0xf]
        %v271 = vld [vmem:[%s261 + $0x24] sm:$0xf]
        %v272 = vld [vmem:[%s261 + $0x28] sm:$0xf]
        %v273 = vld [vmem:[%s261 + $0x2c] sm:$0xf]
        %v274 = vld [vmem:[%s261 + $0x30] sm:$0xf]
        %v275 = vld [vmem:[%s261 + $0x34] sm:$0xf]
        %v276 = vld [vmem:[%s261 + $0x38] sm:$0xf]
        %v277 = vld [vmem:[%s261 + $0x3c] sm:$0xf]
        %v286 = vunpack.c.l.b16 %v253
        %v287 = vunpack.c.l.b16 %v254
        %v288 = vunpack.c.l.b16 %v255
        %v289 = vunpack.c.l.b16 %v256
        %v290 = vunpack.c.l.b16 %v257
        %v291 = vunpack.c.l.b16 %v258
        %v292 = vunpack.c.l.b16 %v259
        %v293 = vunpack.c.l.b16 %v260
        %v294 = vpack.c.b16 %v287, %v286
        %v295 = vpack.c.b16 %v289, %v288
        %v296 = vpack.c.b16 %v291, %v290
        %v297 = vpack.c.b16 %v293, %v292
        %v318 = vunpack.c.l.b16 %v262
        %v319 = vunpack.c.l.b16 %v263
        %v320 = vunpack.c.l.b16 %v264
        %v321 = vunpack.c.l.b16 %v265
        %v322 = vunpack.c.l.b16 %v266
        %v323 = vunpack.c.l.b16 %v267
        %v324 = vunpack.c.l.b16 %v268
        %v325 = vunpack.c.l.b16 %v269
        %v326 = vunpack.c.l.b16 %v270
        %v327 = vunpack.c.l.b16 %v271
        %v328 = vunpack.c.l.b16 %v272
        %v329 = vunpack.c.l.b16 %v273
        %v330 = vunpack.c.l.b16 %v274
        %v331 = vunpack.c.l.b16 %v275
        %v332 = vunpack.c.l.b16 %v276
        %v333 = vunpack.c.l.b16 %v277
        %v334 = vpack.c.b16 %v319, %v318
        %v335 = vpack.c.b16 %v321, %v320
        %v336 = vpack.c.b16 %v323, %v322
        %v337 = vpack.c.b16 %v325, %v324
        %v338 = vpack.c.b16 %v327, %v326
        %v339 = vpack.c.b16 %v329, %v328
        %v340 = vpack.c.b16 %v331, %v330
        %v341 = vpack.c.b16 %v333, %v332
        %350 = vmatprep.subr.bf16.mxu0 0
        %351 = vmatpush1.bf16.msra.mxu0 %v334
        %352 = vmatprep.subr.bf16.mxu0 0
        %353 = vmatpush1.bf16.msra.mxu0 %v335
        %354 = vmatprep.subr.bf16.mxu0 0
        %355 = vmatpush1.bf16.msra.mxu0 %v336
        %356 = vmatprep.subr.bf16.mxu0 0
        %357 = vmatpush1.bf16.msra.mxu0 %v337
        %358 = vmatprep.subr.bf16.mxu0 0
        %359 = vmatpush1.bf16.msra.mxu0 %v338
        %360 = vmatprep.subr.bf16.mxu0 0
        %361 = vmatpush1.bf16.msra.mxu0 %v339
        %362 = vmatprep.subr.bf16.mxu0 0
        %363 = vmatpush1.bf16.msra.mxu0 %v340
        %364 = vmatprep.subr.bf16.mxu0 0
        %365 = vmatpush1.bf16.msra.mxu0 %v341
        %366 = vmatprep.subr.bf16.mxu0 0
        %367 = vmatpush1.bf16.msra.mxu0 0
        %368 = vmatprep.subr.bf16.mxu0 0
        %369 = vmatpush1.bf16.msra.mxu0 0
        %370 = vmatprep.subr.bf16.mxu0 0
        %371 = vmatpush1.bf16.msra.mxu0 0
        %372 = vmatprep.subr.bf16.mxu0 0
        %373 = vmatpush1.bf16.msra.mxu0 0
        %374 = vmatprep.subr.bf16.mxu0 0
        %375 = vmatpush1.bf16.msra.mxu0 0
        %376 = vmatprep.subr.bf16.mxu0 0
        %377 = vmatpush1.bf16.msra.mxu0 0
        %378 = vmatprep.subr.bf16.mxu0 0
        %379 = vmatpush1.bf16.msra.mxu0 0
        %380 = vmatprep.subr.bf16.mxu0 0
        %381 = vmatpush1.bf16.msra.mxu0 0
        %382 = vmatprep.mubr.bf16.mxu0 0
        %383 = vmatmul.mubr.bf16.gmra.mrb[0].mxu0 %v294
        %v384 = vpop.f32.mrb[0].mxu0
        %v385 = vadd.f32 0.0, %v384
        %v386 = vpop.f32.mrb[0].mxu0
        %v387 = vpop.f32.mrb[0].mxu0
        %v388 = vadd.f32 0.0, %v387
        %v389 = vpop.f32.mrb[0].mxu0
        %390 = vmatprep.mubr.bf16.mxu0 0
        %391 = vmatmul.mubr.bf16.gmra.mrb[0].mxu0 %v295
        %v392 = vpop.f32.mrb[0].mxu0
        %v393 = vadd.f32 0.0, %v392
        %v394 = vpop.f32.mrb[0].mxu0
        %v395 = vpop.f32.mrb[0].mxu0
        %v396 = vadd.f32 0.0, %v395
        %v397 = vpop.f32.mrb[0].mxu0
        %398 = vmatprep.mubr.bf16.mxu0 0
        %399 = vmatmul.mubr.bf16.gmra.mrb[0].mxu0 %v296
        %v400 = vpop.f32.mrb[0].mxu0
        %v401 = vadd.f32 0.0, %v400
        %v402 = vpop.f32.mrb[0].mxu0
        %v403 = vpop.f32.mrb[0].mxu0
        %v404 = vadd.f32 0.0, %v403
        %v405 = vpop.f32.mrb[0].mxu0
        %406 = vmatprep.mubr.bf16.mxu0 0
        %407 = vmatmul.mubr.bf16.gmra.mrb[0].mxu0 %v297
        %v408 = vpop.f32.mrb[0].mxu0
        %v409 = vadd.f32 0.0, %v408
        %v410 = vpop.f32.mrb[0].mxu0
        %v411 = vpop.f32.mrb[0].mxu0
        %v412 = vadd.f32 0.0, %v411
        %v413 = vpop.f32.mrb[0].mxu0
        %414 = vdwg.mxu0
        %v423 = vunpack.c.l.b16 %v226
        %v424 = vunpack.c.l.b16 %v227
        %v425 = vunpack.c.l.b16 %v228
        %v426 = vunpack.c.l.b16 %v229
        %v427 = vunpack.c.l.b16 %v230
        %v428 = vunpack.c.l.b16 %v231
        %v429 = vunpack.c.l.b16 %v232
        %v430 = vunpack.c.l.b16 %v233
        %v431 = vpack.c.b16 %v424, %v423
        %v432 = vpack.c.b16 %v426, %v425
        %v433 = vpack.c.b16 %v428, %v427
        %v434 = vpack.c.b16 %v430, %v429
        %v455 = vunpack.c.l.b16 %v234
        %v456 = vunpack.c.l.b16 %v235
        %v457 = vunpack.c.l.b16 %v236
        %v458 = vunpack.c.l.b16 %v237
        %v459 = vunpack.c.l.b16 %v238
        %v460 = vunpack.c.l.b16 %v239
        %v461 = vunpack.c.l.b16 %v240
        %v462 = vunpack.c.l.b16 %v241
        %v463 = vunpack.c.l.b16 %v242
        %v464 = vunpack.c.l.b16 %v243
        %v465 = vunpack.c.l.b16 %v244
        %v466 = vunpack.c.l.b16 %v245
        %v467 = vunpack.c.l.b16 %v246
        %v468 = vunpack.c.l.b16 %v247
        %v469 = vunpack.c.l.b16 %v248
        %v470 = vunpack.c.l.b16 %v249
        %v471 = vpack.c.b16 %v456, %v455
        %v472 = vpack.c.b16 %v458, %v457
        %v473 = vpack.c.b16 %v460, %v459
        %v474 = vpack.c.b16 %v462, %v461
        %v475 = vpack.c.b16 %v464, %v463
        %v476 = vpack.c.b16 %v466, %v465
        %v477 = vpack.c.b16 %v468, %v467
        %v478 = vpack.c.b16 %v470, %v469
        %487 = vmatprep.subr.bf16.mxu0 0
        %488 = vmatpush1.bf16.msra.mxu0 %v471
        %489 = vmatprep.subr.bf16.mxu0 0
        %490 = vmatpush1.bf16.msra.mxu0 %v472
        %491 = vmatprep.subr.bf16.mxu0 0
        %492 = vmatpush1.bf16.msra.mxu0 %v473
        %493 = vmatprep.subr.bf16.mxu0 0
        %494 = vmatpush1.bf16.msra.mxu0 %v474
        %495 = vmatprep.subr.bf16.mxu0 0
        %496 = vmatpush1.bf16.msra.mxu0 %v475
        %497 = vmatprep.subr.bf16.mxu0 0
        %498 = vmatpush1.bf16.msra.mxu0 %v476
        %499 = vmatprep.subr.bf16.mxu0 0
        %500 = vmatpush1.bf16.msra.mxu0 %v477
        %501 = vmatprep.subr.bf16.mxu0 0
        %502 = vmatpush1.bf16.msra.mxu0 %v478
        %503 = vmatprep.subr.bf16.mxu0 0
        %504 = vmatpush1.bf16.msra.mxu0 0
        %505 = vmatprep.subr.bf16.mxu0 0
        %506 = vmatpush1.bf16.msra.mxu0 0
        %507 = vmatprep.subr.bf16.mxu0 0
        %508 = vmatpush1.bf16.msra.mxu0 0
        %509 = vmatprep.subr.bf16.mxu0 0
        %510 = vmatpush1.bf16.msra.mxu0 0
        %511 = vmatprep.subr.bf16.mxu0 0
        %512 = vmatpush1.bf16.msra.mxu0 0
        %513 = vmatprep.subr.bf16.mxu0 0
        %514 = vmatpush1.bf16.msra.mxu0 0
        %515 = vmatprep.subr.bf16.mxu0 0
        %516 = vmatpush1.bf16.msra.mxu0 0
        %517 = vmatprep.subr.bf16.mxu0 0
        %518 = vmatpush1.bf16.msra.mxu0 0
        %519 = vmatprep.mubr.bf16.mxu0 0
        %520 = vmatmul.mubr.bf16.gmra.mrb[0].mxu0 %v431
        %v521 = vpop.f32.mrb[0].mxu0
        %v522 = vadd.f32 %v385, %v521
        %v523 = vpop.f32.mrb[0].mxu0
        %v524 = vpop.f32.mrb[0].mxu0
        %v525 = vadd.f32 %v388, %v524
        %v526 = vpop.f32.mrb[0].mxu0
        %527 = vmatprep.mubr.bf16.mxu0 0
        %528 = vmatmul.mubr.bf16.gmra.mrb[0].mxu0 %v432
        %v529 = vpop.f32.mrb[0].mxu0
        %v530 = vadd.f32 %v393, %v529
        %v531 = vpop.f32.mrb[0].mxu0
        %v532 = vpop.f32.mrb[0].mxu0
        %v533 = vadd.f32 %v396, %v532
        %v534 = vpop.f32.mrb[0].mxu0
        %535 = vmatprep.mubr.bf16.mxu0 0
        %536 = vmatmul.mubr.bf16.gmra.mrb[0].mxu0 %v433
        %v537 = vpop.f32.mrb[0].mxu0
        %v538 = vadd.f32 %v401, %v537
        %v539 = vpop.f32.mrb[0].mxu0
        %v540 = vpop.f32.mrb[0].mxu0
        %v541 = vadd.f32 %v404, %v540
        %v542 = vpop.f32.mrb[0].mxu0
        %543 = vmatprep.mubr.bf16.mxu0 0
        %544 = vmatmul.mubr.bf16.gmra.mrb[0].mxu0 %v434
        %v545 = vpop.f32.mrb[0].mxu0
        %v546 = vadd.f32 %v409, %v545
        %v547 = vpop.f32.mrb[0].mxu0
        %v548 = vpop.f32.mrb[0].mxu0
        %v549 = vadd.f32 %v412, %v548
        %v550 = vpop.f32.mrb[0].mxu0
        %551 = vdwg.mxu0
        %v552 = vld [vmem:[%s225] sm:$0xf]
        %v553 = vld [vmem:[%s225 + $0x4] sm:$0x1]
        %v554 = vld [vmem:[%s225 + $0x8] sm:$0xf]
        %v555 = vld [vmem:[%s225 + $0xc] sm:$0x1]
        %v556 = vld [vmem:[%s225 + $0x10] sm:$0xf]
        %v557 = vld [vmem:[%s225 + $0x14] sm:$0x1]
        %v558 = vld [vmem:[%s225 + $0x18] sm:$0xf]
        %v559 = vld [vmem:[%s225 + $0x1c] sm:$0x1]
        %v560 = vld [vmem:[%s225 + $0x20] sm:$0xf]
        %v561 = vld [vmem:[%s225 + $0x24] sm:$0x1]
        %v562 = vld [vmem:[%s225 + $0x28] sm:$0xf]
        %v563 = vld [vmem:[%s225 + $0x2c] sm:$0x1]
        %v564 = vld [vmem:[%s225 + $0x30] sm:$0xf]
        %v565 = vld [vmem:[%s225 + $0x34] sm:$0x1]
        %v566 = vld [vmem:[%s225 + $0x38] sm:$0xf]
        %v567 = vld [vmem:[%s225 + $0x3c] sm:$0x1]
        %vm568 = vsmask.f32 3328
        %vm569 = vsmask.f32 7440
        %vm570 = vmor %vm568, %vm569
        %v572 = vshrl.u32 %v552, 16
        %v574 = vrot.slane %v572, 4
        %v575 = vshll.u32 %v552, 16
        %v577 = vrot.slane %v575, 5
        %v578 = vor.u32 %v574, %v577
        %v579 = vrot.slane %v578, 4
        %v581 = vshll.u32 %v553, 16
        %v583 = vrot.slane %v581, 5
        %v584 = vsel %vm570, %v579, %v583
        %v586 = vshrl.u32 %v554, 16
        %v588 = vrot.slane %v586, 4
        %v589 = vshll.u32 %v554, 16
        %v591 = vrot.slane %v589, 5
        %v592 = vor.u32 %v588, %v591
        %v593 = vrot.slane %v592, 4
        %v595 = vshll.u32 %v555, 16
        %v597 = vrot.slane %v595, 5
        %v598 = vsel %vm570, %v593, %v597
        %v600 = vshrl.u32 %v556, 16
        %v602 = vrot.slane %v600, 4
        %v603 = vshll.u32 %v556, 16
        %v605 = vrot.slane %v603, 5
        %v606 = vor.u32 %v602, %v605
        %v607 = vrot.slane %v606, 4
        %v609 = vshll.u32 %v557, 16
        %v611 = vrot.slane %v609, 5
        %v612 = vsel %vm570, %v607, %v611
        %v614 = vshrl.u32 %v558, 16
        %v616 = vrot.slane %v614, 4
        %v617 = vshll.u32 %v558, 16
        %v619 = vrot.slane %v617, 5
        %v620 = vor.u32 %v616, %v619
        %v621 = vrot.slane %v620, 4
        %v623 = vshll.u32 %v559, 16
        %v625 = vrot.slane %v623, 5
        %v626 = vsel %vm570, %v621, %v625
        %v628 = vshrl.u32 %v560, 16
        %v630 = vrot.slane %v628, 4
        %v631 = vshll.u32 %v560, 16
        %v633 = vrot.slane %v631, 5
        %v634 = vor.u32 %v630, %v633
        %v635 = vrot.slane %v634, 4
        %v637 = vshll.u32 %v561, 16
        %v639 = vrot.slane %v637, 5
        %v640 = vsel %vm570, %v635, %v639
        %v642 = vshrl.u32 %v562, 16
        %v644 = vrot.slane %v642, 4
        %v645 = vshll.u32 %v562, 16
        %v647 = vrot.slane %v645, 5
        %v648 = vor.u32 %v644, %v647
        %v649 = vrot.slane %v648, 4
        %v651 = vshll.u32 %v563, 16
        %v653 = vrot.slane %v651, 5
        %v654 = vsel %vm570, %v649, %v653
        %v656 = vshrl.u32 %v564, 16
        %v658 = vrot.slane %v656, 4
        %v659 = vshll.u32 %v564, 16
        %v661 = vrot.slane %v659, 5
        %v662 = vor.u32 %v658, %v661
        %v663 = vrot.slane %v662, 4
        %v665 = vshll.u32 %v565, 16
        %v667 = vrot.slane %v665, 5
        %v668 = vsel %vm570, %v663, %v667
        %v670 = vshrl.u32 %v566, 16
        %v672 = vrot.slane %v670, 4
        %v673 = vshll.u32 %v566, 16
        %v675 = vrot.slane %v673, 5
        %v676 = vor.u32 %v672, %v675
        %v677 = vrot.slane %v676, 4
        %v679 = vshll.u32 %v567, 16
        %v681 = vrot.slane %v679, 5
        %v682 = vsel %vm570, %v677, %v681
        %s683 = scalar_lea.vmem [#allocation5], 128
        %v684 = vld [vmem:[%s683] sm:$0xf]
        %v685 = vld [vmem:[%s683 + $0x4] sm:$0xf]
        %v686 = vld [vmem:[%s683 + $0x8] sm:$0xf]
        %v687 = vld [vmem:[%s683 + $0xc] sm:$0xf]
        %v688 = vld [vmem:[%s683 + $0x10] sm:$0xf]
        %v689 = vld [vmem:[%s683 + $0x14] sm:$0xf]
        %v690 = vld [vmem:[%s683 + $0x18] sm:$0xf]
        %v691 = vld [vmem:[%s683 + $0x1c] sm:$0xf]
        %v692 = vld [vmem:[%s683 + $0x20] sm:$0xf]
        %v693 = vld [vmem:[%s683 + $0x24] sm:$0xf]
        %v694 = vld [vmem:[%s683 + $0x28] sm:$0xf]
        %v695 = vld [vmem:[%s683 + $0x2c] sm:$0xf]
        %v696 = vld [vmem:[%s683 + $0x30] sm:$0xf]
        %v697 = vld [vmem:[%s683 + $0x34] sm:$0xf]
        %v698 = vld [vmem:[%s683 + $0x38] sm:$0xf]
        %v699 = vld [vmem:[%s683 + $0x3c] sm:$0xf]
        %v700 = vunpack.c.l.b16 %v584
        %v701 = vunpack.c.l.b16 %v598
        %v702 = vunpack.c.l.b16 %v612
        %v703 = vunpack.c.l.b16 %v626
        %v704 = vunpack.c.l.b16 %v640
        %v705 = vunpack.c.l.b16 %v654
        %v706 = vunpack.c.l.b16 %v668
        %v707 = vunpack.c.l.b16 %v682
        %v708 = vpack.c.b16 %v701, %v700
        %v709 = vpack.c.b16 %v703, %v702
        %v710 = vpack.c.b16 %v705, %v704
        %v711 = vpack.c.b16 %v707, %v706
        %v732 = vunpack.c.l.b16 %v684
        %v733 = vunpack.c.l.b16 %v685
        %v734 = vunpack.c.l.b16 %v686
        %v735 = vunpack.c.l.b16 %v687
        %v736 = vunpack.c.l.b16 %v688
        %v737 = vunpack.c.l.b16 %v689
        %v738 = vunpack.c.l.b16 %v690
        %v739 = vunpack.c.l.b16 %v691
        %v740 = vunpack.c.l.b16 %v692
        %v741 = vunpack.c.l.b16 %v693
        %v742 = vunpack.c.l.b16 %v694
        %v743 = vunpack.c.l.b16 %v695
        %v744 = vunpack.c.l.b16 %v696
        %v745 = vunpack.c.l.b16 %v697
        %v746 = vunpack.c.l.b16 %v698
        %v747 = vunpack.c.l.b16 %v699
        %v748 = vpack.c.b16 %v733, %v732
        %v749 = vpack.c.b16 %v735, %v734
        %v750 = vpack.c.b16 %v737, %v736
        %v751 = vpack.c.b16 %v739, %v738
        %v752 = vpack.c.b16 %v741, %v740
        %v753 = vpack.c.b16 %v743, %v742
        %v754 = vpack.c.b16 %v745, %v744
        %v755 = vpack.c.b16 %v747, %v746
        %764 = vmatprep.subr.bf16.mxu0 0
        %765 = vmatpush1.bf16.msra.mxu0 %v748
        %766 = vmatprep.subr.bf16.mxu0 0
        %767 = vmatpush1.bf16.msra.mxu0 %v749
        %768 = vmatprep.subr.bf16.mxu0 0
        %769 = vmatpush1.bf16.msra.mxu0 %v750
        %770 = vmatprep.subr.bf16.mxu0 0
        %771 = vmatpush1.bf16.msra.mxu0 %v751
        %772 = vmatprep.subr.bf16.mxu0 0
        %773 = vmatpush1.bf16.msra.mxu0 %v752
        %774 = vmatprep.subr.bf16.mxu0 0
        %775 = vmatpush1.bf16.msra.mxu0 %v753
        %776 = vmatprep.subr.bf16.mxu0 0
        %777 = vmatpush1.bf16.msra.mxu0 %v754
        %778 = vmatprep.subr.bf16.mxu0 0
        %779 = vmatpush1.bf16.msra.mxu0 %v755
        %780 = vmatprep.subr.bf16.mxu0 0
        %781 = vmatpush1.bf16.msra.mxu0 0
        %782 = vmatprep.subr.bf16.mxu0 0
        %783 = vmatpush1.bf16.msra.mxu0 0
        %784 = vmatprep.subr.bf16.mxu0 0
        %785 = vmatpush1.bf16.msra.mxu0 0
        %786 = vmatprep.subr.bf16.mxu0 0
        %787 = vmatpush1.bf16.msra.mxu0 0
        %788 = vmatprep.subr.bf16.mxu0 0
        %789 = vmatpush1.bf16.msra.mxu0 0
        %790 = vmatprep.subr.bf16.mxu0 0
        %791 = vmatpush1.bf16.msra.mxu0 0
        %792 = vmatprep.subr.bf16.mxu0 0
        %793 = vmatpush1.bf16.msra.mxu0 0
        %794 = vmatprep.subr.bf16.mxu0 0
        %795 = vmatpush1.bf16.msra.mxu0 0
        %796 = vmatprep.mubr.bf16.mxu0 0
        %797 = vmatmul.mubr.bf16.gmra.mrb[0].mxu0 %v708
        %v798 = vpop.f32.mrb[0].mxu0
        %v799 = vadd.f32 0.0, %v798
        %v800 = vpop.f32.mrb[0].mxu0
        %v801 = vpop.f32.mrb[0].mxu0
        %v802 = vadd.f32 0.0, %v801
        %v803 = vpop.f32.mrb[0].mxu0
        %804 = vmatprep.mubr.bf16.mxu0 0
        %805 = vmatmul.mubr.bf16.gmra.mrb[0].mxu0 %v709
        %v806 = vpop.f32.mrb[0].mxu0
        %v807 = vadd.f32 0.0, %v806
        %v808 = vpop.f32.mrb[0].mxu0
        %v809 = vpop.f32.mrb[0].mxu0
        %v810 = vadd.f32 0.0, %v809
        %v811 = vpop.f32.mrb[0].mxu0
        %812 = vmatprep.mubr.bf16.mxu0 0
        %813 = vmatmul.mubr.bf16.gmra.mrb[0].mxu0 %v710
        %v814 = vpop.f32.mrb[0].mxu0
        %v815 = vadd.f32 0.0, %v814
        %v816 = vpop.f32.mrb[0].mxu0
        %v817 = vpop.f32.mrb[0].mxu0
        %v818 = vadd.f32 0.0, %v817
        %v819 = vpop.f32.mrb[0].mxu0
        %820 = vmatprep.mubr.bf16.mxu0 0
        %821 = vmatmul.mubr.bf16.gmra.mrb[0].mxu0 %v711
        %v822 = vpop.f32.mrb[0].mxu0
        %v823 = vadd.f32 0.0, %v822
        %v824 = vpop.f32.mrb[0].mxu0
        %v825 = vpop.f32.mrb[0].mxu0
        %v826 = vadd.f32 0.0, %v825
        %v827 = vpop.f32.mrb[0].mxu0
        %828 = vdwg.mxu0
        %v829 = vadd.f32 %v522, %v799
        %v830 = vadd.f32 %v525, %v802
        %v831 = vadd.f32 %v530, %v807
        %v832 = vadd.f32 %v533, %v810
        %v833 = vadd.f32 %v538, %v815
        %v834 = vadd.f32 %v541, %v818
        %v835 = vadd.f32 %v546, %v823
        %v836 = vadd.f32 %v549, %v826
        %s837 = sadd.s32 %s223, 36
        %s838 = smul.addr %s837, 4
        %s839 = scalar_lea.vmem %s192, %s838 [#allocation2]
        %v840 = vld [vmem:[%s839] sm:$0xf]
        %v841 = vld [vmem:[%s839 + $0x8] sm:$0xf]
        %v842 = vld [vmem:[%s839 + $0x10] sm:$0xf]
        %v843 = vld [vmem:[%s839 + $0x18] sm:$0xf]
        %v844 = vld [vmem:[%s839 + $0x20] sm:$0xf]
        %v845 = vld [vmem:[%s839 + $0x28] sm:$0xf]
        %v846 = vld [vmem:[%s839 + $0x30] sm:$0xf]
        %v847 = vld [vmem:[%s839 + $0x38] sm:$0xf]
        %s848 = scalar_lea.vmem [#allocation5], 192
        %v849 = vld [vmem:[%s848] sm:$0xf]
        %v850 = vld [vmem:[%s848 + $0x4] sm:$0xf]
        %v851 = vld [vmem:[%s848 + $0x8] sm:$0xf]
        %v852 = vld [vmem:[%s848 + $0xc] sm:$0xf]
        %v853 = vld [vmem:[%s848 + $0x10] sm:$0xf]
        %v854 = vld [vmem:[%s848 + $0x14] sm:$0xf]
        %v855 = vld [vmem:[%s848 + $0x18] sm:$0xf]
        %v856 = vld [vmem:[%s848 + $0x1c] sm:$0xf]
        %v857 = vld [vmem:[%s848 + $0x20] sm:$0xf]
        %v858 = vld [vmem:[%s848 + $0x24] sm:$0xf]
        %v859 = vld [vmem:[%s848 + $0x28] sm:$0xf]
        %v860 = vld [vmem:[%s848 + $0x2c] sm:$0xf]
        %v861 = vld [vmem:[%s848 + $0x30] sm:$0xf]
        %v862 = vld [vmem:[%s848 + $0x34] sm:$0xf]
        %v863 = vld [vmem:[%s848 + $0x38] sm:$0xf]
        %v864 = vld [vmem:[%s848 + $0x3c] sm:$0xf]
        %v873 = vunpack.c.l.b16 %v840
        %v874 = vunpack.c.l.b16 %v841
        %v875 = vunpack.c.l.b16 %v842
        %v876 = vunpack.c.l.b16 %v843
        %v877 = vunpack.c.l.b16 %v844
        %v878 = vunpack.c.l.b16 %v845
        %v879 = vunpack.c.l.b16 %v846
        %v880 = vunpack.c.l.b16 %v847
        %v881 = vpack.c.b16 %v874, %v873
        %v882 = vpack.c.b16 %v876, %v875
        %v883 = vpack.c.b16 %v878, %v877
        %v884 = vpack.c.b16 %v880, %v879
        %v905 = vunpack.c.l.b16 %v849
        %v906 = vunpack.c.l.b16 %v850
        %v907 = vunpack.c.l.b16 %v851
        %v908 = vunpack.c.l.b16 %v852
        %v909 = vunpack.c.l.b16 %v853
        %v910 = vunpack.c.l.b16 %v854
        %v911 = vunpack.c.l.b16 %v855
        %v912 = vunpack.c.l.b16 %v856
        %v913 = vunpack.c.l.b16 %v857
        %v914 = vunpack.c.l.b16 %v858
        %v915 = vunpack.c.l.b16 %v859
        %v916 = vunpack.c.l.b16 %v860
        %v917 = vunpack.c.l.b16 %v861
        %v918 = vunpack.c.l.b16 %v862
        %v919 = vunpack.c.l.b16 %v863
        %v920 = vunpack.c.l.b16 %v864
        %v921 = vpack.c.b16 %v906, %v905
        %v922 = vpack.c.b16 %v908, %v907
        %v923 = vpack.c.b16 %v910, %v909
        %v924 = vpack.c.b16 %v912, %v911
        %v925 = vpack.c.b16 %v914, %v913
        %v926 = vpack.c.b16 %v916, %v915
        %v927 = vpack.c.b16 %v918, %v917
        %v928 = vpack.c.b16 %v920, %v919
        %937 = vmatprep.subr.bf16.mxu0 0
        %938 = vmatpush1.bf16.msra.mxu0 %v921
        %939 = vmatprep.subr.bf16.mxu0 0
        %940 = vmatpush1.bf16.msra.mxu0 %v922
        %941 = vmatprep.subr.bf16.mxu0 0
        %942 = vmatpush1.bf16.msra.mxu0 %v923
        %943 = vmatprep.subr.bf16.mxu0 0
        %944 = vmatpush1.bf16.msra.mxu0 %v924
        %945 = vmatprep.subr.bf16.mxu0 0
        %946 = vmatpush1.bf16.msra.mxu0 %v925
        %947 = vmatprep.subr.bf16.mxu0 0
        %948 = vmatpush1.bf16.msra.mxu0 %v926
        %949 = vmatprep.subr.bf16.mxu0 0
        %950 = vmatpush1.bf16.msra.mxu0 %v927
        %951 = vmatprep.subr.bf16.mxu0 0
        %952 = vmatpush1.bf16.msra.mxu0 %v928
        %953 = vmatprep.subr.bf16.mxu0 0
        %954 = vmatpush1.bf16.msra.mxu0 0
        %955 = vmatprep.subr.bf16.mxu0 0
        %956 = vmatpush1.bf16.msra.mxu0 0
        %957 = vmatprep.subr.bf16.mxu0 0
        %958 = vmatpush1.bf16.msra.mxu0 0
        %959 = vmatprep.subr.bf16.mxu0 0
        %960 = vmatpush1.bf16.msra.mxu0 0
        %961 = vmatprep.subr.bf16.mxu0 0
        %962 = vmatpush1.bf16.msra.mxu0 0
        %963 = vmatprep.subr.bf16.mxu0 0
        %964 = vmatpush1.bf16.msra.mxu0 0
        %965 = vmatprep.subr.bf16.mxu0 0
        %966 = vmatpush1.bf16.msra.mxu0 0
        %967 = vmatprep.subr.bf16.mxu0 0
        %968 = vmatpush1.bf16.msra.mxu0 0
        %969 = vmatprep.mubr.bf16.mxu0 0
        %970 = vmatmul.mubr.bf16.gmra.mrb[0].mxu0 %v881
        %v971 = vpop.f32.mrb[0].mxu0
        %v972 = vadd.f32 0.0, %v971
        %v973 = vpop.f32.mrb[0].mxu0
        %v974 = vpop.f32.mrb[0].mxu0
        %v975 = vadd.f32 0.0, %v974
        %v976 = vpop.f32.mrb[0].mxu0
        %977 = vmatprep.mubr.bf16.mxu0 0
        %978 = vmatmul.mubr.bf16.gmra.mrb[0].mxu0 %v882
        %v979 = vpop.f32.mrb[0].mxu0
        %v980 = vadd.f32 0.0, %v979
        %v981 = vpop.f32.mrb[0].mxu0
        %v982 = vpop.f32.mrb[0].mxu0
        %v983 = vadd.f32 0.0, %v982
        %v984 = vpop.f32.mrb[0].mxu0
        %985 = vmatprep.mubr.bf16.mxu0 0
        %986 = vmatmul.mubr.bf16.gmra.mrb[0].mxu0 %v883
        %v987 = vpop.f32.mrb[0].mxu0
        %v988 = vadd.f32 0.0, %v987
        %v989 = vpop.f32.mrb[0].mxu0
        %v990 = vpop.f32.mrb[0].mxu0
        %v991 = vadd.f32 0.0, %v990
        %v992 = vpop.f32.mrb[0].mxu0
        %993 = vmatprep.mubr.bf16.mxu0 0
        %994 = vmatmul.mubr.bf16.gmra.mrb[0].mxu0 %v884
        %v995 = vpop.f32.mrb[0].mxu0
        %v996 = vadd.f32 0.0, %v995
        %v997 = vpop.f32.mrb[0].mxu0
        %v998 = vpop.f32.mrb[0].mxu0
        %v999 = vadd.f32 0.0, %v998
        %v1000 = vpop.f32.mrb[0].mxu0
        %1001 = vdwg.mxu0
        %v1002 = vadd.f32 %v829, %v972
        %v1003 = vadd.f32 %v830, %v975
        %v1004 = vadd.f32 %v831, %v980
        %v1005 = vadd.f32 %v832, %v983
        %v1006 = vadd.f32 %v833, %v988
        %v1007 = vadd.f32 %v834, %v991
        %v1008 = vadd.f32 %v835, %v996
        %v1009 = vadd.f32 %v836, %v999
        %s1010 = sadd.s32 %s223, 54
        %s1011 = smul.addr %s1010, 4
        %s1012 = scalar_lea.vmem %s192, %s1011 [#allocation2]
        %v1013 = vld [vmem:[%s1012] sm:$0xf]
        %v1014 = vld [vmem:[%s1012 + $0x8] sm:$0xf]
        %v1015 = vld [vmem:[%s1012 + $0x10] sm:$0xf]
        %v1016 = vld [vmem:[%s1012 + $0x18] sm:$0xf]
        %v1017 = vld [vmem:[%s1012 + $0x20] sm:$0xf]
        %v1018 = vld [vmem:[%s1012 + $0x28] sm:$0xf]
        %v1019 = vld [vmem:[%s1012 + $0x30] sm:$0xf]
        %v1020 = vld [vmem:[%s1012 + $0x38] sm:$0xf]
        %s1021 = scalar_lea.vmem [#allocation5], 256
        %v1022 = vld [vmem:[%s1021] sm:$0xf]
        %v1023 = vld [vmem:[%s1021 + $0x4] sm:$0xf]
        %v1024 = vld [vmem:[%s1021 + $0x8] sm:$0xf]
        %v1025 = vld [vmem:[%s1021 + $0xc] sm:$0xf]
        %v1026 = vld [vmem:[%s1021 + $0x10] sm:$0xf]
        %v1027 = vld [vmem:[%s1021 + $0x14] sm:$0xf]
        %v1028 = vld [vmem:[%s1021 + $0x18] sm:$0xf]
        %v1029 = vld [vmem:[%s1021 + $0x1c] sm:$0xf]
        %v1030 = vld [vmem:[%s1021 + $0x20] sm:$0xf]
        %v1031 = vld [vmem:[%s1021 + $0x24] sm:$0xf]
        %v1032 = vld [vmem:[%s1021 + $0x28] sm:$0xf]
        %v1033 = vld [vmem:[%s1021 + $0x2c] sm:$0xf]
        %v1034 = vld [vmem:[%s1021 + $0x30] sm:$0xf]
        %v1035 = vld [vmem:[%s1021 + $0x34] sm:$0xf]
        %v1036 = vld [vmem:[%s1021 + $0x38] sm:$0xf]
        %v1037 = vld [vmem:[%s1021 + $0x3c] sm:$0xf]
        %v1046 = vunpack.c.l.b16 %v1013
        %v1047 = vunpack.c.l.b16 %v1014
        %v1048 = vunpack.c.l.b16 %v1015
        %v1049 = vunpack.c.l.b16 %v1016
        %v1050 = vunpack.c.l.b16 %v1017
        %v1051 = vunpack.c.l.b16 %v1018
        %v1052 = vunpack.c.l.b16 %v1019
        %v1053 = vunpack.c.l.b16 %v1020
        %v1054 = vpack.c.b16 %v1047, %v1046
        %v1055 = vpack.c.b16 %v1049, %v1048
        %v1056 = vpack.c.b16 %v1051, %v1050
        %v1057 = vpack.c.b16 %v1053, %v1052
        %v1078 = vunpack.c.l.b16 %v1022
        %v1079 = vunpack.c.l.b16 %v1023
        %v1080 = vunpack.c.l.b16 %v1024
        %v1081 = vunpack.c.l.b16 %v1025
        %v1082 = vunpack.c.l.b16 %v1026
        %v1083 = vunpack.c.l.b16 %v1027
        %v1084 = vunpack.c.l.b16 %v1028
        %v1085 = vunpack.c.l.b16 %v1029
        %v1086 = vunpack.c.l.b16 %v1030
        %v1087 = vunpack.c.l.b16 %v1031
        %v1088 = vunpack.c.l.b16 %v1032
        %v1089 = vunpack.c.l.b16 %v1033
        %v1090 = vunpack.c.l.b16 %v1034
        %v1091 = vunpack.c.l.b16 %v1035
        %v1092 = vunpack.c.l.b16 %v1036
        %v1093 = vunpack.c.l.b16 %v1037
        %v1094 = vpack.c.b16 %v1079, %v1078
        %v1095 = vpack.c.b16 %v1081, %v1080
        %v1096 = vpack.c.b16 %v1083, %v1082
        %v1097 = vpack.c.b16 %v1085, %v1084
        %v1098 = vpack.c.b16 %v1087, %v1086
        %v1099 = vpack.c.b16 %v1089, %v1088
        %v1100 = vpack.c.b16 %v1091, %v1090
        %v1101 = vpack.c.b16 %v1093, %v1092
        %1110 = vmatprep.subr.bf16.mxu0 0
        %1111 = vmatpush1.bf16.msra.mxu0 %v1094
        %1112 = vmatprep.subr.bf16.mxu0 0
        %1113 = vmatpush1.bf16.msra.mxu0 %v1095
        %1114 = vmatprep.subr.bf16.mxu0 0
        %1115 = vmatpush1.bf16.msra.mxu0 %v1096
        %1116 = vmatprep.subr.bf16.mxu0 0
        %1117 = vmatpush1.bf16.msra.mxu0 %v1097
        %1118 = vmatprep.subr.bf16.mxu0 0
        %1119 = vmatpush1.bf16.msra.mxu0 %v1098
        %1120 = vmatprep.subr.bf16.mxu0 0
        %1121 = vmatpush1.bf16.msra.mxu0 %v1099
        %1122 = vmatprep.subr.bf16.mxu0 0
        %1123 = vmatpush1.bf16.msra.mxu0 %v1100
        %1124 = vmatprep.subr.bf16.mxu0 0
        %1125 = vmatpush1.bf16.msra.mxu0 %v1101
        %1126 = vmatprep.subr.bf16.mxu0 0
        %1127 = vmatpush1.bf16.msra.mxu0 0
        %1128 = vmatprep.subr.bf16.mxu0 0
        %1129 = vmatpush1.bf16.msra.mxu0 0
        %1130 = vmatprep.subr.bf16.mxu0 0
        %1131 = vmatpush1.bf16.msra.mxu0 0
        %1132 = vmatprep.subr.bf16.mxu0 0
        %1133 = vmatpush1.bf16.msra.mxu0 0
        %1134 = vmatprep.subr.bf16.mxu0 0
        %1135 = vmatpush1.bf16.msra.mxu0 0
        %1136 = vmatprep.subr.bf16.mxu0 0
        %1137 = vmatpush1.bf16.msra.mxu0 0
        %1138 = vmatprep.subr.bf16.mxu0 0
        %1139 = vmatpush1.bf16.msra.mxu0 0
        %1140 = vmatprep.subr.bf16.mxu0 0
        %1141 = vmatpush1.bf16.msra.mxu0 0
        %1142 = vmatprep.mubr.bf16.mxu0 0
        %1143 = vmatmul.mubr.bf16.gmra.mrb[0].mxu0 %v1054
        %v1144 = vpop.f32.mrb[0].mxu0
        %v1145 = vadd.f32 0.0, %v1144
        %v1146 = vpop.f32.mrb[0].mxu0
        %v1147 = vpop.f32.mrb[0].mxu0
        %v1148 = vadd.f32 0.0, %v1147
        %v1149 = vpop.f32.mrb[0].mxu0
        %1150 = vmatprep.mubr.bf16.mxu0 0
        %1151 = vmatmul.mubr.bf16.gmra.mrb[0].mxu0 %v1055
        %v1152 = vpop.f32.mrb[0].mxu0
        %v1153 = vadd.f32 0.0, %v1152
        %v1154 = vpop.f32.mrb[0].mxu0
        %v1155 = vpop.f32.mrb[0].mxu0
        %v1156 = vadd.f32 0.0, %v1155
        %v1157 = vpop.f32.mrb[0].mxu0
        %1158 = vmatprep.mubr.bf16.mxu0 0
        %1159 = vmatmul.mubr.bf16.gmra.mrb[0].mxu0 %v1056
        %v1160 = vpop.f32.mrb[0].mxu0
        %v1161 = vadd.f32 0.0, %v1160
        %v1162 = vpop.f32.mrb[0].mxu0
        %v1163 = vpop.f32.mrb[0].mxu0
        %v1164 = vadd.f32 0.0, %v1163
        %v1165 = vpop.f32.mrb[0].mxu0
        %1166 = vmatprep.mubr.bf16.mxu0 0
        %1167 = vmatmul.mubr.bf16.gmra.mrb[0].mxu0 %v1057
        %v1168 = vpop.f32.mrb[0].mxu0
        %v1169 = vadd.f32 0.0, %v1168
        %v1170 = vpop.f32.mrb[0].mxu0
        %v1171 = vpop.f32.mrb[0].mxu0
        %v1172 = vadd.f32 0.0, %v1171
        %v1173 = vpop.f32.mrb[0].mxu0
        %1174 = vdwg.mxu0
        %v1175 = vadd.f32 %v1002, %v1145
        %v1176 = vadd.f32 %v1003, %v1148
        %v1177 = vadd.f32 %v1004, %v1153
        %v1178 = vadd.f32 %v1005, %v1156
        %v1179 = vadd.f32 %v1006, %v1161
        %v1180 = vadd.f32 %v1007, %v1164
        %v1181 = vadd.f32 %v1008, %v1169
        %v1182 = vadd.f32 %v1009, %v1172
        %v1183 = vld [vmem:[%s839] sm:$0xf]
        %v1184 = vld [vmem:[%s839 + $0x4] sm:$0x1]
        %v1185 = vld [vmem:[%s839 + $0x8] sm:$0xf]
        %v1186 = vld [vmem:[%s839 + $0xc] sm:$0x1]
        %v1187 = vld [vmem:[%s839 + $0x10] sm:$0xf]
        %v1188 = vld [vmem:[%s839 + $0x14] sm:$0x1]
        %v1189 = vld [vmem:[%s839 + $0x18] sm:$0xf]
        %v1190 = vld [vmem:[%s839 + $0x1c] sm:$0x1]
        %v1191 = vld [vmem:[%s839 + $0x20] sm:$0xf]
        %v1192 = vld [vmem:[%s839 + $0x24] sm:$0x1]
        %v1193 = vld [vmem:[%s839 + $0x28] sm:$0xf]
        %v1194 = vld [vmem:[%s839 + $0x2c] sm:$0x1]
        %v1195 = vld [vmem:[%s839 + $0x30] sm:$0xf]
        %v1196 = vld [vmem:[%s839 + $0x34] sm:$0x1]
        %v1197 = vld [vmem:[%s839 + $0x38] sm:$0xf]
        %v1198 = vld [vmem:[%s839 + $0x3c] sm:$0x1]
        %v1200 = vshrl.u32 %v1183, 16
        %v1202 = vrot.slane %v1200, 4
        %v1203 = vshll.u32 %v1183, 16
        %v1205 = vrot.slane %v1203, 5
        %v1206 = vor.u32 %v1202, %v1205
        %v1207 = vrot.slane %v1206, 4
        %v1209 = vshll.u32 %v1184, 16
        %v1211 = vrot.slane %v1209, 5
        %v1212 = vsel %vm570, %v1207, %v1211
        %v1214 = vshrl.u32 %v1185, 16
        %v1216 = vrot.slane %v1214, 4
        %v1217 = vshll.u32 %v1185, 16
        %v1219 = vrot.slane %v1217, 5
        %v1220 = vor.u32 %v1216, %v1219
        %v1221 = vrot.slane %v1220, 4
        %v1223 = vshll.u32 %v1186, 16
        %v1225 = vrot.slane %v1223, 5
        %v1226 = vsel %vm570, %v1221, %v1225
        %v1228 = vshrl.u32 %v1187, 16
        %v1230 = vrot.slane %v1228, 4
        %v1231 = vshll.u32 %v1187, 16
        %v1233 = vrot.slane %v1231, 5
        %v1234 = vor.u32 %v1230, %v1233
        %v1235 = vrot.slane %v1234, 4
        %v1237 = vshll.u32 %v1188, 16
        %v1239 = vrot.slane %v1237, 5
        %v1240 = vsel %vm570, %v1235, %v1239
        %v1242 = vshrl.u32 %v1189, 16
        %v1244 = vrot.slane %v1242, 4
        %v1245 = vshll.u32 %v1189, 16
        %v1247 = vrot.slane %v1245, 5
        %v1248 = vor.u32 %v1244, %v1247
        %v1249 = vrot.slane %v1248, 4
        %v1251 = vshll.u32 %v1190, 16
        %v1253 = vrot.slane %v1251, 5
        %v1254 = vsel %vm570, %v1249, %v1253
        %v1256 = vshrl.u32 %v1191, 16
        %v1258 = vrot.slane %v1256, 4
        %v1259 = vshll.u32 %v1191, 16
        %v1261 = vrot.slane %v1259, 5
        %v1262 = vor.u32 %v1258, %v1261
        %v1263 = vrot.slane %v1262, 4
        %v1265 = vshll.u32 %v1192, 16
        %v1267 = vrot.slane %v1265, 5
        %v1268 = vsel %vm570, %v1263, %v1267
        %v1270 = vshrl.u32 %v1193, 16
        %v1272 = vrot.slane %v1270, 4
        %v1273 = vshll.u32 %v1193, 16
        %v1275 = vrot.slane %v1273, 5
        %v1276 = vor.u32 %v1272, %v1275
        %v1277 = vrot.slane %v1276, 4
        %v1279 = vshll.u32 %v1194, 16
        %v1281 = vrot.slane %v1279, 5
        %v1282 = vsel %vm570, %v1277, %v1281
        %v1284 = vshrl.u32 %v1195, 16
        %v1286 = vrot.slane %v1284, 4
        %v1287 = vshll.u32 %v1195, 16
        %v1289 = vrot.slane %v1287, 5
        %v1290 = vor.u32 %v1286, %v1289
        %v1291 = vrot.slane %v1290, 4
        %v1293 = vshll.u32 %v1196, 16
        %v1295 = vrot.slane %v1293, 5
        %v1296 = vsel %vm570, %v1291, %v1295
        %v1298 = vshrl.u32 %v1197, 16
        %v1300 = vrot.slane %v1298, 4
        %v1301 = vshll.u32 %v1197, 16
        %v1303 = vrot.slane %v1301, 5
        %v1304 = vor.u32 %v1300, %v1303
        %v1305 = vrot.slane %v1304, 4
        %v1307 = vshll.u32 %v1198, 16
        %v1309 = vrot.slane %v1307, 5
        %v1310 = vsel %vm570, %v1305, %v1309
        %s1311 = scalar_lea.vmem [#allocation5], 320
        %v1312 = vld [vmem:[%s1311] sm:$0xf]
        %v1313 = vld [vmem:[%s1311 + $0x4] sm:$0xf]
        %v1314 = vld [vmem:[%s1311 + $0x8] sm:$0xf]
        %v1315 = vld [vmem:[%s1311 + $0xc] sm:$0xf]
        %v1316 = vld [vmem:[%s1311 + $0x10] sm:$0xf]
        %v1317 = vld [vmem:[%s1311 + $0x14] sm:$0xf]
        %v1318 = vld [vmem:[%s1311 + $0x18] sm:$0xf]
        %v1319 = vld [vmem:[%s1311 + $0x1c] sm:$0xf]
        %v1320 = vld [vmem:[%s1311 + $0x20] sm:$0xf]
        %v1321 = vld [vmem:[%s1311 + $0x24] sm:$0xf]
        %v1322 = vld [vmem:[%s1311 + $0x28] sm:$0xf]
        %v1323 = vld [vmem:[%s1311 + $0x2c] sm:$0xf]
        %v1324 = vld [vmem:[%s1311 + $0x30] sm:$0xf]
        %v1325 = vld [vmem:[%s1311 + $0x34] sm:$0xf]
        %v1326 = vld [vmem:[%s1311 + $0x38] sm:$0xf]
        %v1327 = vld [vmem:[%s1311 + $0x3c] sm:$0xf]
        %v1328 = vunpack.c.l.b16 %v1212
        %v1329 = vunpack.c.l.b16 %v1226
        %v1330 = vunpack.c.l.b16 %v1240
        %v1331 = vunpack.c.l.b16 %v1254
        %v1332 = vunpack.c.l.b16 %v1268
        %v1333 = vunpack.c.l.b16 %v1282
        %v1334 = vunpack.c.l.b16 %v1296
        %v1335 = vunpack.c.l.b16 %v1310
        %v1336 = vpack.c.b16 %v1329, %v1328
        %v1337 = vpack.c.b16 %v1331, %v1330
        %v1338 = vpack.c.b16 %v1333, %v1332
        %v1339 = vpack.c.b16 %v1335, %v1334
        %v1360 = vunpack.c.l.b16 %v1312
        %v1361 = vunpack.c.l.b16 %v1313
        %v1362 = vunpack.c.l.b16 %v1314
        %v1363 = vunpack.c.l.b16 %v1315
        %v1364 = vunpack.c.l.b16 %v1316
        %v1365 = vunpack.c.l.b16 %v1317
        %v1366 = vunpack.c.l.b16 %v1318
        %v1367 = vunpack.c.l.b16 %v1319
        %v1368 = vunpack.c.l.b16 %v1320
        %v1369 = vunpack.c.l.b16 %v1321
        %v1370 = vunpack.c.l.b16 %v1322
        %v1371 = vunpack.c.l.b16 %v1323
        %v1372 = vunpack.c.l.b16 %v1324
        %v1373 = vunpack.c.l.b16 %v1325
        %v1374 = vunpack.c.l.b16 %v1326
        %v1375 = vunpack.c.l.b16 %v1327
        %v1376 = vpack.c.b16 %v1361, %v1360
        %v1377 = vpack.c.b16 %v1363, %v1362
        %v1378 = vpack.c.b16 %v1365, %v1364
        %v1379 = vpack.c.b16 %v1367, %v1366
        %v1380 = vpack.c.b16 %v1369, %v1368
        %v1381 = vpack.c.b16 %v1371, %v1370
        %v1382 = vpack.c.b16 %v1373, %v1372
        %v1383 = vpack.c.b16 %v1375, %v1374
        %1392 = vmatprep.subr.bf16.mxu0 0
        %1393 = vmatpush1.bf16.msra.mxu0 %v1376
        %1394 = vmatprep.subr.bf16.mxu0 0
        %1395 = vmatpush1.bf16.msra.mxu0 %v1377
        %1396 = vmatprep.subr.bf16.mxu0 0
        %1397 = vmatpush1.bf16.msra.mxu0 %v1378
        %1398 = vmatprep.subr.bf16.mxu0 0
        %1399 = vmatpush1.bf16.msra.mxu0 %v1379
        %1400 = vmatprep.subr.bf16.mxu0 0
        %1401 = vmatpush1.bf16.msra.mxu0 %v1380
        %1402 = vmatprep.subr.bf16.mxu0 0
        %1403 = vmatpush1.bf16.msra.mxu0 %v1381
        %1404 = vmatprep.subr.bf16.mxu0 0
        %1405 = vmatpush1.bf16.msra.mxu0 %v1382
        %1406 = vmatprep.subr.bf16.mxu0 0
        %1407 = vmatpush1.bf16.msra.mxu0 %v1383
        %1408 = vmatprep.subr.bf16.mxu0 0
        %1409 = vmatpush1.bf16.msra.mxu0 0
        %1410 = vmatprep.subr.bf16.mxu0 0
        %1411 = vmatpush1.bf16.msra.mxu0 0
        %1412 = vmatprep.subr.bf16.mxu0 0
        %1413 = vmatpush1.bf16.msra.mxu0 0
        %1414 = vmatprep.subr.bf16.mxu0 0
        %1415 = vmatpush1.bf16.msra.mxu0 0
        %1416 = vmatprep.subr.bf16.mxu0 0
        %1417 = vmatpush1.bf16.msra.mxu0 0
        %1418 = vmatprep.subr.bf16.mxu0 0
        %1419 = vmatpush1.bf16.msra.mxu0 0
        %1420 = vmatprep.subr.bf16.mxu0 0
        %1421 = vmatpush1.bf16.msra.mxu0 0
        %1422 = vmatprep.subr.bf16.mxu0 0
        %1423 = vmatpush1.bf16.msra.mxu0 0
        %1424 = vmatprep.mubr.bf16.mxu0 0
        %1425 = vmatmul.mubr.bf16.gmra.mrb[0].mxu0 %v1336
        %v1426 = vpop.f32.mrb[0].mxu0
        %v1427 = vadd.f32 0.0, %v1426
        %v1428 = vpop.f32.mrb[0].mxu0
        %v1429 = vpop.f32.mrb[0].mxu0
        %v1430 = vadd.f32 0.0, %v1429
        %v1431 = vpop.f32.mrb[0].mxu0
        %1432 = vmatprep.mubr.bf16.mxu0 0
        %1433 = vmatmul.mubr.bf16.gmra.mrb[0].mxu0 %v1337
        %v1434 = vpop.f32.mrb[0].mxu0
        %v1435 = vadd.f32 0.0, %v1434
        %v1436 = vpop.f32.mrb[0].mxu0
        %v1437 = vpop.f32.mrb[0].mxu0
        %v1438 = vadd.f32 0.0, %v1437
        %v1439 = vpop.f32.mrb[0].mxu0
        %1440 = vmatprep.mubr.bf16.mxu0 0
        %1441 = vmatmul.mubr.bf16.gmra.mrb[0].mxu0 %v1338
        %v1442 = vpop.f32.mrb[0].mxu0
        %v1443 = vadd.f32 0.0, %v1442
        %v1444 = vpop.f32.mrb[0].mxu0
        %v1445 = vpop.f32.mrb[0].mxu0
        %v1446 = vadd.f32 0.0, %v1445
        %v1447 = vpop.f32.mrb[0].mxu0
        %1448 = vmatprep.mubr.bf16.mxu0 0
        %1449 = vmatmul.mubr.bf16.gmra.mrb[0].mxu0 %v1339
        %v1450 = vpop.f32.mrb[0].mxu0
        %v1451 = vadd.f32 0.0, %v1450
        %v1452 = vpop.f32.mrb[0].mxu0
        %v1453 = vpop.f32.mrb[0].mxu0
        %v1454 = vadd.f32 0.0, %v1453
        %v1455 = vpop.f32.mrb[0].mxu0
        %1456 = vdwg.mxu0
        %v1457 = vadd.f32 %v1175, %v1427
        %v1458 = vadd.f32 %v1176, %v1430
        %v1459 = vadd.f32 %v1177, %v1435
        %v1460 = vadd.f32 %v1178, %v1438
        %v1461 = vadd.f32 %v1179, %v1443
        %v1462 = vadd.f32 %v1180, %v1446
        %v1463 = vadd.f32 %v1181, %v1451
        %v1464 = vadd.f32 %v1182, %v1454
        %s1465 = sadd.s32 %s222, 1
        %s1466 = smul.u32 %s1465, 2
        %s1467 = smul.addr %s1466, 4
        %s1468 = scalar_lea.vmem %s192, %s1467 [#allocation2]
        %v1469 = vld [vmem:[%s1468] sm:$0xf]
        %v1470 = vld [vmem:[%s1468 + $0x8] sm:$0xf]
        %v1471 = vld [vmem:[%s1468 + $0x10] sm:$0xf]
        %v1472 = vld [vmem:[%s1468 + $0x18] sm:$0xf]
        %v1473 = vld [vmem:[%s1468 + $0x20] sm:$0xf]
        %v1474 = vld [vmem:[%s1468 + $0x28] sm:$0xf]
        %v1475 = vld [vmem:[%s1468 + $0x30] sm:$0xf]
        %v1476 = vld [vmem:[%s1468 + $0x38] sm:$0xf]
        %s1477 = scalar_lea.vmem [#allocation5], 384
        %v1478 = vld [vmem:[%s1477] sm:$0xf]
        %v1479 = vld [vmem:[%s1477 + $0x4] sm:$0xf]
        %v1480 = vld [vmem:[%s1477 + $0x8] sm:$0xf]
        %v1481 = vld [vmem:[%s1477 + $0xc] sm:$0xf]
        %v1482 = vld [vmem:[%s1477 + $0x10] sm:$0xf]
        %v1483 = vld [vmem:[%s1477 + $0x14] sm:$0xf]
        %v1484 = vld [vmem:[%s1477 + $0x18] sm:$0xf]
        %v1485 = vld [vmem:[%s1477 + $0x1c] sm:$0xf]
        %v1486 = vld [vmem:[%s1477 + $0x20] sm:$0xf]
        %v1487 = vld [vmem:[%s1477 + $0x24] sm:$0xf]
        %v1488 = vld [vmem:[%s1477 + $0x28] sm:$0xf]
        %v1489 = vld [vmem:[%s1477 + $0x2c] sm:$0xf]
        %v1490 = vld [vmem:[%s1477 + $0x30] sm:$0xf]
        %v1491 = vld [vmem:[%s1477 + $0x34] sm:$0xf]
        %v1492 = vld [vmem:[%s1477 + $0x38] sm:$0xf]
        %v1493 = vld [vmem:[%s1477 + $0x3c] sm:$0xf]
        %v1502 = vunpack.c.l.b16 %v1469
        %v1503 = vunpack.c.l.b16 %v1470
        %v1504 = vunpack.c.l.b16 %v1471
        %v1505 = vunpack.c.l.b16 %v1472
        %v1506 = vunpack.c.l.b16 %v1473
        %v1507 = vunpack.c.l.b16 %v1474
        %v1508 = vunpack.c.l.b16 %v1475
        %v1509 = vunpack.c.l.b16 %v1476
        %v1510 = vpack.c.b16 %v1503, %v1502
        %v1511 = vpack.c.b16 %v1505, %v1504
        %v1512 = vpack.c.b16 %v1507, %v1506
        %v1513 = vpack.c.b16 %v1509, %v1508
        %v1534 = vunpack.c.l.b16 %v1478
        %v1535 = vunpack.c.l.b16 %v1479
        %v1536 = vunpack.c.l.b16 %v1480
        %v1537 = vunpack.c.l.b16 %v1481
        %v1538 = vunpack.c.l.b16 %v1482
        %v1539 = vunpack.c.l.b16 %v1483
        %v1540 = vunpack.c.l.b16 %v1484
        %v1541 = vunpack.c.l.b16 %v1485
        %v1542 = vunpack.c.l.b16 %v1486
        %v1543 = vunpack.c.l.b16 %v1487
        %v1544 = vunpack.c.l.b16 %v1488
        %v1545 = vunpack.c.l.b16 %v1489
        %v1546 = vunpack.c.l.b16 %v1490
        %v1547 = vunpack.c.l.b16 %v1491
        %v1548 = vunpack.c.l.b16 %v1492
        %v1549 = vunpack.c.l.b16 %v1493
        %v1550 = vpack.c.b16 %v1535, %v1534
        %v1551 = vpack.c.b16 %v1537, %v1536
        %v1552 = vpack.c.b16 %v1539, %v1538
        %v1553 = vpack.c.b16 %v1541, %v1540
        %v1554 = vpack.c.b16 %v1543, %v1542
        %v1555 = vpack.c.b16 %v1545, %v1544
        %v1556 = vpack.c.b16 %v1547, %v1546
        %v1557 = vpack.c.b16 %v1549, %v1548
        %1566 = vmatprep.subr.bf16.mxu0 0
        %1567 = vmatpush1.bf16.msra.mxu0 %v1550
        %1568 = vmatprep.subr.bf16.mxu0 0
        %1569 = vmatpush1.bf16.msra.mxu0 %v1551
        %1570 = vmatprep.subr.bf16.mxu0 0
        %1571 = vmatpush1.bf16.msra.mxu0 %v1552
        %1572 = vmatprep.subr.bf16.mxu0 0
        %1573 = vmatpush1.bf16.msra.mxu0 %v1553
        %1574 = vmatprep.subr.bf16.mxu0 0
        %1575 = vmatpush1.bf16.msra.mxu0 %v1554
        %1576 = vmatprep.subr.bf16.mxu0 0
        %1577 = vmatpush1.bf16.msra.mxu0 %v1555
        %1578 = vmatprep.subr.bf16.mxu0 0
        %1579 = vmatpush1.bf16.msra.mxu0 %v1556
        %1580 = vmatprep.subr.bf16.mxu0 0
        %1581 = vmatpush1.bf16.msra.mxu0 %v1557
        %1582 = vmatprep.subr.bf16.mxu0 0
        %1583 = vmatpush1.bf16.msra.mxu0 0
        %1584 = vmatprep.subr.bf16.mxu0 0
        %1585 = vmatpush1.bf16.msra.mxu0 0
        %1586 = vmatprep.subr.bf16.mxu0 0
        %1587 = vmatpush1.bf16.msra.mxu0 0
        %1588 = vmatprep.subr.bf16.mxu0 0
        %1589 = vmatpush1.bf16.msra.mxu0 0
        %1590 = vmatprep.subr.bf16.mxu0 0
        %1591 = vmatpush1.bf16.msra.mxu0 0
        %1592 = vmatprep.subr.bf16.mxu0 0
        %1593 = vmatpush1.bf16.msra.mxu0 0
        %1594 = vmatprep.subr.bf16.mxu0 0
        %1595 = vmatpush1.bf16.msra.mxu0 0
        %1596 = vmatprep.subr.bf16.mxu0 0
        %1597 = vmatpush1.bf16.msra.mxu0 0
        %1598 = vmatprep.mubr.bf16.mxu0 0
        %1599 = vmatmul.mubr.bf16.gmra.mrb[0].mxu0 %v1510
        %v1600 = vpop.f32.mrb[0].mxu0
        %v1601 = vadd.f32 0.0, %v1600
        %v1602 = vpop.f32.mrb[0].mxu0
        %v1603 = vpop.f32.mrb[0].mxu0
        %v1604 = vadd.f32 0.0, %v1603
        %v1605 = vpop.f32.mrb[0].mxu0
        %1606 = vmatprep.mubr.bf16.mxu0 0
        %1607 = vmatmul.mubr.bf16.gmra.mrb[0].mxu0 %v1511
        %v1608 = vpop.f32.mrb[0].mxu0
        %v1609 = vadd.f32 0.0, %v1608
        %v1610 = vpop.f32.mrb[0].mxu0
        %v1611 = vpop.f32.mrb[0].mxu0
        %v1612 = vadd.f32 0.0, %v1611
        %v1613 = vpop.f32.mrb[0].mxu0
        %1614 = vmatprep.mubr.bf16.mxu0 0
        %1615 = vmatmul.mubr.bf16.gmra.mrb[0].mxu0 %v1512
        %v1616 = vpop.f32.mrb[0].mxu0
        %v1617 = vadd.f32 0.0, %v1616
        %v1618 = vpop.f32.mrb[0].mxu0
        %v1619 = vpop.f32.mrb[0].mxu0
        %v1620 = vadd.f32 0.0, %v1619
        %v1621 = vpop.f32.mrb[0].mxu0
        %1622 = vmatprep.mubr.bf16.mxu0 0
        %1623 = vmatmul.mubr.bf16.gmra.mrb[0].mxu0 %v1513
        %v1624 = vpop.f32.mrb[0].mxu0
        %v1625 = vadd.f32 0.0, %v1624
        %v1626 = vpop.f32.mrb[0].mxu0
        %v1627 = vpop.f32.mrb[0].mxu0
        %v1628 = vadd.f32 0.0, %v1627
        %v1629 = vpop.f32.mrb[0].mxu0
        %1630 = vdwg.mxu0
        %v1631 = vadd.f32 %v1457, %v1601
        %v1632 = vadd.f32 %v1458, %v1604
        %v1633 = vadd.f32 %v1459, %v1609
        %v1634 = vadd.f32 %v1460, %v1612
        %v1635 = vadd.f32 %v1461, %v1617
        %v1636 = vadd.f32 %v1462, %v1620
        %v1637 = vadd.f32 %v1463, %v1625
        %v1638 = vadd.f32 %v1464, %v1628
        %s1639 = sadd.s32 %s1466, 18
        %s1640 = smul.addr %s1639, 4
        %s1641 = scalar_lea.vmem %s192, %s1640 [#allocation2]
        %v1642 = vld [vmem:[%s1641] sm:$0xf]
        %v1643 = vld [vmem:[%s1641 + $0x8] sm:$0xf]
        %v1644 = vld [vmem:[%s1641 + $0x10] sm:$0xf]
        %v1645 = vld [vmem:[%s1641 + $0x18] sm:$0xf]
        %v1646 = vld [vmem:[%s1641 + $0x20] sm:$0xf]
        %v1647 = vld [vmem:[%s1641 + $0x28] sm:$0xf]
        %v1648 = vld [vmem:[%s1641 + $0x30] sm:$0xf]
        %v1649 = vld [vmem:[%s1641 + $0x38] sm:$0xf]
        %s1650 = scalar_lea.vmem [#allocation5], 448
        %v1651 = vld [vmem:[%s1650] sm:$0xf]
        %v1652 = vld [vmem:[%s1650 + $0x4] sm:$0xf]
        %v1653 = vld [vmem:[%s1650 + $0x8] sm:$0xf]
        %v1654 = vld [vmem:[%s1650 + $0xc] sm:$0xf]
        %v1655 = vld [vmem:[%s1650 + $0x10] sm:$0xf]
        %v1656 = vld [vmem:[%s1650 + $0x14] sm:$0xf]
        %v1657 = vld [vmem:[%s1650 + $0x18] sm:$0xf]
        %v1658 = vld [vmem:[%s1650 + $0x1c] sm:$0xf]
        %v1659 = vld [vmem:[%s1650 + $0x20] sm:$0xf]
        %v1660 = vld [vmem:[%s1650 + $0x24] sm:$0xf]
        %v1661 = vld [vmem:[%s1650 + $0x28] sm:$0xf]
        %v1662 = vld [vmem:[%s1650 + $0x2c] sm:$0xf]
        %v1663 = vld [vmem:[%s1650 + $0x30] sm:$0xf]
        %v1664 = vld [vmem:[%s1650 + $0x34] sm:$0xf]
        %v1665 = vld [vmem:[%s1650 + $0x38] sm:$0xf]
        %v1666 = vld [vmem:[%s1650 + $0x3c] sm:$0xf]
        %v1675 = vunpack.c.l.b16 %v1642
        %v1676 = vunpack.c.l.b16 %v1643
        %v1677 = vunpack.c.l.b16 %v1644
        %v1678 = vunpack.c.l.b16 %v1645
        %v1679 = vunpack.c.l.b16 %v1646
        %v1680 = vunpack.c.l.b16 %v1647
        %v1681 = vunpack.c.l.b16 %v1648
        %v1682 = vunpack.c.l.b16 %v1649
        %v1683 = vpack.c.b16 %v1676, %v1675
        %v1684 = vpack.c.b16 %v1678, %v1677
        %v1685 = vpack.c.b16 %v1680, %v1679
        %v1686 = vpack.c.b16 %v1682, %v1681
        %v1707 = vunpack.c.l.b16 %v1651
        %v1708 = vunpack.c.l.b16 %v1652
        %v1709 = vunpack.c.l.b16 %v1653
        %v1710 = vunpack.c.l.b16 %v1654
        %v1711 = vunpack.c.l.b16 %v1655
        %v1712 = vunpack.c.l.b16 %v1656
        %v1713 = vunpack.c.l.b16 %v1657
        %v1714 = vunpack.c.l.b16 %v1658
        %v1715 = vunpack.c.l.b16 %v1659
        %v1716 = vunpack.c.l.b16 %v1660
        %v1717 = vunpack.c.l.b16 %v1661
        %v1718 = vunpack.c.l.b16 %v1662
        %v1719 = vunpack.c.l.b16 %v1663
        %v1720 = vunpack.c.l.b16 %v1664
        %v1721 = vunpack.c.l.b16 %v1665
        %v1722 = vunpack.c.l.b16 %v1666
        %v1723 = vpack.c.b16 %v1708, %v1707
        %v1724 = vpack.c.b16 %v1710, %v1709
        %v1725 = vpack.c.b16 %v1712, %v1711
        %v1726 = vpack.c.b16 %v1714, %v1713
        %v1727 = vpack.c.b16 %v1716, %v1715
        %v1728 = vpack.c.b16 %v1718, %v1717
        %v1729 = vpack.c.b16 %v1720, %v1719
        %v1730 = vpack.c.b16 %v1722, %v1721
        %1739 = vmatprep.subr.bf16.mxu0 0
        %1740 = vmatpush1.bf16.msra.mxu0 %v1723
        %1741 = vmatprep.subr.bf16.mxu0 0
        %1742 = vmatpush1.bf16.msra.mxu0 %v1724
        %1743 = vmatprep.subr.bf16.mxu0 0
        %1744 = vmatpush1.bf16.msra.mxu0 %v1725
        %1745 = vmatprep.subr.bf16.mxu0 0
        %1746 = vmatpush1.bf16.msra.mxu0 %v1726
        %1747 = vmatprep.subr.bf16.mxu0 0
        %1748 = vmatpush1.bf16.msra.mxu0 %v1727
        %1749 = vmatprep.subr.bf16.mxu0 0
        %1750 = vmatpush1.bf16.msra.mxu0 %v1728
        %1751 = vmatprep.subr.bf16.mxu0 0
        %1752 = vmatpush1.bf16.msra.mxu0 %v1729
        %1753 = vmatprep.subr.bf16.mxu0 0
        %1754 = vmatpush1.bf16.msra.mxu0 %v1730
        %1755 = vmatprep.subr.bf16.mxu0 0
        %1756 = vmatpush1.bf16.msra.mxu0 0
        %1757 = vmatprep.subr.bf16.mxu0 0
        %1758 = vmatpush1.bf16.msra.mxu0 0
        %1759 = vmatprep.subr.bf16.mxu0 0
        %1760 = vmatpush1.bf16.msra.mxu0 0
        %1761 = vmatprep.subr.bf16.mxu0 0
        %1762 = vmatpush1.bf16.msra.mxu0 0
        %1763 = vmatprep.subr.bf16.mxu0 0
        %1764 = vmatpush1.bf16.msra.mxu0 0
        %1765 = vmatprep.subr.bf16.mxu0 0
        %1766 = vmatpush1.bf16.msra.mxu0 0
        %1767 = vmatprep.subr.bf16.mxu0 0
        %1768 = vmatpush1.bf16.msra.mxu0 0
        %1769 = vmatprep.subr.bf16.mxu0 0
        %1770 = vmatpush1.bf16.msra.mxu0 0
        %1771 = vmatprep.mubr.bf16.mxu0 0
        %1772 = vmatmul.mubr.bf16.gmra.mrb[0].mxu0 %v1683
        %v1773 = vpop.f32.mrb[0].mxu0
        %v1774 = vadd.f32 0.0, %v1773
        %v1775 = vpop.f32.mrb[0].mxu0
        %v1776 = vpop.f32.mrb[0].mxu0
        %v1777 = vadd.f32 0.0, %v1776
        %v1778 = vpop.f32.mrb[0].mxu0
        %1779 = vmatprep.mubr.bf16.mxu0 0
        %1780 = vmatmul.mubr.bf16.gmra.mrb[0].mxu0 %v1684
        %v1781 = vpop.f32.mrb[0].mxu0
        %v1782 = vadd.f32 0.0, %v1781
        %v1783 = vpop.f32.mrb[0].mxu0
        %v1784 = vpop.f32.mrb[0].mxu0
        %v1785 = vadd.f32 0.0, %v1784
        %v1786 = vpop.f32.mrb[0].mxu0
        %1787 = vmatprep.mubr.bf16.mxu0 0
        %1788 = vmatmul.mubr.bf16.gmra.mrb[0].mxu0 %v1685
        %v1789 = vpop.f32.mrb[0].mxu0
        %v1790 = vadd.f32 0.0, %v1789
        %v1791 = vpop.f32.mrb[0].mxu0
        %v1792 = vpop.f32.mrb[0].mxu0
        %v1793 = vadd.f32 0.0, %v1792
        %v1794 = vpop.f32.mrb[0].mxu0
        %1795 = vmatprep.mubr.bf16.mxu0 0
        %1796 = vmatmul.mubr.bf16.gmra.mrb[0].mxu0 %v1686
        %v1797 = vpop.f32.mrb[0].mxu0
        %v1798 = vadd.f32 0.0, %v1797
        %v1799 = vpop.f32.mrb[0].mxu0
        %v1800 = vpop.f32.mrb[0].mxu0
        %v1801 = vadd.f32 0.0, %v1800
        %v1802 = vpop.f32.mrb[0].mxu0
        %1803 = vdwg.mxu0
        %v1804 = vadd.f32 %v1631, %v1774
        %v1805 = vadd.f32 %v1632, %v1777
        %v1806 = vadd.f32 %v1633, %v1782
        %v1807 = vadd.f32 %v1634, %v1785
        %v1808 = vadd.f32 %v1635, %v1790
        %v1809 = vadd.f32 %v1636, %v1793
        %v1810 = vadd.f32 %v1637, %v1798
        %v1811 = vadd.f32 %v1638, %v1801
        %v1812 = vld [vmem:[%s1468] sm:$0xf]
        %v1813 = vld [vmem:[%s1468 + $0x4] sm:$0x1]
        %v1814 = vld [vmem:[%s1468 + $0x8] sm:$0xf]
        %v1815 = vld [vmem:[%s1468 + $0xc] sm:$0x1]
        %v1816 = vld [vmem:[%s1468 + $0x10] sm:$0xf]
        %v1817 = vld [vmem:[%s1468 + $0x14] sm:$0x1]
        %v1818 = vld [vmem:[%s1468 + $0x18] sm:$0xf]
        %v1819 = vld [vmem:[%s1468 + $0x1c] sm:$0x1]
        %v1820 = vld [vmem:[%s1468 + $0x20] sm:$0xf]
        %v1821 = vld [vmem:[%s1468 + $0x24] sm:$0x1]
        %v1822 = vld [vmem:[%s1468 + $0x28] sm:$0xf]
        %v1823 = vld [vmem:[%s1468 + $0x2c] sm:$0x1]
        %v1824 = vld [vmem:[%s1468 + $0x30] sm:$0xf]
        %v1825 = vld [vmem:[%s1468 + $0x34] sm:$0x1]
        %v1826 = vld [vmem:[%s1468 + $0x38] sm:$0xf]
        %v1827 = vld [vmem:[%s1468 + $0x3c] sm:$0x1]
        %v1829 = vshrl.u32 %v1812, 16
        %v1831 = vrot.slane %v1829, 4
        %v1832 = vshll.u32 %v1812, 16
        %v1834 = vrot.slane %v1832, 5
        %v1835 = vor.u32 %v1831, %v1834
        %v1836 = vrot.slane %v1835, 4
        %v1838 = vshll.u32 %v1813, 16
        %v1840 = vrot.slane %v1838, 5
        %v1841 = vsel %vm570, %v1836, %v1840
        %v1843 = vshrl.u32 %v1814, 16
        %v1845 = vrot.slane %v1843, 4
        %v1846 = vshll.u32 %v1814, 16
        %v1848 = vrot.slane %v1846, 5
        %v1849 = vor.u32 %v1845, %v1848
        %v1850 = vrot.slane %v1849, 4
        %v1852 = vshll.u32 %v1815, 16
        %v1854 = vrot.slane %v1852, 5
        %v1855 = vsel %vm570, %v1850, %v1854
        %v1857 = vshrl.u32 %v1816, 16
        %v1859 = vrot.slane %v1857, 4
        %v1860 = vshll.u32 %v1816, 16
        %v1862 = vrot.slane %v1860, 5
        %v1863 = vor.u32 %v1859, %v1862
        %v1864 = vrot.slane %v1863, 4
        %v1866 = vshll.u32 %v1817, 16
        %v1868 = vrot.slane %v1866, 5
        %v1869 = vsel %vm570, %v1864, %v1868
        %v1871 = vshrl.u32 %v1818, 16
        %v1873 = vrot.slane %v1871, 4
        %v1874 = vshll.u32 %v1818, 16
        %v1876 = vrot.slane %v1874, 5
        %v1877 = vor.u32 %v1873, %v1876
        %v1878 = vrot.slane %v1877, 4
        %v1880 = vshll.u32 %v1819, 16
        %v1882 = vrot.slane %v1880, 5
        %v1883 = vsel %vm570, %v1878, %v1882
        %v1885 = vshrl.u32 %v1820, 16
        %v1887 = vrot.slane %v1885, 4
        %v1888 = vshll.u32 %v1820, 16
        %v1890 = vrot.slane %v1888, 5
        %v1891 = vor.u32 %v1887, %v1890
        %v1892 = vrot.slane %v1891, 4
        %v1894 = vshll.u32 %v1821, 16
        %v1896 = vrot.slane %v1894, 5
        %v1897 = vsel %vm570, %v1892, %v1896
        %v1899 = vshrl.u32 %v1822, 16
        %v1901 = vrot.slane %v1899, 4
        %v1902 = vshll.u32 %v1822, 16
        %v1904 = vrot.slane %v1902, 5
        %v1905 = vor.u32 %v1901, %v1904
        %v1906 = vrot.slane %v1905, 4
        %v1908 = vshll.u32 %v1823, 16
        %v1910 = vrot.slane %v1908, 5
        %v1911 = vsel %vm570, %v1906, %v1910
        %v1913 = vshrl.u32 %v1824, 16
        %v1915 = vrot.slane %v1913, 4
        %v1916 = vshll.u32 %v1824, 16
        %v1918 = vrot.slane %v1916, 5
        %v1919 = vor.u32 %v1915, %v1918
        %v1920 = vrot.slane %v1919, 4
        %v1922 = vshll.u32 %v1825, 16
        %v1924 = vrot.slane %v1922, 5
        %v1925 = vsel %vm570, %v1920, %v1924
        %v1927 = vshrl.u32 %v1826, 16
        %v1929 = vrot.slane %v1927, 4
        %v1930 = vshll.u32 %v1826, 16
        %v1932 = vrot.slane %v1930, 5
        %v1933 = vor.u32 %v1929, %v1932
        %v1934 = vrot.slane %v1933, 4
        %v1936 = vshll.u32 %v1827, 16
        %v1938 = vrot.slane %v1936, 5
        %v1939 = vsel %vm570, %v1934, %v1938
        %s1940 = scalar_lea.vmem [#allocation5], 512
        %v1941 = vld [vmem:[%s1940] sm:$0xf]
        %v1942 = vld [vmem:[%s1940 + $0x4] sm:$0xf]
        %v1943 = vld [vmem:[%s1940 + $0x8] sm:$0xf]
        %v1944 = vld [vmem:[%s1940 + $0xc] sm:$0xf]
        %v1945 = vld [vmem:[%s1940 + $0x10] sm:$0xf]
        %v1946 = vld [vmem:[%s1940 + $0x14] sm:$0xf]
        %v1947 = vld [vmem:[%s1940 + $0x18] sm:$0xf]
        %v1948 = vld [vmem:[%s1940 + $0x1c] sm:$0xf]
        %v1949 = vld [vmem:[%s1940 + $0x20] sm:$0xf]
        %v1950 = vld [vmem:[%s1940 + $0x24] sm:$0xf]
        %v1951 = vld [vmem:[%s1940 + $0x28] sm:$0xf]
        %v1952 = vld [vmem:[%s1940 + $0x2c] sm:$0xf]
        %v1953 = vld [vmem:[%s1940 + $0x30] sm:$0xf]
        %v1954 = vld [vmem:[%s1940 + $0x34] sm:$0xf]
        %v1955 = vld [vmem:[%s1940 + $0x38] sm:$0xf]
        %v1956 = vld [vmem:[%s1940 + $0x3c] sm:$0xf]
        %v1957 = vunpack.c.l.b16 %v1841
        %v1958 = vunpack.c.l.b16 %v1855
        %v1959 = vunpack.c.l.b16 %v1869
        %v1960 = vunpack.c.l.b16 %v1883
        %v1961 = vunpack.c.l.b16 %v1897
        %v1962 = vunpack.c.l.b16 %v1911
        %v1963 = vunpack.c.l.b16 %v1925
        %v1964 = vunpack.c.l.b16 %v1939
        %v1965 = vpack.c.b16 %v1958, %v1957
        %v1966 = vpack.c.b16 %v1960, %v1959
        %v1967 = vpack.c.b16 %v1962, %v1961
        %v1968 = vpack.c.b16 %v1964, %v1963
        %v1989 = vunpack.c.l.b16 %v1941
        %v1990 = vunpack.c.l.b16 %v1942
        %v1991 = vunpack.c.l.b16 %v1943
        %v1992 = vunpack.c.l.b16 %v1944
        %v1993 = vunpack.c.l.b16 %v1945
        %v1994 = vunpack.c.l.b16 %v1946
        %v1995 = vunpack.c.l.b16 %v1947
        %v1996 = vunpack.c.l.b16 %v1948
        %v1997 = vunpack.c.l.b16 %v1949
        %v1998 = vunpack.c.l.b16 %v1950
        %v1999 = vunpack.c.l.b16 %v1951
        %v2000 = vunpack.c.l.b16 %v1952
        %v2001 = vunpack.c.l.b16 %v1953
        %v2002 = vunpack.c.l.b16 %v1954
        %v2003 = vunpack.c.l.b16 %v1955
        %v2004 = vunpack.c.l.b16 %v1956
        %v2005 = vpack.c.b16 %v1990, %v1989
        %v2006 = vpack.c.b16 %v1992, %v1991
        %v2007 = vpack.c.b16 %v1994, %v1993
        %v2008 = vpack.c.b16 %v1996, %v1995
        %v2009 = vpack.c.b16 %v1998, %v1997
        %v2010 = vpack.c.b16 %v2000, %v1999
        %v2011 = vpack.c.b16 %v2002, %v2001
        %v2012 = vpack.c.b16 %v2004, %v2003
        %2021 = vmatprep.subr.bf16.mxu0 0
        %2022 = vmatpush1.bf16.msra.mxu0 %v2005
        %2023 = vmatprep.subr.bf16.mxu0 0
        %2024 = vmatpush1.bf16.msra.mxu0 %v2006
        %2025 = vmatprep.subr.bf16.mxu0 0
        %2026 = vmatpush1.bf16.msra.mxu0 %v2007
        %2027 = vmatprep.subr.bf16.mxu0 0
        %2028 = vmatpush1.bf16.msra.mxu0 %v2008
        %2029 = vmatprep.subr.bf16.mxu0 0
        %2030 = vmatpush1.bf16.msra.mxu0 %v2009
        %2031 = vmatprep.subr.bf16.mxu0 0
        %2032 = vmatpush1.bf16.msra.mxu0 %v2010
        %2033 = vmatprep.subr.bf16.mxu0 0
        %2034 = vmatpush1.bf16.msra.mxu0 %v2011
        %2035 = vmatprep.subr.bf16.mxu0 0
        %2036 = vmatpush1.bf16.msra.mxu0 %v2012
        %2037 = vmatprep.subr.bf16.mxu0 0
        %2038 = vmatpush1.bf16.msra.mxu0 0
        %2039 = vmatprep.subr.bf16.mxu0 0
        %2040 = vmatpush1.bf16.msra.mxu0 0
        %2041 = vmatprep.subr.bf16.mxu0 0
        %2042 = vmatpush1.bf16.msra.mxu0 0
        %2043 = vmatprep.subr.bf16.mxu0 0
        %2044 = vmatpush1.bf16.msra.mxu0 0
        %2045 = vmatprep.subr.bf16.mxu0 0
        %2046 = vmatpush1.bf16.msra.mxu0 0
        %2047 = vmatprep.subr.bf16.mxu0 0
        %2048 = vmatpush1.bf16.msra.mxu0 0
        %2049 = vmatprep.subr.bf16.mxu0 0
        %2050 = vmatpush1.bf16.msra.mxu0 0
        %2051 = vmatprep.subr.bf16.mxu0 0
        %2052 = vmatpush1.bf16.msra.mxu0 0
        %2053 = vmatprep.mubr.bf16.mxu0 0
        %2054 = vmatmul.mubr.bf16.gmra.mrb[0].mxu0 %v1965
        %v2055 = vpop.f32.mrb[0].mxu0
        %v2056 = vadd.f32 0.0, %v2055
        %v2057 = vpop.f32.mrb[0].mxu0
        %v2058 = vpop.f32.mrb[0].mxu0
        %v2059 = vadd.f32 0.0, %v2058
        %v2060 = vpop.f32.mrb[0].mxu0
        %2061 = vmatprep.mubr.bf16.mxu0 0
        %2062 = vmatmul.mubr.bf16.gmra.mrb[0].mxu0 %v1966
        %v2063 = vpop.f32.mrb[0].mxu0
        %v2064 = vadd.f32 0.0, %v2063
        %v2065 = vpop.f32.mrb[0].mxu0
        %v2066 = vpop.f32.mrb[0].mxu0
        %v2067 = vadd.f32 0.0, %v2066
        %v2068 = vpop.f32.mrb[0].mxu0
        %2069 = vmatprep.mubr.bf16.mxu0 0
        %2070 = vmatmul.mubr.bf16.gmra.mrb[0].mxu0 %v1967
        %v2071 = vpop.f32.mrb[0].mxu0
        %v2072 = vadd.f32 0.0, %v2071
        %v2073 = vpop.f32.mrb[0].mxu0
        %v2074 = vpop.f32.mrb[0].mxu0
        %v2075 = vadd.f32 0.0, %v2074
        %v2076 = vpop.f32.mrb[0].mxu0
        %2077 = vmatprep.mubr.bf16.mxu0 0
        %2078 = vmatmul.mubr.bf16.gmra.mrb[0].mxu0 %v1968
        %v2079 = vpop.f32.mrb[0].mxu0
        %v2080 = vadd.f32 0.0, %v2079
        %v2081 = vpop.f32.mrb[0].mxu0
        %v2082 = vpop.f32.mrb[0].mxu0
        %v2083 = vadd.f32 0.0, %v2082
        %v2084 = vpop.f32.mrb[0].mxu0
        %2085 = vdwg.mxu0
        %v2086 = vadd.f32 %v1804, %v2056
        %v2087 = vadd.f32 %v1805, %v2059
        %v2088 = vadd.f32 %v1806, %v2064
        %v2089 = vadd.f32 %v1807, %v2067
        %v2090 = vadd.f32 %v1808, %v2072
        %v2091 = vadd.f32 %v1809, %v2075
        %v2092 = vadd.f32 %v1810, %v2080
        %v2093 = vadd.f32 %v1811, %v2083
        %v2094 = vld [vmem:[%s2] sm:$0x1]
        %v2096 = vlaneseq
        %v2097 = vshrl.u32 %v2096, 7
        %v2098 = vsub.s32 0, %v2097
        %v2099 = vrot.slane %v2094, %v2098
        %v2101 = vadd.f32 %v2086, %v2099
        %v2102 = vadd.f32 %v2087, %v2099
        %v2103 = vadd.f32 %v2088, %v2099
        %v2104 = vadd.f32 %v2089, %v2099
        %v2105 = vadd.f32 %v2090, %v2099
        %v2106 = vadd.f32 %v2091, %v2099
        %v2107 = vadd.f32 %v2092, %v2099
        %v2108 = vadd.f32 %v2093, %v2099
        %2109 = vst [vmem:[%s218] sm:$0xff] %v2101
        %2110 = vst [vmem:[%s218 + $0x8] sm:$0xff] %v2102
        %2111 = vst [vmem:[%s218 + $0x10] sm:$0xff] %v2103
        %2112 = vst [vmem:[%s218 + $0x18] sm:$0xff] %v2104
        %2113 = vst [vmem:[%s218 + $0x20] sm:$0xff] %v2105
        %2114 = vst [vmem:[%s218 + $0x28] sm:$0xff] %v2106
        %2115 = vst [vmem:[%s218 + $0x30] sm:$0xff] %v2107
        %2116 = vst [vmem:[%s218 + $0x38] sm:$0xff] %v2108
        %s2117 = sand.u32 %s111, 1
        %s2118 = scalar_lea.sflag [#allocation4], %s2117
        %s2119 = sand.u32 %s111, 1
        %s2120 = smul.addr %s2119, 64
        %s2121 = scalar_lea.vmem [#allocation7], %s2120
        // Predicated region
        $region41: #{tpu_custom_call.1} parent=31 // pred_check
          %p2122 = pneg %p121
        $region42: #{tpu_custom_call.1} parent=31 // pred_check_branch
          %2124 = sbr.rel (%p2122) target = $region44
        $region43: #{tpu_custom_call.1} parent=31 // pred_region
          %s2125 = smul.u32 8, %s26
          %s2127 = ssub.s32 1024, 1024
          %2128 = vsyncadd %s2118, %s2127
          %s2129 = smul.addr %s25, 8
          %s2130 = sadd.s32 %s2125, %s2129
          %s2131 = smul.addr %s2130, 128
          %s2132 = scalar_lea.hbm %s3, %s2131
          %s2133 = sshll.u32 %s2121, 4
          %s2134 = int_to_ptr.vmem [resolvable:$true] %s2133
          %2139 = dma.vmem_to_hbm [thread:$0]  %s2134, 1024, %s2132, %s2118, 128, 128, 8
        $region44: #{tpu_custom_call.1} parent=31 // pred_fallthru
          _
      $region32: #{tpu_custom_call.1} parent=5 // pred_fallthru
        _
      %p2140 = scmp.le.s32.totalorder 2, %s16
      // Predicated region
      $region45: #{tpu_custom_call.1} parent=5 // pred_check
        %p2141 = pneg %p2140
      $region46: #{tpu_custom_call.1} parent=5 // pred_check_branch
        %2143 = sbr.rel (%p2141) target = $region48
      $region47: #{tpu_custom_call.1} parent=5 // pred_region
        %s2144 = ssub.s32 %s16, 2
        // Predicated region
        $region49: #{tpu_custom_call.1} parent=47 // pred_check
          %p2145 = pneg %p127
        $region50: #{tpu_custom_call.1} parent=47 // pred_check_branch
          %2147 = sbr.rel (%p2145) target = $region52
        $region51: #{tpu_custom_call.1} parent=47 // pred_region
          %s2148 = sand.u32 %s112, 1
          %s2149 = scalar_lea.sflag [#allocation4], %s2148
          %s2150 = sand.u32 %s112, 1
          %s2151 = smul.addr %s2150, 64
          %s2152 = scalar_lea.vmem [#allocation7], %s2151
          %2153 = dma.done %s2149, 1024
        $region52: #{tpu_custom_call.1} parent=47 // pred_fallthru
          _
      $region48: #{tpu_custom_call.1} parent=5 // pred_fallthru
        _
    $region6: #{tpu_custom_call.1} parent=1 // loop_footer
      %s20 = sadd.s32 1, %s16
    $region7: #{tpu_custom_call.1} parent=1 // loop_footer_branch
      %15 = sbr.rel target = $region3
    $region8: #{tpu_custom_call.1} parent=1 // loop_exit
      _
    %2154 = vsyncpa [#allocation3], 1
    %s2155 = scalar_lea.sflag [#allocation3], 1
    %2156 = vsyncpa %s2155, 1
    %2157 = vsyncpa [#allocation6], 1
    %2158 = vsyncpa [#allocation4], 1
    %s2159 = scalar_lea.sflag [#allocation4], 1
    %2160 = vsyncpa %s2159, 1

</llo_original>
